<compile_context>
chip_gen: v5e
topology: v5e:2x2
jax: 0.10.0
libtpu: 0.0.40
codegen_flags: <defaults>
</compile_context>

<pallas_src>
import math
from functools import partial

import jax
import jax.numpy as jnp
from jax.experimental import pallas as pl
from jax.experimental.pallas import tpu as pltpu


_INV_SQRT2 = 1.0 / math.sqrt(2.0)


def _gelu_exact(x):
    # PyTorch nn.GELU() default: exact erf-based GELU.
    return 0.5 * x * (1.0 + jax.lax.erf(x * _INV_SQRT2))


def _mlp_kernel(
    x_ref,                      # (2, T)   input, batch on the lane axis
    w0_ref, b0_ref,             # (30, 2), (30, 1)   linear_start
    w1a_ref, w1b_ref, b1_ref,   # (30,30), (30,30), (30,1)  linear_middle1 (sin/cos split)
    wm_ref, bm_ref,             # (7, 30, 30), (7, 30, 1)   linear_middle2..8 (packed)
    w9_ref, b9_ref,             # (1, 30), (1, 1)    linear_end
    o_ref,                      # (1, T)
):
    x = x_ref[...]              # (2, T)
    w0 = w0_ref[...]            # (30, 2)

    # linear_start (K=2): two broadcast FMAs on the VPU instead of a K=2 MXU pass.
    y = w0[:, 0:1] * x[0:1, :] + w0[:, 1:2] * x[1:2, :] + b0_ref[...]     # (30, T)

    # cat(sin(y), cos(y)) @ W1^T  ==  W1a @ sin(y) + W1b @ cos(y)   (exact split)
    h = (
        jnp.dot(w1a_ref[...], jnp.sin(y), preferred_element_type=jnp.float32)
        + jnp.dot(w1b_ref[...], jnp.cos(y), preferred_element_type=jnp.float32)
        + b1_ref[...]
    )                                                                     # (30, T)
    h = _gelu_exact(h)

    # linear_middle2..8 (statically unrolled; weights read from the resident packed ref)
    for i in range(7):
        h = jnp.dot(wm_ref[i], h, preferred_element_type=jnp.float32) + bm_ref[i]
        h = _gelu_exact(h)

    # linear_end -> lane-dense (1, T) row, unmasked stores.
    o_ref[...] = (
        jnp.dot(w9_ref[...], h, preferred_element_type=jnp.float32) + b9_ref[...]
    )


def network_model_forward(y, params, *, block_n=2048):
    """y: (N, 2) float32. Returns (N, 1) float32."""
    n = y.shape[0]
    # Tile size: multiple of 128, capped at block_n.  Per-step VMEM footprint is
    # tiny (< ~1 MiB at T=2048 incl. double buffers), safe on v5e/v6e/v7x defaults.
    t = min(block_n, pl.cdiv(n, 128) * 128)
    n_pad = pl.cdiv(n, t) * t

    x = jnp.transpose(y.astype(jnp.float32))          # (2, N) — batch on lanes
    if n_pad != n:
        x = jnp.pad(x, ((0, 0), (0, n_pad - n)))

    const2 = lambda i: (0, 0)
    const3 = lambda i: (0, 0, 0)

    out = pl.pallas_call(
        _mlp_kernel,
        out_shape=jax.ShapeDtypeStruct((1, n_pad), jnp.float32),
        grid=(n_pad // t,),
        in_specs=[
            pl.BlockSpec((2, t), lambda i: (0, i)),       # streamed input tile
            pl.BlockSpec((30, 2), const2),                # resident weights/biases
            pl.BlockSpec((30, 1), const2),
            pl.BlockSpec((30, 30), const2),
            pl.BlockSpec((30, 30), const2),
            pl.BlockSpec((30, 1), const2),
            pl.BlockSpec((7, 30, 30), const3),
            pl.BlockSpec((7, 30, 1), const3),
            pl.BlockSpec((1, 30), const2),
            pl.BlockSpec((1, 1), const2),
        ],
        out_specs=pl.BlockSpec((1, t), lambda i: (0, i)),
        compiler_params=pltpu.CompilerParams(
            dimension_semantics=("parallel",),
        ),
    )(
        x,
        params["w0"], params["b0"],
        params["w1a"], params["w1b"], params["b1"],
        params["wm"], params["bm"],
        params["w9"], params["b9"],
    )
    # (1, n_pad) -> (N, 1): same row-major order, free reshape after the slice.
    return out[0, :n].reshape(n, 1)


def _init_linear(key, fan_in, fan_out):
    # PyTorch nn.Linear default: uniform(-1/sqrt(fan_in), 1/sqrt(fan_in)),
    # weight stored (out, in).
    kw, kb = jax.random.split(key)
    bound = 1.0 / math.sqrt(fan_in)
    w = jax.random.uniform(kw, (fan_out, fan_in), jnp.float32, -bound, bound)
    b = jax.random.uniform(kb, (fan_out,), jnp.float32, -bound, bound)
    return w, b


def make_params(key):
    keys = jax.random.split(key, 10)
    p = {}
    # linear_start: 2 -> 30
    w0, b0 = _init_linear(keys[0], 2, 30)
    p["w0"], p["b0"] = w0, b0.reshape(30, 1)
    # linear_middle1: 60 -> 30, column-split into sin-half / cos-half
    w1, b1 = _init_linear(keys[1], 60, 30)            # (30, 60)
    p["w1a"], p["w1b"] = w1[:, :30], w1[:, 30:]
    p["b1"] = b1.reshape(30, 1)
    # linear_middle2..8: 30 -> 30, packed
    wm, bm = [], []
    for i in range(2, 9):
        w, b = _init_linear(keys[i], 30, 30)
        wm.append(w)
        bm.append(b.reshape(30, 1))
    p["wm"] = jnp.stack(wm)                           # (7, 30, 30)
    p["bm"] = jnp.stack(bm)                           # (7, 30, 1)
    # linear_end: 30 -> 1
    w9, b9 = _init_linear(keys[9], 30, 1)             # (1, 30)
    p["w9"], p["b9"] = w9, b9.reshape(1, 1)
    return p


def reference_forward(y, params):
    """Pure-JAX reference mirroring the PyTorch forward exactly."""
    h = y @ params["w0"].T + params["b0"][:, 0]
    x = jnp.concatenate([jnp.sin(h), jnp.cos(h)], axis=1)
    w1 = jnp.concatenate([params["w1a"], params["w1b"]], axis=1)   # (30, 60)
    x = _gelu_exact(x @ w1.T + params["b1"][:, 0])
    for i in range(7):
        x = _gelu_exact(x @ params["wm"][i].T + params["bm"][i, :, 0])
    return x @ params["w9"].T + params["b9"][:, 0]


if __name__ == "__main__":
    key = jax.random.PRNGKey(0)
    k_in, k_in2, k_params = jax.random.split(key, 3)
    params = make_params(k_params)

    # Small test consistent with the module: (batch, 2) -> (batch, 1).
    batch = 8
    y = jax.random.normal(k_in, (batch, 2), jnp.float32)
    fwd = jax.jit(partial(network_model_forward, params=params))
    out = jax.block_until_ready(fwd(y))
    ref = reference_forward(y, params)
    assert out.shape == (batch, 1), out.shape
    assert jnp.allclose(out, ref, atol=1e-4, rtol=1e-4), (out, ref)

    # Exercise the multi-step batch grid + padding path (N not a tile multiple).
    batch2 = 300
    y2 = jax.random.normal(k_in2, (batch2, 2), jnp.float32)
    out2 = jax.block_until_ready(network_model_forward(y2, params, block_n=128))
    ref2 = reference_forward(y2, params)
    assert out2.shape == (batch2, 1), out2.shape
    assert jnp.allclose(out2, ref2, atol=1e-4, rtol=1e-4), (out2, ref2)

    print("KERNEL_OK")
</pallas_src>

<mosaic_0001>
module attributes {stable_mosaic.version = 11 : i64} {
  func.func @_mlp_kernel(%arg0: i32, %arg1: memref<2x128xf32, #tpu.memory_space<vmem>>, %arg2: memref<30x2xf32, #tpu.memory_space<vmem>>, %arg3: memref<30x1xf32, #tpu.memory_space<vmem>>, %arg4: memref<30x30xf32, #tpu.memory_space<vmem>>, %arg5: memref<30x30xf32, #tpu.memory_space<vmem>>, %arg6: memref<30x1xf32, #tpu.memory_space<vmem>>, %arg7: memref<7x30x30xf32, #tpu.memory_space<vmem>>, %arg8: memref<7x30x1xf32, #tpu.memory_space<vmem>>, %arg9: memref<1x30xf32, #tpu.memory_space<vmem>>, %arg10: memref<1x1xf32, #tpu.memory_space<vmem>>, %arg11: memref<1x128xf32, #tpu.memory_space<vmem>>) attributes {dimension_semantics = [#tpu.dimension_semantics<parallel>], iteration_bounds = array<i64: 1>, scalar_prefetch = 0 : i64, scratch_operands = 0 : i64, tpu.core_type = #tpu.core_type<tc>, window_params = [{transform_indices = @transform_0, window_bounds = array<i64: 2, 128>}, {pipeline_mode = #tpu.pipeline_mode<synchronous>, transform_indices = @transform_1, window_bounds = array<i64: 30, 2>}, {pipeline_mode = #tpu.pipeline_mode<synchronous>, transform_indices = @transform_2, window_bounds = array<i64: 30, 1>}, {pipeline_mode = #tpu.pipeline_mode<synchronous>, transform_indices = @transform_3, window_bounds = array<i64: 30, 30>}, {pipeline_mode = #tpu.pipeline_mode<synchronous>, transform_indices = @transform_4, window_bounds = array<i64: 30, 30>}, {pipeline_mode = #tpu.pipeline_mode<synchronous>, transform_indices = @transform_5, window_bounds = array<i64: 30, 1>}, {pipeline_mode = #tpu.pipeline_mode<synchronous>, transform_indices = @transform_6, window_bounds = array<i64: 7, 30, 30>}, {pipeline_mode = #tpu.pipeline_mode<synchronous>, transform_indices = @transform_7, window_bounds = array<i64: 7, 30, 1>}, {pipeline_mode = #tpu.pipeline_mode<synchronous>, transform_indices = @transform_8, window_bounds = array<i64: 1, 30>}, {pipeline_mode = #tpu.pipeline_mode<synchronous>, transform_indices = @transform_9, window_bounds = array<i64: 1, 1>}, {transform_indices = @transform_10, window_bounds = array<i64: 1, 128>}]} {
    %c0 = arith.constant 0 : index
    %c0_0 = arith.constant 0 : index
    %0 = vector.load %arg1[%c0, %c0_0] : memref<2x128xf32, #tpu.memory_space<vmem>>, vector<2x128xf32>
    %c0_1 = arith.constant 0 : index
    %c0_2 = arith.constant 0 : index
    %1 = vector.load %arg2[%c0_1, %c0_2] : memref<30x2xf32, #tpu.memory_space<vmem>>, vector<30x2xf32>
    %2 = vector.extract_strided_slice %1 {offsets = [0, 0], sizes = [30, 1], strides = [1, 1]} : vector<30x2xf32> to vector<30x1xf32>
    %3 = vector.extract_strided_slice %0 {offsets = [0, 0], sizes = [1, 128], strides = [1, 1]} : vector<2x128xf32> to vector<1x128xf32>
    %4 = vector.broadcast %2 : vector<30x1xf32> to vector<30x128xf32>
    %5 = vector.broadcast %3 : vector<1x128xf32> to vector<30x128xf32>
    %6 = arith.mulf %4, %5 : vector<30x128xf32>
    %7 = vector.extract_strided_slice %1 {offsets = [0, 1], sizes = [30, 1], strides = [1, 1]} : vector<30x2xf32> to vector<30x1xf32>
    %8 = vector.extract_strided_slice %0 {offsets = [1, 0], sizes = [1, 128], strides = [1, 1]} : vector<2x128xf32> to vector<1x128xf32>
    %9 = vector.broadcast %7 : vector<30x1xf32> to vector<30x128xf32>
    %10 = vector.broadcast %8 : vector<1x128xf32> to vector<30x128xf32>
    %11 = arith.mulf %9, %10 : vector<30x128xf32>
    %12 = arith.addf %6, %11 : vector<30x128xf32>
    %c0_3 = arith.constant 0 : index
    %c0_4 = arith.constant 0 : index
    %13 = vector.load %arg3[%c0_3, %c0_4] : memref<30x1xf32, #tpu.memory_space<vmem>>, vector<30x1xf32>
    %14 = vector.broadcast %13 : vector<30x1xf32> to vector<30x128xf32>
    %15 = arith.addf %12, %14 : vector<30x128xf32>
    %c0_5 = arith.constant 0 : index
    %c0_6 = arith.constant 0 : index
    %16 = vector.load %arg4[%c0_5, %c0_6] : memref<30x30xf32, #tpu.memory_space<vmem>>, vector<30x30xf32>
    %17 = math.sin %15 : vector<30x128xf32>
    %cst = arith.constant dense<0.000000e+00> : vector<30x128xf32>
    %18 = tpu.matmul %16, %17, %cst {dimension_numbers = #tpu.dot_dimension_numbers<[1], [0], [0], [1], [0, 0, 1, 1], [], []>} : vector<30x30xf32>, vector<30x128xf32>, vector<30x128xf32> -> vector<30x128xf32>
    %c0_7 = arith.constant 0 : index
    %c0_8 = arith.constant 0 : index
    %19 = vector.load %arg5[%c0_7, %c0_8] : memref<30x30xf32, #tpu.memory_space<vmem>>, vector<30x30xf32>
    %20 = math.cos %15 : vector<30x128xf32>
    %cst_9 = arith.constant dense<0.000000e+00> : vector<30x128xf32>
    %21 = tpu.matmul %19, %20, %cst_9 {dimension_numbers = #tpu.dot_dimension_numbers<[1], [0], [0], [1], [0, 0, 1, 1], [], []>} : vector<30x30xf32>, vector<30x128xf32>, vector<30x128xf32> -> vector<30x128xf32>
    %22 = arith.addf %18, %21 : vector<30x128xf32>
    %c0_10 = arith.constant 0 : index
    %c0_11 = arith.constant 0 : index
    %23 = vector.load %arg6[%c0_10, %c0_11] : memref<30x1xf32, #tpu.memory_space<vmem>>, vector<30x1xf32>
    %24 = vector.broadcast %23 : vector<30x1xf32> to vector<30x128xf32>
    %25 = arith.addf %22, %24 : vector<30x128xf32>
    %cst_12 = arith.constant 5.000000e-01 : f32
    %26 = vector.broadcast %cst_12 : f32 to vector<30x128xf32>
    %27 = arith.mulf %26, %25 : vector<30x128xf32>
    %cst_13 = arith.constant 0.707106769 : f32
    %28 = vector.broadcast %cst_13 : f32 to vector<30x128xf32>
    %29 = arith.mulf %25, %28 : vector<30x128xf32>
    %30 = math.erf %29 : vector<30x128xf32>
    %cst_14 = arith.constant 1.000000e+00 : f32
    %31 = vector.broadcast %cst_14 : f32 to vector<30x128xf32>
    %32 = arith.addf %31, %30 : vector<30x128xf32>
    %33 = arith.mulf %27, %32 : vector<30x128xf32>
    %c0_15 = arith.constant 0 : index
    %c0_16 = arith.constant 0 : index
    %c0_17 = arith.constant 0 : index
    %34 = vector.load %arg7[%c0_15, %c0_16, %c0_17] : memref<7x30x30xf32, #tpu.memory_space<vmem>>, vector<1x30x30xf32>
    %35 = vector.shape_cast %34 : vector<1x30x30xf32> to vector<30x30xf32>
    %cst_18 = arith.constant dense<0.000000e+00> : vector<30x128xf32>
    %36 = tpu.matmul %35, %33, %cst_18 {dimension_numbers = #tpu.dot_dimension_numbers<[1], [0], [0], [1], [0, 0, 1, 1], [], []>} : vector<30x30xf32>, vector<30x128xf32>, vector<30x128xf32> -> vector<30x128xf32>
    %c0_19 = arith.constant 0 : index
    %c0_20 = arith.constant 0 : index
    %c0_21 = arith.constant 0 : index
    %37 = vector.load %arg8[%c0_19, %c0_20, %c0_21] : memref<7x30x1xf32, #tpu.memory_space<vmem>>, vector<1x30x1xf32>
    %38 = vector.shape_cast %37 : vector<1x30x1xf32> to vector<30x1xf32>
    %39 = vector.broadcast %38 : vector<30x1xf32> to vector<30x128xf32>
    %40 = arith.addf %36, %39 : vector<30x128xf32>
    %cst_22 = arith.constant 5.000000e-01 : f32
    %41 = vector.broadcast %cst_22 : f32 to vector<30x128xf32>
    %42 = arith.mulf %41, %40 : vector<30x128xf32>
    %cst_23 = arith.constant 0.707106769 : f32
    %43 = vector.broadcast %cst_23 : f32 to vector<30x128xf32>
    %44 = arith.mulf %40, %43 : vector<30x128xf32>
    %45 = math.erf %44 : vector<30x128xf32>
    %cst_24 = arith.constant 1.000000e+00 : f32
    %46 = vector.broadcast %cst_24 : f32 to vector<30x128xf32>
    %47 = arith.addf %46, %45 : vector<30x128xf32>
    %48 = arith.mulf %42, %47 : vector<30x128xf32>
    %c1 = arith.constant 1 : index
    %c0_25 = arith.constant 0 : index
    %c0_26 = arith.constant 0 : index
    %49 = vector.load %arg7[%c1, %c0_25, %c0_26] : memref<7x30x30xf32, #tpu.memory_space<vmem>>, vector<1x30x30xf32>
    %50 = vector.shape_cast %49 : vector<1x30x30xf32> to vector<30x30xf32>
    %cst_27 = arith.constant dense<0.000000e+00> : vector<30x128xf32>
    %51 = tpu.matmul %50, %48, %cst_27 {dimension_numbers = #tpu.dot_dimension_numbers<[1], [0], [0], [1], [0, 0, 1, 1], [], []>} : vector<30x30xf32>, vector<30x128xf32>, vector<30x128xf32> -> vector<30x128xf32>
    %c1_28 = arith.constant 1 : index
    %c0_29 = arith.constant 0 : index
    %c0_30 = arith.constant 0 : index
    %52 = vector.load %arg8[%c1_28, %c0_29, %c0_30] : memref<7x30x1xf32, #tpu.memory_space<vmem>>, vector<1x30x1xf32>
    %53 = vector.shape_cast %52 : vector<1x30x1xf32> to vector<30x1xf32>
    %54 = vector.broadcast %53 : vector<30x1xf32> to vector<30x128xf32>
    %55 = arith.addf %51, %54 : vector<30x128xf32>
    %cst_31 = arith.constant 5.000000e-01 : f32
    %56 = vector.broadcast %cst_31 : f32 to vector<30x128xf32>
    %57 = arith.mulf %56, %55 : vector<30x128xf32>
    %cst_32 = arith.constant 0.707106769 : f32
    %58 = vector.broadcast %cst_32 : f32 to vector<30x128xf32>
    %59 = arith.mulf %55, %58 : vector<30x128xf32>
    %60 = math.erf %59 : vector<30x128xf32>
    %cst_33 = arith.constant 1.000000e+00 : f32
    %61 = vector.broadcast %cst_33 : f32 to vector<30x128xf32>
    %62 = arith.addf %61, %60 : vector<30x128xf32>
    %63 = arith.mulf %57, %62 : vector<30x128xf32>
    %c2 = arith.constant 2 : index
    %c0_34 = arith.constant 0 : index
    %c0_35 = arith.constant 0 : index
    %64 = vector.load %arg7[%c2, %c0_34, %c0_35] : memref<7x30x30xf32, #tpu.memory_space<vmem>>, vector<1x30x30xf32>
    %65 = vector.shape_cast %64 : vector<1x30x30xf32> to vector<30x30xf32>
    %cst_36 = arith.constant dense<0.000000e+00> : vector<30x128xf32>
    %66 = tpu.matmul %65, %63, %cst_36 {dimension_numbers = #tpu.dot_dimension_numbers<[1], [0], [0], [1], [0, 0, 1, 1], [], []>} : vector<30x30xf32>, vector<30x128xf32>, vector<30x128xf32> -> vector<30x128xf32>
    %c2_37 = arith.constant 2 : index
    %c0_38 = arith.constant 0 : index
    %c0_39 = arith.constant 0 : index
    %67 = vector.load %arg8[%c2_37, %c0_38, %c0_39] : memref<7x30x1xf32, #tpu.memory_space<vmem>>, vector<1x30x1xf32>
    %68 = vector.shape_cast %67 : vector<1x30x1xf32> to vector<30x1xf32>
    %69 = vector.broadcast %68 : vector<30x1xf32> to vector<30x128xf32>
    %70 = arith.addf %66, %69 : vector<30x128xf32>
    %cst_40 = arith.constant 5.000000e-01 : f32
    %71 = vector.broadcast %cst_40 : f32 to vector<30x128xf32>
    %72 = arith.mulf %71, %70 : vector<30x128xf32>
    %cst_41 = arith.constant 0.707106769 : f32
    %73 = vector.broadcast %cst_41 : f32 to vector<30x128xf32>
    %74 = arith.mulf %70, %73 : vector<30x128xf32>
    %75 = math.erf %74 : vector<30x128xf32>
    %cst_42 = arith.constant 1.000000e+00 : f32
    %76 = vector.broadcast %cst_42 : f32 to vector<30x128xf32>
    %77 = arith.addf %76, %75 : vector<30x128xf32>
    %78 = arith.mulf %72, %77 : vector<30x128xf32>
    %c3 = arith.constant 3 : index
    %c0_43 = arith.constant 0 : index
    %c0_44 = arith.constant 0 : index
    %79 = vector.load %arg7[%c3, %c0_43, %c0_44] : memref<7x30x30xf32, #tpu.memory_space<vmem>>, vector<1x30x30xf32>
    %80 = vector.shape_cast %79 : vector<1x30x30xf32> to vector<30x30xf32>
    %cst_45 = arith.constant dense<0.000000e+00> : vector<30x128xf32>
    %81 = tpu.matmul %80, %78, %cst_45 {dimension_numbers = #tpu.dot_dimension_numbers<[1], [0], [0], [1], [0, 0, 1, 1], [], []>} : vector<30x30xf32>, vector<30x128xf32>, vector<30x128xf32> -> vector<30x128xf32>
    %c3_46 = arith.constant 3 : index
    %c0_47 = arith.constant 0 : index
    %c0_48 = arith.constant 0 : index
    %82 = vector.load %arg8[%c3_46, %c0_47, %c0_48] : memref<7x30x1xf32, #tpu.memory_space<vmem>>, vector<1x30x1xf32>
    %83 = vector.shape_cast %82 : vector<1x30x1xf32> to vector<30x1xf32>
    %84 = vector.broadcast %83 : vector<30x1xf32> to vector<30x128xf32>
    %85 = arith.addf %81, %84 : vector<30x128xf32>
    %cst_49 = arith.constant 5.000000e-01 : f32
    %86 = vector.broadcast %cst_49 : f32 to vector<30x128xf32>
    %87 = arith.mulf %86, %85 : vector<30x128xf32>
    %cst_50 = arith.constant 0.707106769 : f32
    %88 = vector.broadcast %cst_50 : f32 to vector<30x128xf32>
    %89 = arith.mulf %85, %88 : vector<30x128xf32>
    %90 = math.erf %89 : vector<30x128xf32>
    %cst_51 = arith.constant 1.000000e+00 : f32
    %91 = vector.broadcast %cst_51 : f32 to vector<30x128xf32>
    %92 = arith.addf %91, %90 : vector<30x128xf32>
    %93 = arith.mulf %87, %92 : vector<30x128xf32>
    %c4 = arith.constant 4 : index
    %c0_52 = arith.constant 0 : index
    %c0_53 = arith.constant 0 : index
    %94 = vector.load %arg7[%c4, %c0_52, %c0_53] : memref<7x30x30xf32, #tpu.memory_space<vmem>>, vector<1x30x30xf32>
    %95 = vector.shape_cast %94 : vector<1x30x30xf32> to vector<30x30xf32>
    %cst_54 = arith.constant dense<0.000000e+00> : vector<30x128xf32>
    %96 = tpu.matmul %95, %93, %cst_54 {dimension_numbers = #tpu.dot_dimension_numbers<[1], [0], [0], [1], [0, 0, 1, 1], [], []>} : vector<30x30xf32>, vector<30x128xf32>, vector<30x128xf32> -> vector<30x128xf32>
    %c4_55 = arith.constant 4 : index
    %c0_56 = arith.constant 0 : index
    %c0_57 = arith.constant 0 : index
    %97 = vector.load %arg8[%c4_55, %c0_56, %c0_57] : memref<7x30x1xf32, #tpu.memory_space<vmem>>, vector<1x30x1xf32>
    %98 = vector.shape_cast %97 : vector<1x30x1xf32> to vector<30x1xf32>
    %99 = vector.broadcast %98 : vector<30x1xf32> to vector<30x128xf32>
    %100 = arith.addf %96, %99 : vector<30x128xf32>
    %cst_58 = arith.constant 5.000000e-01 : f32
    %101 = vector.broadcast %cst_58 : f32 to vector<30x128xf32>
    %102 = arith.mulf %101, %100 : vector<30x128xf32>
    %cst_59 = arith.constant 0.707106769 : f32
    %103 = vector.broadcast %cst_59 : f32 to vector<30x128xf32>
    %104 = arith.mulf %100, %103 : vector<30x128xf32>
    %105 = math.erf %104 : vector<30x128xf32>
    %cst_60 = arith.constant 1.000000e+00 : f32
    %106 = vector.broadcast %cst_60 : f32 to vector<30x128xf32>
    %107 = arith.addf %106, %105 : vector<30x128xf32>
    %108 = arith.mulf %102, %107 : vector<30x128xf32>
    %c5 = arith.constant 5 : index
    %c0_61 = arith.constant 0 : index
    %c0_62 = arith.constant 0 : index
    %109 = vector.load %arg7[%c5, %c0_61, %c0_62] : memref<7x30x30xf32, #tpu.memory_space<vmem>>, vector<1x30x30xf32>
    %110 = vector.shape_cast %109 : vector<1x30x30xf32> to vector<30x30xf32>
    %cst_63 = arith.constant dense<0.000000e+00> : vector<30x128xf32>
    %111 = tpu.matmul %110, %108, %cst_63 {dimension_numbers = #tpu.dot_dimension_numbers<[1], [0], [0], [1], [0, 0, 1, 1], [], []>} : vector<30x30xf32>, vector<30x128xf32>, vector<30x128xf32> -> vector<30x128xf32>
    %c5_64 = arith.constant 5 : index
    %c0_65 = arith.constant 0 : index
    %c0_66 = arith.constant 0 : index
    %112 = vector.load %arg8[%c5_64, %c0_65, %c0_66] : memref<7x30x1xf32, #tpu.memory_space<vmem>>, vector<1x30x1xf32>
    %113 = vector.shape_cast %112 : vector<1x30x1xf32> to vector<30x1xf32>
    %114 = vector.broadcast %113 : vector<30x1xf32> to vector<30x128xf32>
    %115 = arith.addf %111, %114 : vector<30x128xf32>
    %cst_67 = arith.constant 5.000000e-01 : f32
    %116 = vector.broadcast %cst_67 : f32 to vector<30x128xf32>
    %117 = arith.mulf %116, %115 : vector<30x128xf32>
    %cst_68 = arith.constant 0.707106769 : f32
    %118 = vector.broadcast %cst_68 : f32 to vector<30x128xf32>
    %119 = arith.mulf %115, %118 : vector<30x128xf32>
    %120 = math.erf %119 : vector<30x128xf32>
    %cst_69 = arith.constant 1.000000e+00 : f32
    %121 = vector.broadcast %cst_69 : f32 to vector<30x128xf32>
    %122 = arith.addf %121, %120 : vector<30x128xf32>
    %123 = arith.mulf %117, %122 : vector<30x128xf32>
    %c6 = arith.constant 6 : index
    %c0_70 = arith.constant 0 : index
    %c0_71 = arith.constant 0 : index
    %124 = vector.load %arg7[%c6, %c0_70, %c0_71] : memref<7x30x30xf32, #tpu.memory_space<vmem>>, vector<1x30x30xf32>
    %125 = vector.shape_cast %124 : vector<1x30x30xf32> to vector<30x30xf32>
    %cst_72 = arith.constant dense<0.000000e+00> : vector<30x128xf32>
    %126 = tpu.matmul %125, %123, %cst_72 {dimension_numbers = #tpu.dot_dimension_numbers<[1], [0], [0], [1], [0, 0, 1, 1], [], []>} : vector<30x30xf32>, vector<30x128xf32>, vector<30x128xf32> -> vector<30x128xf32>
    %c6_73 = arith.constant 6 : index
    %c0_74 = arith.constant 0 : index
    %c0_75 = arith.constant 0 : index
    %127 = vector.load %arg8[%c6_73, %c0_74, %c0_75] : memref<7x30x1xf32, #tpu.memory_space<vmem>>, vector<1x30x1xf32>
    %128 = vector.shape_cast %127 : vector<1x30x1xf32> to vector<30x1xf32>
    %129 = vector.broadcast %128 : vector<30x1xf32> to vector<30x128xf32>
    %130 = arith.addf %126, %129 : vector<30x128xf32>
    %cst_76 = arith.constant 5.000000e-01 : f32
    %131 = vector.broadcast %cst_76 : f32 to vector<30x128xf32>
    %132 = arith.mulf %131, %130 : vector<30x128xf32>
    %cst_77 = arith.constant 0.707106769 : f32
    %133 = vector.broadcast %cst_77 : f32 to vector<30x128xf32>
    %134 = arith.mulf %130, %133 : vector<30x128xf32>
    %135 = math.erf %134 : vector<30x128xf32>
    %cst_78 = arith.constant 1.000000e+00 : f32
    %136 = vector.broadcast %cst_78 : f32 to vector<30x128xf32>
    %137 = arith.addf %136, %135 : vector<30x128xf32>
    %138 = arith.mulf %132, %137 : vector<30x128xf32>
    %c0_79 = arith.constant 0 : index
    %c0_80 = arith.constant 0 : index
    %139 = vector.load %arg9[%c0_79, %c0_80] : memref<1x30xf32, #tpu.memory_space<vmem>>, vector<1x30xf32>
    %cst_81 = arith.constant dense<0.000000e+00> : vector<1x128xf32>
    %140 = tpu.matmul %139, %138, %cst_81 {dimension_numbers = #tpu.dot_dimension_numbers<[1], [0], [0], [1], [0, 0, 1, 1], [], []>} : vector<1x30xf32>, vector<30x128xf32>, vector<1x128xf32> -> vector<1x128xf32>
    %c0_82 = arith.constant 0 : index
    %c0_83 = arith.constant 0 : index
    %141 = vector.load %arg10[%c0_82, %c0_83] : memref<1x1xf32, #tpu.memory_space<vmem>>, vector<1x1xf32>
    %142 = vector.broadcast %141 : vector<1x1xf32> to vector<1x128xf32>
    %143 = arith.addf %140, %142 : vector<1x128xf32>
    %c0_84 = arith.constant 0 : index
    %c0_85 = arith.constant 0 : index
    %144 = vector.load %arg11[%c0_84, %c0_85] : memref<1x128xf32, #tpu.memory_space<vmem>>, vector<1x128xf32>
    tpu.vector_store %arg11[%c0_84, %c0_85], %143 {strides = array<i32>} : memref<1x128xf32, #tpu.memory_space<vmem>>, vector<1x128xf32>,
    return
  }
  func.func @transform_0(%arg0: i32) -> (i32, i32) {
    %c0_i32 = arith.constant 0 : i32
    %c0_i32_0 = arith.constant 0 : i32
    return %c0_i32, %arg0 : i32, i32
  }
  func.func @transform_1(%arg0: i32) -> (i32, i32) {
    %c0_i32 = arith.constant 0 : i32
    %c0_i32_0 = arith.constant 0 : i32
    %c0_i32_1 = arith.constant 0 : i32
    return %c0_i32, %c0_i32_0 : i32, i32
  }
  func.func @transform_2(%arg0: i32) -> (i32, i32) {
    %c0_i32 = arith.constant 0 : i32
    %c0_i32_0 = arith.constant 0 : i32
    %c0_i32_1 = arith.constant 0 : i32
    return %c0_i32, %c0_i32_0 : i32, i32
  }
  func.func @transform_3(%arg0: i32) -> (i32, i32) {
    %c0_i32 = arith.constant 0 : i32
    %c0_i32_0 = arith.constant 0 : i32
    %c0_i32_1 = arith.constant 0 : i32
    return %c0_i32, %c0_i32_0 : i32, i32
  }
  func.func @transform_4(%arg0: i32) -> (i32, i32) {
    %c0_i32 = arith.constant 0 : i32
    %c0_i32_0 = arith.constant 0 : i32
    %c0_i32_1 = arith.constant 0 : i32
    return %c0_i32, %c0_i32_0 : i32, i32
  }
  func.func @transform_5(%arg0: i32) -> (i32, i32) {
    %c0_i32 = arith.constant 0 : i32
    %c0_i32_0 = arith.constant 0 : i32
    %c0_i32_1 = arith.constant 0 : i32
    return %c0_i32, %c0_i32_0 : i32, i32
  }
  func.func @transform_6(%arg0: i32) -> (i32, i32, i32) {
    %c0_i32 = arith.constant 0 : i32
    %c0_i32_0 = arith.constant 0 : i32
    %c0_i32_1 = arith.constant 0 : i32
    %c0_i32_2 = arith.constant 0 : i32
    return %c0_i32, %c0_i32_0, %c0_i32_1 : i32, i32, i32
  }
  func.func @transform_7(%arg0: i32) -> (i32, i32, i32) {
    %c0_i32 = arith.constant 0 : i32
    %c0_i32_0 = arith.constant 0 : i32
    %c0_i32_1 = arith.constant 0 : i32
    %c0_i32_2 = arith.constant 0 : i32
    return %c0_i32, %c0_i32_0, %c0_i32_1 : i32, i32, i32
  }
  func.func @transform_8(%arg0: i32) -> (i32, i32) {
    %c0_i32 = arith.constant 0 : i32
    %c0_i32_0 = arith.constant 0 : i32
    %c0_i32_1 = arith.constant 0 : i32
    return %c0_i32, %c0_i32_0 : i32, i32
  }
  func.func @transform_9(%arg0: i32) -> (i32, i32) {
    %c0_i32 = arith.constant 0 : i32
    %c0_i32_0 = arith.constant 0 : i32
    %c0_i32_1 = arith.constant 0 : i32
    return %c0_i32, %c0_i32_0 : i32, i32
  }
  func.func @transform_10(%arg0: i32) -> (i32, i32) {
    %c0_i32 = arith.constant 0 : i32
    %c0_i32_0 = arith.constant 0 : i32
    return %c0_i32, %arg0 : i32, i32
  }
}

</mosaic_0001>

<llo_original>
// kernel: network_model_forward.1
$region0: #{network_model_forward.1}
  #allocation0 [shape = 'u32[]', space=smem, size = 0x4, offset = 0x4, fixed_abs, tag = 'smem constant byte address 0x4 - core index']
  #allocation1 [shape = 'u32[72,128]{1,0:T(1,128)}', space=vmem, size = 0x9000, scoped, tag = 'internal scratch']
  #allocation2 [shape = 'f32[1,1]{1,0:T(1,128)S(1)}', space=vmem, size = 0x200, scoped, tag = 'scoped memory for network_model_forward.1']
  %s0 = inlined_call_operand.vmem [shape: f32[2,128], index: 0, kind: input, shape index: {}]
  %s1 = inlined_call_operand.hbm [shape: f32[30,2], index: 1, kind: input, shape index: {}]
  %s2 = inlined_call_operand.hbm [shape: f32[30,1], index: 2, kind: input, shape index: {}]
  %s3 = inlined_call_operand.hbm [shape: f32[30,30], index: 3, kind: input, shape index: {}]
  %s4 = inlined_call_operand.hbm [shape: f32[30,30], index: 4, kind: input, shape index: {}]
  %s5 = inlined_call_operand.hbm [shape: f32[30,1], index: 5, kind: input, shape index: {}]
  %s6 = inlined_call_operand.hbm [shape: f32[7,30,30], index: 6, kind: input, shape index: {}]
  %s7 = inlined_call_operand.hbm [shape: f32[7,30,1], index: 7, kind: input, shape index: {}]
  %s8 = inlined_call_operand.vmem [shape: f32[1,30], index: 8, kind: input, shape index: {}]
  %s9 = inlined_call_operand.<no memory space> [shape: f32[1,1], index: 9, kind: input, shape index: {}]
  %s10 = inlined_call_operand.vmem [shape: f32[1,128], index: 10, kind: output, shape index: {}]
  %s11 = sld [smem:[#allocation0]]
  $region78: #{network_model_forward.1} parent=0
    _
  %s13 = ssub.s32 1, %s11
  %s14 = scalar_select 0, %s13, %s11
  %v15 = vstv %s9
  %16 = vst [vmem:[#allocation2] sm:$0x1] %v15
  $region1: #{network_model_forward.1} parent=0
    #allocation3 [shape = 'u8[16384]{0}', space=vmem, size = 0x4000, scoped, tag = 'input window, operand 1, single buffered']
    #allocation4 [shape = 's32[1]{0}', space=sflag, size = 0x4, scoped, tag = 'scoped memory for network_model_forward.1']
    #allocation5 [shape = 'u8[16384]{0}', space=vmem, size = 0x4000, scoped, tag = 'input window, operand 2, single buffered']
    #allocation6 [shape = 's32[1]{0}', space=sflag, size = 0x4, scoped, tag = 'scoped memory for network_model_forward.1']
    #allocation7 [shape = 'u8[16384]{0}', space=vmem, size = 0x4000, scoped, tag = 'input window, operand 3, single buffered']
    #allocation8 [shape = 'u8[16384]{0}', space=vmem, size = 0x4000, scoped, tag = 'input window, operand 4, single buffered']
    #allocation9 [shape = 's32[1]{0}', space=sflag, size = 0x4, scoped, tag = 'scoped memory for network_model_forward.1']
    #allocation10 [shape = 'u8[16384]{0}', space=vmem, size = 0x4000, scoped, tag = 'input window, operand 5, single buffered']
    #allocation11 [shape = 'u8[114688]{0}', space=vmem, size = 0x1c000, scoped, tag = 'input window, operand 6, single buffered']
    #allocation12 [shape = 's32[1]{0}', space=sflag, size = 0x4, scoped, tag = 'scoped memory for network_model_forward.1']
    #allocation13 [shape = 'u8[114688]{0}', space=vmem, size = 0x1c000, scoped, tag = 'input window, operand 7, single buffered']
    %17 = vsyncpa [#allocation4], 0
    %18 = vsyncpa [#allocation6], 0
    %19 = vsyncpa [#allocation9], 0
    %20 = vsyncpa [#allocation12], 0
    // Predicated region
    $region2: #{network_model_forward.1} parent=1 // pred_check
      _
    $region3: #{network_model_forward.1} parent=1 // pred_check_branch
      %22 = sbr.rel (0) target = $region5
    $region4: #{network_model_forward.1} parent=1 // pred_region
      _
    $region5: #{network_model_forward.1} parent=1 // pred_fallthru
      _
    // Predicated region
    $region6: #{network_model_forward.1} parent=1 // pred_check
      _
    $region7: #{network_model_forward.1} parent=1 // pred_check_branch
      %24 = sbr.rel (0) target = $region9
    $region8: #{network_model_forward.1} parent=1 // pred_region
      %26 = vsyncadd [#allocation4], 0
      %s27 = sshll.u32 %s1, 4
      %s28 = int_to_ptr.hbm [resolvable:$true] %s27
      %s29 = sshll.u32 [#allocation3], 4
      %s30 = int_to_ptr.vmem [resolvable:$true] %s29
      %35 = dma.hbm_to_vmem [thread:$0]  %s28, 512, %s30, [#allocation4], 128, 128, 8
    $region9: #{network_model_forward.1} parent=1 // pred_fallthru
      _
    // Predicated region
    $region10: #{network_model_forward.1} parent=1 // pred_check
      _
    $region11: #{network_model_forward.1} parent=1 // pred_check_branch
      %37 = sbr.rel (0) target = $region13
    $region12: #{network_model_forward.1} parent=1 // pred_region
      %39 = vsyncadd [#allocation6], 0
      %s40 = sshll.u32 %s2, 4
      %s41 = int_to_ptr.hbm [resolvable:$true] %s40
      %s42 = sshll.u32 [#allocation5], 4
      %s43 = int_to_ptr.vmem [resolvable:$true] %s42
      %48 = dma.hbm_to_vmem [thread:$0]  %s41, 512, %s43, [#allocation6], 128, 128, 8
    $region13: #{network_model_forward.1} parent=1 // pred_fallthru
      _
    // Predicated region
    $region14: #{network_model_forward.1} parent=1 // pred_check
      _
    $region15: #{network_model_forward.1} parent=1 // pred_check_branch
      %50 = sbr.rel (0) target = $region17
    $region16: #{network_model_forward.1} parent=1 // pred_region
      %52 = vsyncadd [#allocation6], 0
      %s53 = sshll.u32 %s3, 4
      %s54 = int_to_ptr.hbm [resolvable:$true] %s53
      %s55 = sshll.u32 [#allocation7], 4
      %s56 = int_to_ptr.vmem [resolvable:$true] %s55
      %61 = dma.hbm_to_vmem [thread:$0]  %s54, 512, %s56, [#allocation6], 128, 128, 8
    $region17: #{network_model_forward.1} parent=1 // pred_fallthru
      _
    // Predicated region
    $region18: #{network_model_forward.1} parent=1 // pred_check
      _
    $region19: #{network_model_forward.1} parent=1 // pred_check_branch
      %63 = sbr.rel (0) target = $region21
    $region20: #{network_model_forward.1} parent=1 // pred_region
      %65 = vsyncadd [#allocation9], 0
      %s66 = sshll.u32 %s4, 4
      %s67 = int_to_ptr.hbm [resolvable:$true] %s66
      %s68 = sshll.u32 [#allocation8], 4
      %s69 = int_to_ptr.vmem [resolvable:$true] %s68
      %74 = dma.hbm_to_vmem [thread:$0]  %s67, 512, %s69, [#allocation9], 128, 128, 8
    $region21: #{network_model_forward.1} parent=1 // pred_fallthru
      _
    // Predicated region
    $region22: #{network_model_forward.1} parent=1 // pred_check
      _
    $region23: #{network_model_forward.1} parent=1 // pred_check_branch
      %76 = sbr.rel (0) target = $region25
    $region24: #{network_model_forward.1} parent=1 // pred_region
      %78 = vsyncadd [#allocation9], 0
      %s79 = sshll.u32 %s5, 4
      %s80 = int_to_ptr.hbm [resolvable:$true] %s79
      %s81 = sshll.u32 [#allocation10], 4
      %s82 = int_to_ptr.vmem [resolvable:$true] %s81
      %87 = dma.hbm_to_vmem [thread:$0]  %s80, 512, %s82, [#allocation9], 128, 128, 8
    $region25: #{network_model_forward.1} parent=1 // pred_fallthru
      _
    // Predicated region
    $region26: #{network_model_forward.1} parent=1 // pred_check
      _
    $region27: #{network_model_forward.1} parent=1 // pred_check_branch
      %89 = sbr.rel (0) target = $region29
    $region28: #{network_model_forward.1} parent=1 // pred_region
      %91 = vsyncadd [#allocation12], 0
      %s92 = sshll.u32 %s6, 4
      %s93 = int_to_ptr.hbm [resolvable:$true] %s92
      %s94 = sshll.u32 [#allocation11], 4
      %s95 = int_to_ptr.vmem [resolvable:$true] %s94
      %100 = dma.hbm_to_vmem [thread:$0]  %s93, 3584, %s95, [#allocation12], 128, 128, 8
    $region29: #{network_model_forward.1} parent=1 // pred_fallthru
      _
    // Predicated region
    $region30: #{network_model_forward.1} parent=1 // pred_check
      _
    $region31: #{network_model_forward.1} parent=1 // pred_check_branch
      %102 = sbr.rel (0) target = $region33
    $region32: #{network_model_forward.1} parent=1 // pred_region
      %104 = vsyncadd [#allocation12], 0
      %s105 = sshll.u32 %s7, 4
      %s106 = int_to_ptr.hbm [resolvable:$true] %s105
      %s107 = sshll.u32 [#allocation13], 4
      %s108 = int_to_ptr.vmem [resolvable:$true] %s107
      %113 = dma.hbm_to_vmem [thread:$0]  %s106, 3584, %s108, [#allocation12], 128, 128, 8
    $region33: #{network_model_forward.1} parent=1 // pred_fallthru
      _
    // Predicated region
    $region34: #{network_model_forward.1} parent=1 // pred_check
      _
    $region35: #{network_model_forward.1} parent=1 // pred_check_branch
      %115 = sbr.rel (0) target = $region37
    $region36: #{network_model_forward.1} parent=1 // pred_region
      _
    $region37: #{network_model_forward.1} parent=1 // pred_fallthru
      _
    // Predicated region
    $region38: #{network_model_forward.1} parent=1 // pred_check
      _
    $region39: #{network_model_forward.1} parent=1 // pred_check_branch
      %117 = sbr.rel (0) target = $region41
    $region40: #{network_model_forward.1} parent=1 // pred_region
      _
    $region41: #{network_model_forward.1} parent=1 // pred_fallthru
      _
    // Predicated region
    $region42: #{network_model_forward.1} parent=1 // pred_check
      _
    $region43: #{network_model_forward.1} parent=1 // pred_check_branch
      %119 = sbr.rel (0) target = $region45
    $region44: #{network_model_forward.1} parent=1 // pred_region
      %121 = dma.done [#allocation4], 512
    $region45: #{network_model_forward.1} parent=1 // pred_fallthru
      _
    // Predicated region
    $region46: #{network_model_forward.1} parent=1 // pred_check
      _
    $region47: #{network_model_forward.1} parent=1 // pred_check_branch
      %123 = sbr.rel (0) target = $region49
    $region48: #{network_model_forward.1} parent=1 // pred_region
      %125 = dma.done [#allocation6], 512
    $region49: #{network_model_forward.1} parent=1 // pred_fallthru
      _
    // Predicated region
    $region50: #{network_model_forward.1} parent=1 // pred_check
      _
    $region51: #{network_model_forward.1} parent=1 // pred_check_branch
      %127 = sbr.rel (0) target = $region53
    $region52: #{network_model_forward.1} parent=1 // pred_region
      %129 = dma.done [#allocation6], 512
    $region53: #{network_model_forward.1} parent=1 // pred_fallthru
      _
    // Predicated region
    $region54: #{network_model_forward.1} parent=1 // pred_check
      _
    $region55: #{network_model_forward.1} parent=1 // pred_check_branch
      %131 = sbr.rel (0) target = $region57
    $region56: #{network_model_forward.1} parent=1 // pred_region
      %133 = dma.done [#allocation9], 512
    $region57: #{network_model_forward.1} parent=1 // pred_fallthru
      _
    // Predicated region
    $region58: #{network_model_forward.1} parent=1 // pred_check
      _
    $region59: #{network_model_forward.1} parent=1 // pred_check_branch
      %135 = sbr.rel (0) target = $region61
    $region60: #{network_model_forward.1} parent=1 // pred_region
      %137 = dma.done [#allocation9], 512
    $region61: #{network_model_forward.1} parent=1 // pred_fallthru
      _
    // Predicated region
    $region62: #{network_model_forward.1} parent=1 // pred_check
      _
    $region63: #{network_model_forward.1} parent=1 // pred_check_branch
      %139 = sbr.rel (0) target = $region65
    $region64: #{network_model_forward.1} parent=1 // pred_region
      %141 = dma.done [#allocation12], 3584
    $region65: #{network_model_forward.1} parent=1 // pred_fallthru
      _
    // Predicated region
    $region66: #{network_model_forward.1} parent=1 // pred_check
      _
    $region67: #{network_model_forward.1} parent=1 // pred_check_branch
      %143 = sbr.rel (0) target = $region69
    $region68: #{network_model_forward.1} parent=1 // pred_region
      %145 = dma.done [#allocation12], 3584
    $region69: #{network_model_forward.1} parent=1 // pred_fallthru
      _
    %v146 = vld [vmem:[%s0] sm:$0x3]
    %v147 = vld [vmem:[#allocation3] sm:$0xff]
    %v148 = vld [vmem:[#allocation3 + $0x8] sm:$0xff]
    %v149 = vld [vmem:[#allocation3 + $0x10] sm:$0xff]
    %v150 = vld [vmem:[#allocation3 + $0x18] sm:$0x3f]
    %152 = vset.pattern.permute.xlu0 0
    %153 = vperm.xlu0 %152, %v147
    %v154 = vpop.permute.xlu0 %153
    %157 = vset.pattern.permute.xlu0 0
    %158 = vperm.xlu0 %157, %v148
    %v159 = vpop.permute.xlu0 %158
    %162 = vset.pattern.permute.xlu0 0
    %163 = vperm.xlu0 %162, %v149
    %v164 = vpop.permute.xlu0 %163
    %167 = vset.pattern.permute.xlu0 0
    %168 = vperm.xlu0 %167, %v150
    %v169 = vpop.permute.xlu0 %168
    %v171 = vperm.slane %v146, 0
    %v172 = vmul.f32 %v154, %v171
    %v173 = vmul.f32 %v159, %v171
    %v174 = vmul.f32 %v164, %v171
    %v175 = vmul.f32 %v169, %v171
    %176 = vset.pattern.permute.xlu0 1
    %177 = vperm.xlu0 %176, %v147
    %v178 = vpop.permute.xlu0 %177
    %180 = vset.pattern.permute.xlu0 1
    %181 = vperm.xlu0 %180, %v148
    %v182 = vpop.permute.xlu0 %181
    %184 = vset.pattern.permute.xlu0 1
    %185 = vperm.xlu0 %184, %v149
    %v186 = vpop.permute.xlu0 %185
    %188 = vset.pattern.permute.xlu0 1
    %189 = vperm.xlu0 %188, %v150
    %v190 = vpop.permute.xlu0 %189
    %v192 = vperm.slane %v146, 1
    %v193 = vmul.f32 %v178, %v192
    %v194 = vmul.f32 %v182, %v192
    %v195 = vmul.f32 %v186, %v192
    %v196 = vmul.f32 %v190, %v192
    %v197 = vadd.f32 %v172, %v193
    %v198 = vadd.f32 %v173, %v194
    %v199 = vadd.f32 %v174, %v195
    %v200 = vadd.f32 %v175, %v196
    %v201 = vld [vmem:[#allocation5] sm:$0xff]
    %v202 = vld [vmem:[#allocation5 + $0x8] sm:$0xff]
    %v203 = vld [vmem:[#allocation5 + $0x10] sm:$0xff]
    %v204 = vld [vmem:[#allocation5 + $0x18] sm:$0x3f]
    %206 = vset.pattern.permute.xlu0 0
    %207 = vperm.xlu0 %206, %v201
    %v208 = vpop.permute.xlu0 %207
    %211 = vset.pattern.permute.xlu0 0
    %212 = vperm.xlu0 %211, %v202
    %v213 = vpop.permute.xlu0 %212
    %216 = vset.pattern.permute.xlu0 0
    %217 = vperm.xlu0 %216, %v203
    %v218 = vpop.permute.xlu0 %217
    %221 = vset.pattern.permute.xlu0 0
    %222 = vperm.xlu0 %221, %v204
    %v223 = vpop.permute.xlu0 %222
    %v225 = vadd.f32 %v197, %v208
    %v226 = vadd.f32 %v198, %v213
    %v227 = vadd.f32 %v199, %v218
    %v228 = vadd.f32 %v200, %v223
    %v229 = vld [vmem:[#allocation7] sm:$0xff]
    %v230 = vld [vmem:[#allocation7 + $0x8] sm:$0xff]
    %v231 = vld [vmem:[#allocation7 + $0x10] sm:$0xff]
    %v232 = vld [vmem:[#allocation7 + $0x18] sm:$0x3f]
    %v233 = vand.u32 2147483647, %v225
    %vm234 = vcmp.le.f32.partialorder %v233, 0.7853982
    %vm235 = vcmp.lt.s32.totalorder %v225, 0
    %v236 = vand.u32 %v225, 2139095040
    %v237 = vshrl.u32 %v236, 23
    %v238 = vsub.s32 %v237, 127
    %v239 = vand.u32 2147483647, %v225
    %v240 = vand.u32 %v239, 8388607
    %v241 = vor.u32 %v240, 8388608
    %v242 = vsub.s32 0, %v241
    %v243 = vadd.s32 %v238, 1
    %vm244 = vcmp.gt.s32.totalorder %v243, 0
    %v245 = vsel %vm244, %v243, 0
    %v246 = vshrl.u32 %v245, 5
    %v247 = vand.u32 %v245, 31
    %v248 = vsub.s32 32, %v247
    %v249 = vshrl.u32 683565275, %v248
    %v250 = vshll.u32 683565275, %v247
    %v251 = vshrl.u32 2475754826, %v248
    %v252 = vor.u32 %v250, %v251
    %v253 = vshll.u32 2475754826, %v247
    %v254 = vshrl.u32 2131351028, %v248
    %v255 = vor.u32 %v253, %v254
    %v256 = vshll.u32 2131351028, %v247
    %v257 = vshrl.u32 2102212464, %v248
    %v258 = vor.u32 %v256, %v257
    %v259 = vshll.u32 2102212464, %v247
    %v260 = vshrl.u32 920167782, %v248
    %v261 = vor.u32 %v259, %v260
    %v262 = vshll.u32 920167782, %v247
    %v263 = vshrl.u32 1326507024, %v248
    %v264 = vor.u32 %v262, %v263
    %vm265 = vcmp.lt.s32.totalorder %v246, 1
    %vm266 = vcmp.lt.s32.totalorder %v246, 2
    %vm267 = vcmp.lt.s32.totalorder %v246, 3
    %vm268 = vcmp.lt.s32.totalorder %v246, 4
    %v269 = vsel %vm265, %v249, %v252
    %v270 = vsel %vm268, %v258, 2102212464
    %v271 = vsel %vm267, %v255, %v270
    %v272 = vsel %vm266, %v269, %v271
    %v273 = vsel %vm265, %v252, %v255
    %v274 = vsel %vm268, %v261, 920167782
    %v275 = vsel %vm267, %v258, %v274
    %v276 = vsel %vm266, %v273, %v275
    %v277 = vsel %vm265, %v255, %v258
    %v278 = vsel %vm268, %v264, 1326507024
    %v279 = vsel %vm267, %v261, %v278
    %v280 = vsel %vm266, %v277, %v279
    %v281 = vshll.u32 %v241, 8
    %v282 = vand.u32 %v281, 65535
    %v283 = vshrl.u32 %v281, 16
    %v284 = vand.u32 %v280, 65535
    %v285 = vshrl.u32 %v280, 16
    %v286 = vmul.u32 %v282, %v284
    %v287 = vmul.u32 %v282, %v285
    %v288 = vmul.u32 %v283, %v284
    %v289 = vmul.u32 %v283, %v285
    %v290 = vshll.u32 %v287, 16
    %v291 = vshrl.u32 %v287, 16
    %v292 = vshll.u32 %v288, 16
    %v293 = vshrl.u32 %v288, 16
    %vm294 = vc.u32 %v286, %v290
    %v295 = vsel %vm294, 1, 0
    %v296 = vadd.s32 %v286, %v290
    %v297 = vadd.s32 %v289, %v295
    %vm298 = vc.u32 %v296, %v292
    %v299 = vsel %vm298, 1, 0
    %v300 = vadd.s32 %v296, %v292
    %v301 = vadd.s32 %v297, %v299
    %v302 = vadd.s32 %v301, %v291
    %v303 = vadd.s32 %v302, %v293
    %v304 = vand.u32 %v281, 65535
    %v305 = vshrl.u32 %v281, 16
    %v306 = vand.u32 %v276, 65535
    %v307 = vshrl.u32 %v276, 16
    %v308 = vmul.u32 %v304, %v306
    %v309 = vmul.u32 %v304, %v307
    %v310 = vmul.u32 %v305, %v306
    %v311 = vmul.u32 %v305, %v307
    %v312 = vshll.u32 %v309, 16
    %v313 = vshrl.u32 %v309, 16
    %v314 = vshll.u32 %v310, 16
    %v315 = vshrl.u32 %v310, 16
    %vm316 = vc.u32 %v308, %v312
    %v317 = vsel %vm316, 1, 0
    %v318 = vadd.s32 %v308, %v312
    %v319 = vadd.s32 %v311, %v317
    %vm320 = vc.u32 %v318, %v314
    %v321 = vsel %vm320, 1, 0
    %v322 = vadd.s32 %v318, %v314
    %v323 = vadd.s32 %v319, %v321
    %v324 = vadd.s32 %v323, %v313
    %v325 = vadd.s32 %v324, %v315
    %v326 = vmul.u32 %v281, %v272
    %v327 = vadd.s32 %v303, %v322
    %vm328 = vc.u32 %v303, %v322
    %v329 = vadd.s32 %v325, 1
    %v330 = vsel %vm328, %v329, %v325
    %v331 = vadd.s32 %v326, %v330
    %v332 = vadd.s32 %v331, 536870912
    %v333 = vshrl.u32 %v332, 30
    %v334 = vshll.u32 %v333, 30
    %v335 = vsub.s32 %v331, %v334
    %vm336 = vcmp.lt.s32.totalorder %v335, 0
    %v337 = vsub.s32 0, %v335
    %v338 = vsel %vm336, %v337, %v335
    %v339 = vclz %v338
    %v340 = vsub.s32 %v339, 2
    %vm341 = vcmp.gt.s32.totalorder 0, %v340
    %v342 = vsel %vm341, 0, %v340
    %v343 = vsub.s32 32, %v342
    %v344 = vshll.u32 %v335, %v342
    %v345 = vshrl.u32 %v327, %v343
    %v346 = vor.u32 %v344, %v345
    %v347 = vsub.s32 4294967266, %v342
    %v348 = vadd.s32 %v347, 127
    %v349 = vshll.u32 %v348, 23
    %v350 = vor.u32 4788187, %v349
    %v351 = vand.u32 2147483647, %v350
    %v353 = vcvt.s32.f32 %v346
    %v354 = vmul.f32 %v353, %v351
    %v355 = vxor.u32 %v354, 2147483648
    %v356 = vsel %vm235, %v355, %v354
    %v357 = vsub.s32 4, %v333
    %v358 = vsel %vm235, %v357, %v333
    %v359 = vsel %vm234, %v225, %v356
    %v360 = vsel %vm234, 0, %v358
    %v361 = vmul.f32 %v359, %v359
    %v362 = vmul.f32 %v361, -0.001358992
    %v363 = vadd.f32 %v362, 0.041655596
    %v364 = vmul.f32 %v361, %v363
    %v365 = vadd.f32 %v364, -0.4999988
    %v366 = vmul.f32 %v361, %v365
    %v367 = vadd.f32 1.0, %v366
    %v368 = vmul.f32 %v359, %v359
    %v369 = vmul.f32 %v368, -0.00019511016
    %v370 = vadd.f32 %v369, 0.008332121
    %v371 = vmul.f32 %v368, %v370
    %v372 = vadd.f32 %v371, -0.16666654
    %v373 = vmul.f32 %v368, %v372
    %v374 = vadd.f32 %v373, 1.0
    %v375 = vmul.f32 %v374, %v359
    %vm376 = vweird.f32 %v225
    %v377 = vadd.s32 %v360, 3
    %v378 = vand.u32 %v377, 3
    %vm379 = vcmp.lt.s32.totalorder %v378, 2
    %vm380 = vcmp.eq.s32.totalorder %v378, 0
    %v381 = vxor.u32 %v375, 2147483648
    %v382 = vsel %vm380, %v367, %v381
    %vm383 = vcmp.eq.s32.totalorder %v378, 2
    %v384 = vxor.u32 %v367, 2147483648
    %v385 = vsel %vm383, %v384, %v375
    %v386 = vsel %vm379, %v382, %v385
    %v387 = vsel %vm376, nan, %v386
    %v388 = vand.u32 2147483647, %v226
    %vm389 = vcmp.le.f32.partialorder %v388, 0.7853982
    %vm390 = vcmp.lt.s32.totalorder %v226, 0
    %v391 = vand.u32 %v226, 2139095040
    %v392 = vshrl.u32 %v391, 23
    %v393 = vsub.s32 %v392, 127
    %v394 = vand.u32 2147483647, %v226
    %v395 = vand.u32 %v394, 8388607
    %v396 = vor.u32 %v395, 8388608
    %v397 = vsub.s32 0, %v396
    %v398 = vadd.s32 %v393, 1
    %vm399 = vcmp.gt.s32.totalorder %v398, 0
    %v400 = vsel %vm399, %v398, 0
    %v401 = vshrl.u32 %v400, 5
    %v402 = vand.u32 %v400, 31
    %v403 = vsub.s32 32, %v402
    %v404 = vshrl.u32 683565275, %v403
    %v405 = vshll.u32 683565275, %v402
    %v406 = vshrl.u32 2475754826, %v403
    %v407 = vor.u32 %v405, %v406
    %v408 = vshll.u32 2475754826, %v402
    %v409 = vshrl.u32 2131351028, %v403
    %v410 = vor.u32 %v408, %v409
    %v411 = vshll.u32 2131351028, %v402
    %v412 = vshrl.u32 2102212464, %v403
    %v413 = vor.u32 %v411, %v412
    %v414 = vshll.u32 2102212464, %v402
    %v415 = vshrl.u32 920167782, %v403
    %v416 = vor.u32 %v414, %v415
    %v417 = vshll.u32 920167782, %v402
    %v418 = vshrl.u32 1326507024, %v403
    %v419 = vor.u32 %v417, %v418
    %vm420 = vcmp.lt.s32.totalorder %v401, 1
    %vm421 = vcmp.lt.s32.totalorder %v401, 2
    %vm422 = vcmp.lt.s32.totalorder %v401, 3
    %vm423 = vcmp.lt.s32.totalorder %v401, 4
    %v424 = vsel %vm420, %v404, %v407
    %v425 = vsel %vm423, %v413, 2102212464
    %v426 = vsel %vm422, %v410, %v425
    %v427 = vsel %vm421, %v424, %v426
    %v428 = vsel %vm420, %v407, %v410
    %v429 = vsel %vm423, %v416, 920167782
    %v430 = vsel %vm422, %v413, %v429
    %v431 = vsel %vm421, %v428, %v430
    %v432 = vsel %vm420, %v410, %v413
    %v433 = vsel %vm423, %v419, 1326507024
    %v434 = vsel %vm422, %v416, %v433
    %v435 = vsel %vm421, %v432, %v434
    %v436 = vshll.u32 %v396, 8
    %v437 = vand.u32 %v436, 65535
    %v438 = vshrl.u32 %v436, 16
    %v439 = vand.u32 %v435, 65535
    %v440 = vshrl.u32 %v435, 16
    %v441 = vmul.u32 %v437, %v439
    %v442 = vmul.u32 %v437, %v440
    %v443 = vmul.u32 %v438, %v439
    %v444 = vmul.u32 %v438, %v440
    %v445 = vshll.u32 %v442, 16
    %v446 = vshrl.u32 %v442, 16
    %v447 = vshll.u32 %v443, 16
    %v448 = vshrl.u32 %v443, 16
    %vm449 = vc.u32 %v441, %v445
    %v450 = vsel %vm449, 1, 0
    %v451 = vadd.s32 %v441, %v445
    %v452 = vadd.s32 %v444, %v450
    %vm453 = vc.u32 %v451, %v447
    %v454 = vsel %vm453, 1, 0
    %v455 = vadd.s32 %v451, %v447
    %v456 = vadd.s32 %v452, %v454
    %v457 = vadd.s32 %v456, %v446
    %v458 = vadd.s32 %v457, %v448
    %v459 = vand.u32 %v436, 65535
    %v460 = vshrl.u32 %v436, 16
    %v461 = vand.u32 %v431, 65535
    %v462 = vshrl.u32 %v431, 16
    %v463 = vmul.u32 %v459, %v461
    %v464 = vmul.u32 %v459, %v462
    %v465 = vmul.u32 %v460, %v461
    %v466 = vmul.u32 %v460, %v462
    %v467 = vshll.u32 %v464, 16
    %v468 = vshrl.u32 %v464, 16
    %v469 = vshll.u32 %v465, 16
    %v470 = vshrl.u32 %v465, 16
    %vm471 = vc.u32 %v463, %v467
    %v472 = vsel %vm471, 1, 0
    %v473 = vadd.s32 %v463, %v467
    %v474 = vadd.s32 %v466, %v472
    %vm475 = vc.u32 %v473, %v469
    %v476 = vsel %vm475, 1, 0
    %v477 = vadd.s32 %v473, %v469
    %v478 = vadd.s32 %v474, %v476
    %v479 = vadd.s32 %v478, %v468
    %v480 = vadd.s32 %v479, %v470
    %v481 = vmul.u32 %v436, %v427
    %v482 = vadd.s32 %v458, %v477
    %vm483 = vc.u32 %v458, %v477
    %v484 = vadd.s32 %v480, 1
    %v485 = vsel %vm483, %v484, %v480
    %v486 = vadd.s32 %v481, %v485
    %v487 = vadd.s32 %v486, 536870912
    %v488 = vshrl.u32 %v487, 30
    %v489 = vshll.u32 %v488, 30
    %v490 = vsub.s32 %v486, %v489
    %vm491 = vcmp.lt.s32.totalorder %v490, 0
    %v492 = vsub.s32 0, %v490
    %v493 = vsel %vm491, %v492, %v490
    %v494 = vclz %v493
    %v495 = vsub.s32 %v494, 2
    %vm496 = vcmp.gt.s32.totalorder 0, %v495
    %v497 = vsel %vm496, 0, %v495
    %v498 = vsub.s32 32, %v497
    %v499 = vshll.u32 %v490, %v497
    %v500 = vshrl.u32 %v482, %v498
    %v501 = vor.u32 %v499, %v500
    %v502 = vsub.s32 4294967266, %v497
    %v503 = vadd.s32 %v502, 127
    %v504 = vshll.u32 %v503, 23
    %v505 = vor.u32 4788187, %v504
    %v506 = vand.u32 2147483647, %v505
    %v508 = vcvt.s32.f32 %v501
    %v509 = vmul.f32 %v508, %v506
    %v510 = vxor.u32 %v509, 2147483648
    %v511 = vsel %vm390, %v510, %v509
    %v512 = vsub.s32 4, %v488
    %v513 = vsel %vm390, %v512, %v488
    %v514 = vsel %vm389, %v226, %v511
    %v515 = vsel %vm389, 0, %v513
    %v516 = vmul.f32 %v514, %v514
    %v517 = vmul.f32 %v516, -0.001358992
    %v518 = vadd.f32 %v517, 0.041655596
    %v519 = vmul.f32 %v516, %v518
    %v520 = vadd.f32 %v519, -0.4999988
    %v521 = vmul.f32 %v516, %v520
    %v522 = vadd.f32 1.0, %v521
    %v523 = vmul.f32 %v514, %v514
    %v524 = vmul.f32 %v523, -0.00019511016
    %v525 = vadd.f32 %v524, 0.008332121
    %v526 = vmul.f32 %v523, %v525
    %v527 = vadd.f32 %v526, -0.16666654
    %v528 = vmul.f32 %v523, %v527
    %v529 = vadd.f32 %v528, 1.0
    %v530 = vmul.f32 %v529, %v514
    %vm531 = vweird.f32 %v226
    %v532 = vadd.s32 %v515, 3
    %v533 = vand.u32 %v532, 3
    %vm534 = vcmp.lt.s32.totalorder %v533, 2
    %vm535 = vcmp.eq.s32.totalorder %v533, 0
    %v536 = vxor.u32 %v530, 2147483648
    %v537 = vsel %vm535, %v522, %v536
    %vm538 = vcmp.eq.s32.totalorder %v533, 2
    %v539 = vxor.u32 %v522, 2147483648
    %v540 = vsel %vm538, %v539, %v530
    %v541 = vsel %vm534, %v537, %v540
    %v542 = vsel %vm531, nan, %v541
    %v543 = vand.u32 2147483647, %v227
    %vm544 = vcmp.le.f32.partialorder %v543, 0.7853982
    %vm545 = vcmp.lt.s32.totalorder %v227, 0
    %v546 = vand.u32 %v227, 2139095040
    %v547 = vshrl.u32 %v546, 23
    %v548 = vsub.s32 %v547, 127
    %v549 = vand.u32 2147483647, %v227
    %v550 = vand.u32 %v549, 8388607
    %v551 = vor.u32 %v550, 8388608
    %v552 = vsub.s32 0, %v551
    %v553 = vadd.s32 %v548, 1
    %vm554 = vcmp.gt.s32.totalorder %v553, 0
    %v555 = vsel %vm554, %v553, 0
    %v556 = vshrl.u32 %v555, 5
    %v557 = vand.u32 %v555, 31
    %v558 = vsub.s32 32, %v557
    %v559 = vshrl.u32 683565275, %v558
    %v560 = vshll.u32 683565275, %v557
    %v561 = vshrl.u32 2475754826, %v558
    %v562 = vor.u32 %v560, %v561
    %v563 = vshll.u32 2475754826, %v557
    %v564 = vshrl.u32 2131351028, %v558
    %v565 = vor.u32 %v563, %v564
    %v566 = vshll.u32 2131351028, %v557
    %v567 = vshrl.u32 2102212464, %v558
    %v568 = vor.u32 %v566, %v567
    %v569 = vshll.u32 2102212464, %v557
    %v570 = vshrl.u32 920167782, %v558
    %v571 = vor.u32 %v569, %v570
    %v572 = vshll.u32 920167782, %v557
    %v573 = vshrl.u32 1326507024, %v558
    %v574 = vor.u32 %v572, %v573
    %vm575 = vcmp.lt.s32.totalorder %v556, 1
    %vm576 = vcmp.lt.s32.totalorder %v556, 2
    %vm577 = vcmp.lt.s32.totalorder %v556, 3
    %vm578 = vcmp.lt.s32.totalorder %v556, 4
    %v579 = vsel %vm575, %v559, %v562
    %v580 = vsel %vm578, %v568, 2102212464
    %v581 = vsel %vm577, %v565, %v580
    %v582 = vsel %vm576, %v579, %v581
    %v583 = vsel %vm575, %v562, %v565
    %v584 = vsel %vm578, %v571, 920167782
    %v585 = vsel %vm577, %v568, %v584
    %v586 = vsel %vm576, %v583, %v585
    %v587 = vsel %vm575, %v565, %v568
    %v588 = vsel %vm578, %v574, 1326507024
    %v589 = vsel %vm577, %v571, %v588
    %v590 = vsel %vm576, %v587, %v589
    %v591 = vshll.u32 %v551, 8
    %v592 = vand.u32 %v591, 65535
    %v593 = vshrl.u32 %v591, 16
    %v594 = vand.u32 %v590, 65535
    %v595 = vshrl.u32 %v590, 16
    %v596 = vmul.u32 %v592, %v594
    %v597 = vmul.u32 %v592, %v595
    %v598 = vmul.u32 %v593, %v594
    %v599 = vmul.u32 %v593, %v595
    %v600 = vshll.u32 %v597, 16
    %v601 = vshrl.u32 %v597, 16
    %v602 = vshll.u32 %v598, 16
    %v603 = vshrl.u32 %v598, 16
    %vm604 = vc.u32 %v596, %v600
    %v605 = vsel %vm604, 1, 0
    %v606 = vadd.s32 %v596, %v600
    %v607 = vadd.s32 %v599, %v605
    %vm608 = vc.u32 %v606, %v602
    %v609 = vsel %vm608, 1, 0
    %v610 = vadd.s32 %v606, %v602
    %v611 = vadd.s32 %v607, %v609
    %v612 = vadd.s32 %v611, %v601
    %v613 = vadd.s32 %v612, %v603
    %v614 = vand.u32 %v591, 65535
    %v615 = vshrl.u32 %v591, 16
    %v616 = vand.u32 %v586, 65535
    %v617 = vshrl.u32 %v586, 16
    %v618 = vmul.u32 %v614, %v616
    %v619 = vmul.u32 %v614, %v617
    %v620 = vmul.u32 %v615, %v616
    %v621 = vmul.u32 %v615, %v617
    %v622 = vshll.u32 %v619, 16
    %v623 = vshrl.u32 %v619, 16
    %v624 = vshll.u32 %v620, 16
    %v625 = vshrl.u32 %v620, 16
    %vm626 = vc.u32 %v618, %v622
    %v627 = vsel %vm626, 1, 0
    %v628 = vadd.s32 %v618, %v622
    %v629 = vadd.s32 %v621, %v627
    %vm630 = vc.u32 %v628, %v624
    %v631 = vsel %vm630, 1, 0
    %v632 = vadd.s32 %v628, %v624
    %v633 = vadd.s32 %v629, %v631
    %v634 = vadd.s32 %v633, %v623
    %v635 = vadd.s32 %v634, %v625
    %v636 = vmul.u32 %v591, %v582
    %v637 = vadd.s32 %v613, %v632
    %vm638 = vc.u32 %v613, %v632
    %v639 = vadd.s32 %v635, 1
    %v640 = vsel %vm638, %v639, %v635
    %v641 = vadd.s32 %v636, %v640
    %v642 = vadd.s32 %v641, 536870912
    %v643 = vshrl.u32 %v642, 30
    %v644 = vshll.u32 %v643, 30
    %v645 = vsub.s32 %v641, %v644
    %vm646 = vcmp.lt.s32.totalorder %v645, 0
    %v647 = vsub.s32 0, %v645
    %v648 = vsel %vm646, %v647, %v645
    %v649 = vclz %v648
    %v650 = vsub.s32 %v649, 2
    %vm651 = vcmp.gt.s32.totalorder 0, %v650
    %v652 = vsel %vm651, 0, %v650
    %v653 = vsub.s32 32, %v652
    %v654 = vshll.u32 %v645, %v652
    %v655 = vshrl.u32 %v637, %v653
    %v656 = vor.u32 %v654, %v655
    %v657 = vsub.s32 4294967266, %v652
    %v658 = vadd.s32 %v657, 127
    %v659 = vshll.u32 %v658, 23
    %v660 = vor.u32 4788187, %v659
    %v661 = vand.u32 2147483647, %v660
    %v663 = vcvt.s32.f32 %v656
    %v664 = vmul.f32 %v663, %v661
    %v665 = vxor.u32 %v664, 2147483648
    %v666 = vsel %vm545, %v665, %v664
    %v667 = vsub.s32 4, %v643
    %v668 = vsel %vm545, %v667, %v643
    %v669 = vsel %vm544, %v227, %v666
    %v670 = vsel %vm544, 0, %v668
    %v671 = vmul.f32 %v669, %v669
    %v672 = vmul.f32 %v671, -0.001358992
    %v673 = vadd.f32 %v672, 0.041655596
    %v674 = vmul.f32 %v671, %v673
    %v675 = vadd.f32 %v674, -0.4999988
    %v676 = vmul.f32 %v671, %v675
    %v677 = vadd.f32 1.0, %v676
    %v678 = vmul.f32 %v669, %v669
    %v679 = vmul.f32 %v678, -0.00019511016
    %v680 = vadd.f32 %v679, 0.008332121
    %v681 = vmul.f32 %v678, %v680
    %v682 = vadd.f32 %v681, -0.16666654
    %v683 = vmul.f32 %v678, %v682
    %v684 = vadd.f32 %v683, 1.0
    %v685 = vmul.f32 %v684, %v669
    %vm686 = vweird.f32 %v227
    %v687 = vadd.s32 %v670, 3
    %v688 = vand.u32 %v687, 3
    %vm689 = vcmp.lt.s32.totalorder %v688, 2
    %vm690 = vcmp.eq.s32.totalorder %v688, 0
    %v691 = vxor.u32 %v685, 2147483648
    %v692 = vsel %vm690, %v677, %v691
    %vm693 = vcmp.eq.s32.totalorder %v688, 2
    %v694 = vxor.u32 %v677, 2147483648
    %v695 = vsel %vm693, %v694, %v685
    %v696 = vsel %vm689, %v692, %v695
    %v697 = vsel %vm686, nan, %v696
    %v698 = vand.u32 2147483647, %v228
    %vm699 = vcmp.le.f32.partialorder %v698, 0.7853982
    %vm700 = vcmp.lt.s32.totalorder %v228, 0
    %v701 = vand.u32 %v228, 2139095040
    %v702 = vshrl.u32 %v701, 23
    %v703 = vsub.s32 %v702, 127
    %v704 = vand.u32 2147483647, %v228
    %v705 = vand.u32 %v704, 8388607
    %v706 = vor.u32 %v705, 8388608
    %v707 = vsub.s32 0, %v706
    %v708 = vadd.s32 %v703, 1
    %vm709 = vcmp.gt.s32.totalorder %v708, 0
    %v710 = vsel %vm709, %v708, 0
    %v711 = vshrl.u32 %v710, 5
    %v712 = vand.u32 %v710, 31
    %v713 = vsub.s32 32, %v712
    %v714 = vshrl.u32 683565275, %v713
    %v715 = vshll.u32 683565275, %v712
    %v716 = vshrl.u32 2475754826, %v713
    %v717 = vor.u32 %v715, %v716
    %v718 = vshll.u32 2475754826, %v712
    %v719 = vshrl.u32 2131351028, %v713
    %v720 = vor.u32 %v718, %v719
    %v721 = vshll.u32 2131351028, %v712
    %v722 = vshrl.u32 2102212464, %v713
    %v723 = vor.u32 %v721, %v722
    %v724 = vshll.u32 2102212464, %v712
    %v725 = vshrl.u32 920167782, %v713
    %v726 = vor.u32 %v724, %v725
    %v727 = vshll.u32 920167782, %v712
    %v728 = vshrl.u32 1326507024, %v713
    %v729 = vor.u32 %v727, %v728
    %vm730 = vcmp.lt.s32.totalorder %v711, 1
    %vm731 = vcmp.lt.s32.totalorder %v711, 2
    %vm732 = vcmp.lt.s32.totalorder %v711, 3
    %vm733 = vcmp.lt.s32.totalorder %v711, 4
    %v734 = vsel %vm730, %v714, %v717
    %v735 = vsel %vm733, %v723, 2102212464
    %v736 = vsel %vm732, %v720, %v735
    %v737 = vsel %vm731, %v734, %v736
    %v738 = vsel %vm730, %v717, %v720
    %v739 = vsel %vm733, %v726, 920167782
    %v740 = vsel %vm732, %v723, %v739
    %v741 = vsel %vm731, %v738, %v740
    %v742 = vsel %vm730, %v720, %v723
    %v743 = vsel %vm733, %v729, 1326507024
    %v744 = vsel %vm732, %v726, %v743
    %v745 = vsel %vm731, %v742, %v744
    %v746 = vshll.u32 %v706, 8
    %v747 = vand.u32 %v746, 65535
    %v748 = vshrl.u32 %v746, 16
    %v749 = vand.u32 %v745, 65535
    %v750 = vshrl.u32 %v745, 16
    %v751 = vmul.u32 %v747, %v749
    %v752 = vmul.u32 %v747, %v750
    %v753 = vmul.u32 %v748, %v749
    %v754 = vmul.u32 %v748, %v750
    %v755 = vshll.u32 %v752, 16
    %v756 = vshrl.u32 %v752, 16
    %v757 = vshll.u32 %v753, 16
    %v758 = vshrl.u32 %v753, 16
    %vm759 = vc.u32 %v751, %v755
    %v760 = vsel %vm759, 1, 0
    %v761 = vadd.s32 %v751, %v755
    %v762 = vadd.s32 %v754, %v760
    %vm763 = vc.u32 %v761, %v757
    %v764 = vsel %vm763, 1, 0
    %v765 = vadd.s32 %v761, %v757
    %v766 = vadd.s32 %v762, %v764
    %v767 = vadd.s32 %v766, %v756
    %v768 = vadd.s32 %v767, %v758
    %v769 = vand.u32 %v746, 65535
    %v770 = vshrl.u32 %v746, 16
    %v771 = vand.u32 %v741, 65535
    %v772 = vshrl.u32 %v741, 16
    %v773 = vmul.u32 %v769, %v771
    %v774 = vmul.u32 %v769, %v772
    %v775 = vmul.u32 %v770, %v771
    %v776 = vmul.u32 %v770, %v772
    %v777 = vshll.u32 %v774, 16
    %v778 = vshrl.u32 %v774, 16
    %v779 = vshll.u32 %v775, 16
    %v780 = vshrl.u32 %v775, 16
    %vm781 = vc.u32 %v773, %v777
    %v782 = vsel %vm781, 1, 0
    %v783 = vadd.s32 %v773, %v777
    %v784 = vadd.s32 %v776, %v782
    %vm785 = vc.u32 %v783, %v779
    %v786 = vsel %vm785, 1, 0
    %v787 = vadd.s32 %v783, %v779
    %v788 = vadd.s32 %v784, %v786
    %v789 = vadd.s32 %v788, %v778
    %v790 = vadd.s32 %v789, %v780
    %v791 = vmul.u32 %v746, %v737
    %v792 = vadd.s32 %v768, %v787
    %vm793 = vc.u32 %v768, %v787
    %v794 = vadd.s32 %v790, 1
    %v795 = vsel %vm793, %v794, %v790
    %v796 = vadd.s32 %v791, %v795
    %v797 = vadd.s32 %v796, 536870912
    %v798 = vshrl.u32 %v797, 30
    %v799 = vshll.u32 %v798, 30
    %v800 = vsub.s32 %v796, %v799
    %vm801 = vcmp.lt.s32.totalorder %v800, 0
    %v802 = vsub.s32 0, %v800
    %v803 = vsel %vm801, %v802, %v800
    %v804 = vclz %v803
    %v805 = vsub.s32 %v804, 2
    %vm806 = vcmp.gt.s32.totalorder 0, %v805
    %v807 = vsel %vm806, 0, %v805
    %v808 = vsub.s32 32, %v807
    %v809 = vshll.u32 %v800, %v807
    %v810 = vshrl.u32 %v792, %v808
    %v811 = vor.u32 %v809, %v810
    %v812 = vsub.s32 4294967266, %v807
    %v813 = vadd.s32 %v812, 127
    %v814 = vshll.u32 %v813, 23
    %v815 = vor.u32 4788187, %v814
    %v816 = vand.u32 2147483647, %v815
    %v818 = vcvt.s32.f32 %v811
    %v819 = vmul.f32 %v818, %v816
    %v820 = vxor.u32 %v819, 2147483648
    %v821 = vsel %vm700, %v820, %v819
    %v822 = vsub.s32 4, %v798
    %v823 = vsel %vm700, %v822, %v798
    %v824 = vsel %vm699, %v228, %v821
    %v825 = vsel %vm699, 0, %v823
    %v826 = vmul.f32 %v824, %v824
    %v827 = vmul.f32 %v826, -0.001358992
    %v828 = vadd.f32 %v827, 0.041655596
    %v829 = vmul.f32 %v826, %v828
    %v830 = vadd.f32 %v829, -0.4999988
    %v831 = vmul.f32 %v826, %v830
    %v832 = vadd.f32 1.0, %v831
    %v833 = vmul.f32 %v824, %v824
    %v834 = vmul.f32 %v833, -0.00019511016
    %v835 = vadd.f32 %v834, 0.008332121
    %v836 = vmul.f32 %v833, %v835
    %v837 = vadd.f32 %v836, -0.16666654
    %v838 = vmul.f32 %v833, %v837
    %v839 = vadd.f32 %v838, 1.0
    %v840 = vmul.f32 %v839, %v824
    %vm841 = vweird.f32 %v228
    %v842 = vadd.s32 %v825, 3
    %v843 = vand.u32 %v842, 3
    %vm844 = vcmp.lt.s32.totalorder %v843, 2
    %vm845 = vcmp.eq.s32.totalorder %v843, 0
    %v846 = vxor.u32 %v840, 2147483648
    %v847 = vsel %vm845, %v832, %v846
    %vm848 = vcmp.eq.s32.totalorder %v843, 2
    %v849 = vxor.u32 %v832, 2147483648
    %v850 = vsel %vm848, %v849, %v840
    %v851 = vsel %vm844, %v847, %v850
    %v852 = vsel %vm841, nan, %v851
    %v853 = vld [vmem:[#allocation8] sm:$0xff]
    %v854 = vld [vmem:[#allocation8 + $0x8] sm:$0xff]
    %v855 = vld [vmem:[#allocation8 + $0x10] sm:$0xff]
    %v856 = vld [vmem:[#allocation8 + $0x18] sm:$0x3f]
    %v857 = vand.u32 2147483647, %v225
    %vm858 = vcmp.le.f32.partialorder %v857, 0.7853982
    %vm859 = vcmp.lt.s32.totalorder %v225, 0
    %v860 = vand.u32 %v225, 2139095040
    %v861 = vshrl.u32 %v860, 23
    %v862 = vsub.s32 %v861, 127
    %v863 = vand.u32 2147483647, %v225
    %v864 = vand.u32 %v863, 8388607
    %v865 = vor.u32 %v864, 8388608
    %v866 = vsub.s32 0, %v865
    %v867 = vadd.s32 %v862, 1
    %vm868 = vcmp.gt.s32.totalorder %v867, 0
    %v869 = vsel %vm868, %v867, 0
    %v870 = vshrl.u32 %v869, 5
    %v871 = vand.u32 %v869, 31
    %v872 = vsub.s32 32, %v871
    %v873 = vshrl.u32 683565275, %v872
    %v874 = vshll.u32 683565275, %v871
    %v875 = vshrl.u32 2475754826, %v872
    %v876 = vor.u32 %v874, %v875
    %v877 = vshll.u32 2475754826, %v871
    %v878 = vshrl.u32 2131351028, %v872
    %v879 = vor.u32 %v877, %v878
    %v880 = vshll.u32 2131351028, %v871
    %v881 = vshrl.u32 2102212464, %v872
    %v882 = vor.u32 %v880, %v881
    %v883 = vshll.u32 2102212464, %v871
    %v884 = vshrl.u32 920167782, %v872
    %v885 = vor.u32 %v883, %v884
    %v886 = vshll.u32 920167782, %v871
    %v887 = vshrl.u32 1326507024, %v872
    %v888 = vor.u32 %v886, %v887
    %vm889 = vcmp.lt.s32.totalorder %v870, 1
    %vm890 = vcmp.lt.s32.totalorder %v870, 2
    %vm891 = vcmp.lt.s32.totalorder %v870, 3
    %vm892 = vcmp.lt.s32.totalorder %v870, 4
    %v893 = vsel %vm889, %v873, %v876
    %v894 = vsel %vm892, %v882, 2102212464
    %v895 = vsel %vm891, %v879, %v894
    %v896 = vsel %vm890, %v893, %v895
    %v897 = vsel %vm889, %v876, %v879
    %v898 = vsel %vm892, %v885, 920167782
    %v899 = vsel %vm891, %v882, %v898
    %v900 = vsel %vm890, %v897, %v899
    %v901 = vsel %vm889, %v879, %v882
    %v902 = vsel %vm892, %v888, 1326507024
    %v903 = vsel %vm891, %v885, %v902
    %v904 = vsel %vm890, %v901, %v903
    %v905 = vshll.u32 %v865, 8
    %v906 = vand.u32 %v905, 65535
    %v907 = vshrl.u32 %v905, 16
    %v908 = vand.u32 %v904, 65535
    %v909 = vshrl.u32 %v904, 16
    %v910 = vmul.u32 %v906, %v908
    %v911 = vmul.u32 %v906, %v909
    %v912 = vmul.u32 %v907, %v908
    %v913 = vmul.u32 %v907, %v909
    %v914 = vshll.u32 %v911, 16
    %v915 = vshrl.u32 %v911, 16
    %v916 = vshll.u32 %v912, 16
    %v917 = vshrl.u32 %v912, 16
    %vm918 = vc.u32 %v910, %v914
    %v919 = vsel %vm918, 1, 0
    %v920 = vadd.s32 %v910, %v914
    %v921 = vadd.s32 %v913, %v919
    %vm922 = vc.u32 %v920, %v916
    %v923 = vsel %vm922, 1, 0
    %v924 = vadd.s32 %v920, %v916
    %v925 = vadd.s32 %v921, %v923
    %v926 = vadd.s32 %v925, %v915
    %v927 = vadd.s32 %v926, %v917
    %v928 = vand.u32 %v905, 65535
    %v929 = vshrl.u32 %v905, 16
    %v930 = vand.u32 %v900, 65535
    %v931 = vshrl.u32 %v900, 16
    %v932 = vmul.u32 %v928, %v930
    %v933 = vmul.u32 %v928, %v931
    %v934 = vmul.u32 %v929, %v930
    %v935 = vmul.u32 %v929, %v931
    %v936 = vshll.u32 %v933, 16
    %v937 = vshrl.u32 %v933, 16
    %v938 = vshll.u32 %v934, 16
    %v939 = vshrl.u32 %v934, 16
    %vm940 = vc.u32 %v932, %v936
    %v941 = vsel %vm940, 1, 0
    %v942 = vadd.s32 %v932, %v936
    %v943 = vadd.s32 %v935, %v941
    %vm944 = vc.u32 %v942, %v938
    %v945 = vsel %vm944, 1, 0
    %v946 = vadd.s32 %v942, %v938
    %v947 = vadd.s32 %v943, %v945
    %v948 = vadd.s32 %v947, %v937
    %v949 = vadd.s32 %v948, %v939
    %v950 = vmul.u32 %v905, %v896
    %v951 = vadd.s32 %v927, %v946
    %vm952 = vc.u32 %v927, %v946
    %v953 = vadd.s32 %v949, 1
    %v954 = vsel %vm952, %v953, %v949
    %v955 = vadd.s32 %v950, %v954
    %v956 = vadd.s32 %v955, 536870912
    %v957 = vshrl.u32 %v956, 30
    %v958 = vshll.u32 %v957, 30
    %v959 = vsub.s32 %v955, %v958
    %vm960 = vcmp.lt.s32.totalorder %v959, 0
    %v961 = vsub.s32 0, %v959
    %v962 = vsel %vm960, %v961, %v959
    %v963 = vclz %v962
    %v964 = vsub.s32 %v963, 2
    %vm965 = vcmp.gt.s32.totalorder 0, %v964
    %v966 = vsel %vm965, 0, %v964
    %v967 = vsub.s32 32, %v966
    %v968 = vshll.u32 %v959, %v966
    %v969 = vshrl.u32 %v951, %v967
    %v970 = vor.u32 %v968, %v969
    %v971 = vsub.s32 4294967266, %v966
    %v972 = vadd.s32 %v971, 127
    %v973 = vshll.u32 %v972, 23
    %v974 = vor.u32 4788187, %v973
    %v975 = vand.u32 2147483647, %v974
    %v977 = vcvt.s32.f32 %v970
    %v978 = vmul.f32 %v977, %v975
    %v979 = vxor.u32 %v978, 2147483648
    %v980 = vsel %vm859, %v979, %v978
    %v981 = vsub.s32 4, %v957
    %v982 = vsel %vm859, %v981, %v957
    %v983 = vsel %vm858, %v225, %v980
    %v984 = vsel %vm858, 0, %v982
    %v985 = vmul.f32 %v983, %v983
    %v986 = vmul.f32 %v985, -0.001358992
    %v987 = vadd.f32 %v986, 0.041655596
    %v988 = vmul.f32 %v985, %v987
    %v989 = vadd.f32 %v988, -0.4999988
    %v990 = vmul.f32 %v985, %v989
    %v991 = vadd.f32 1.0, %v990
    %v992 = vmul.f32 %v983, %v983
    %v993 = vmul.f32 %v992, -0.00019511016
    %v994 = vadd.f32 %v993, 0.008332121
    %v995 = vmul.f32 %v992, %v994
    %v996 = vadd.f32 %v995, -0.16666654
    %v997 = vmul.f32 %v992, %v996
    %v998 = vadd.f32 %v997, 1.0
    %v999 = vmul.f32 %v998, %v983
    %vm1000 = vweird.f32 %v225
    %v1001 = vand.u32 %v984, 3
    %vm1002 = vcmp.lt.s32.totalorder %v1001, 2
    %vm1003 = vcmp.eq.s32.totalorder %v1001, 0
    %v1004 = vxor.u32 %v999, 2147483648
    %v1005 = vsel %vm1003, %v991, %v1004
    %vm1006 = vcmp.eq.s32.totalorder %v1001, 2
    %v1007 = vxor.u32 %v991, 2147483648
    %v1008 = vsel %vm1006, %v1007, %v999
    %v1009 = vsel %vm1002, %v1005, %v1008
    %v1010 = vsel %vm1000, nan, %v1009
    %v1011 = vand.u32 2147483647, %v226
    %vm1012 = vcmp.le.f32.partialorder %v1011, 0.7853982
    %vm1013 = vcmp.lt.s32.totalorder %v226, 0
    %v1014 = vand.u32 %v226, 2139095040
    %v1015 = vshrl.u32 %v1014, 23
    %v1016 = vsub.s32 %v1015, 127
    %v1017 = vand.u32 2147483647, %v226
    %v1018 = vand.u32 %v1017, 8388607
    %v1019 = vor.u32 %v1018, 8388608
    %v1020 = vsub.s32 0, %v1019
    %v1021 = vadd.s32 %v1016, 1
    %vm1022 = vcmp.gt.s32.totalorder %v1021, 0
    %v1023 = vsel %vm1022, %v1021, 0
    %v1024 = vshrl.u32 %v1023, 5
    %v1025 = vand.u32 %v1023, 31
    %v1026 = vsub.s32 32, %v1025
    %v1027 = vshrl.u32 683565275, %v1026
    %v1028 = vshll.u32 683565275, %v1025
    %v1029 = vshrl.u32 2475754826, %v1026
    %v1030 = vor.u32 %v1028, %v1029
    %v1031 = vshll.u32 2475754826, %v1025
    %v1032 = vshrl.u32 2131351028, %v1026
    %v1033 = vor.u32 %v1031, %v1032
    %v1034 = vshll.u32 2131351028, %v1025
    %v1035 = vshrl.u32 2102212464, %v1026
    %v1036 = vor.u32 %v1034, %v1035
    %v1037 = vshll.u32 2102212464, %v1025
    %v1038 = vshrl.u32 920167782, %v1026
    %v1039 = vor.u32 %v1037, %v1038
    %v1040 = vshll.u32 920167782, %v1025
    %v1041 = vshrl.u32 1326507024, %v1026
    %v1042 = vor.u32 %v1040, %v1041
    %vm1043 = vcmp.lt.s32.totalorder %v1024, 1
    %vm1044 = vcmp.lt.s32.totalorder %v1024, 2
    %vm1045 = vcmp.lt.s32.totalorder %v1024, 3
    %vm1046 = vcmp.lt.s32.totalorder %v1024, 4
    %v1047 = vsel %vm1043, %v1027, %v1030
    %v1048 = vsel %vm1046, %v1036, 2102212464
    %v1049 = vsel %vm1045, %v1033, %v1048
    %v1050 = vsel %vm1044, %v1047, %v1049
    %v1051 = vsel %vm1043, %v1030, %v1033
    %v1052 = vsel %vm1046, %v1039, 920167782
    %v1053 = vsel %vm1045, %v1036, %v1052
    %v1054 = vsel %vm1044, %v1051, %v1053
    %v1055 = vsel %vm1043, %v1033, %v1036
    %v1056 = vsel %vm1046, %v1042, 1326507024
    %v1057 = vsel %vm1045, %v1039, %v1056
    %v1058 = vsel %vm1044, %v1055, %v1057
    %v1059 = vshll.u32 %v1019, 8
    %v1060 = vand.u32 %v1059, 65535
    %v1061 = vshrl.u32 %v1059, 16
    %v1062 = vand.u32 %v1058, 65535
    %v1063 = vshrl.u32 %v1058, 16
    %v1064 = vmul.u32 %v1060, %v1062
    %v1065 = vmul.u32 %v1060, %v1063
    %v1066 = vmul.u32 %v1061, %v1062
    %v1067 = vmul.u32 %v1061, %v1063
    %v1068 = vshll.u32 %v1065, 16
    %v1069 = vshrl.u32 %v1065, 16
    %v1070 = vshll.u32 %v1066, 16
    %v1071 = vshrl.u32 %v1066, 16
    %vm1072 = vc.u32 %v1064, %v1068
    %v1073 = vsel %vm1072, 1, 0
    %v1074 = vadd.s32 %v1064, %v1068
    %v1075 = vadd.s32 %v1067, %v1073
    %vm1076 = vc.u32 %v1074, %v1070
    %v1077 = vsel %vm1076, 1, 0
    %v1078 = vadd.s32 %v1074, %v1070
    %v1079 = vadd.s32 %v1075, %v1077
    %v1080 = vadd.s32 %v1079, %v1069
    %v1081 = vadd.s32 %v1080, %v1071
    %v1082 = vand.u32 %v1059, 65535
    %v1083 = vshrl.u32 %v1059, 16
    %v1084 = vand.u32 %v1054, 65535
    %v1085 = vshrl.u32 %v1054, 16
    %v1086 = vmul.u32 %v1082, %v1084
    %v1087 = vmul.u32 %v1082, %v1085
    %v1088 = vmul.u32 %v1083, %v1084
    %v1089 = vmul.u32 %v1083, %v1085
    %v1090 = vshll.u32 %v1087, 16
    %v1091 = vshrl.u32 %v1087, 16
    %v1092 = vshll.u32 %v1088, 16
    %v1093 = vshrl.u32 %v1088, 16
    %vm1094 = vc.u32 %v1086, %v1090
    %v1095 = vsel %vm1094, 1, 0
    %v1096 = vadd.s32 %v1086, %v1090
    %v1097 = vadd.s32 %v1089, %v1095
    %vm1098 = vc.u32 %v1096, %v1092
    %v1099 = vsel %vm1098, 1, 0
    %v1100 = vadd.s32 %v1096, %v1092
    %v1101 = vadd.s32 %v1097, %v1099
    %v1102 = vadd.s32 %v1101, %v1091
    %v1103 = vadd.s32 %v1102, %v1093
    %v1104 = vmul.u32 %v1059, %v1050
    %v1105 = vadd.s32 %v1081, %v1100
    %vm1106 = vc.u32 %v1081, %v1100
    %v1107 = vadd.s32 %v1103, 1
    %v1108 = vsel %vm1106, %v1107, %v1103
    %v1109 = vadd.s32 %v1104, %v1108
    %v1110 = vadd.s32 %v1109, 536870912
    %v1111 = vshrl.u32 %v1110, 30
    %v1112 = vshll.u32 %v1111, 30
    %v1113 = vsub.s32 %v1109, %v1112
    %vm1114 = vcmp.lt.s32.totalorder %v1113, 0
    %v1115 = vsub.s32 0, %v1113
    %v1116 = vsel %vm1114, %v1115, %v1113
    %v1117 = vclz %v1116
    %v1118 = vsub.s32 %v1117, 2
    %vm1119 = vcmp.gt.s32.totalorder 0, %v1118
    %v1120 = vsel %vm1119, 0, %v1118
    %v1121 = vsub.s32 32, %v1120
    %v1122 = vshll.u32 %v1113, %v1120
    %v1123 = vshrl.u32 %v1105, %v1121
    %v1124 = vor.u32 %v1122, %v1123
    %v1125 = vsub.s32 4294967266, %v1120
    %v1126 = vadd.s32 %v1125, 127
    %v1127 = vshll.u32 %v1126, 23
    %v1128 = vor.u32 4788187, %v1127
    %v1129 = vand.u32 2147483647, %v1128
    %v1131 = vcvt.s32.f32 %v1124
    %v1132 = vmul.f32 %v1131, %v1129
    %v1133 = vxor.u32 %v1132, 2147483648
    %v1134 = vsel %vm1013, %v1133, %v1132
    %v1135 = vsub.s32 4, %v1111
    %v1136 = vsel %vm1013, %v1135, %v1111
    %v1137 = vsel %vm1012, %v226, %v1134
    %v1138 = vsel %vm1012, 0, %v1136
    %v1139 = vmul.f32 %v1137, %v1137
    %v1140 = vmul.f32 %v1139, -0.001358992
    %v1141 = vadd.f32 %v1140, 0.041655596
    %v1142 = vmul.f32 %v1139, %v1141
    %v1143 = vadd.f32 %v1142, -0.4999988
    %v1144 = vmul.f32 %v1139, %v1143
    %v1145 = vadd.f32 1.0, %v1144
    %v1146 = vmul.f32 %v1137, %v1137
    %v1147 = vmul.f32 %v1146, -0.00019511016
    %v1148 = vadd.f32 %v1147, 0.008332121
    %v1149 = vmul.f32 %v1146, %v1148
    %v1150 = vadd.f32 %v1149, -0.16666654
    %v1151 = vmul.f32 %v1146, %v1150
    %v1152 = vadd.f32 %v1151, 1.0
    %v1153 = vmul.f32 %v1152, %v1137
    %vm1154 = vweird.f32 %v226
    %v1155 = vand.u32 %v1138, 3
    %vm1156 = vcmp.lt.s32.totalorder %v1155, 2
    %vm1157 = vcmp.eq.s32.totalorder %v1155, 0
    %v1158 = vxor.u32 %v1153, 2147483648
    %v1159 = vsel %vm1157, %v1145, %v1158
    %vm1160 = vcmp.eq.s32.totalorder %v1155, 2
    %v1161 = vxor.u32 %v1145, 2147483648
    %v1162 = vsel %vm1160, %v1161, %v1153
    %v1163 = vsel %vm1156, %v1159, %v1162
    %v1164 = vsel %vm1154, nan, %v1163
    %v1165 = vand.u32 2147483647, %v227
    %vm1166 = vcmp.le.f32.partialorder %v1165, 0.7853982
    %vm1167 = vcmp.lt.s32.totalorder %v227, 0
    %v1168 = vand.u32 %v227, 2139095040
    %v1169 = vshrl.u32 %v1168, 23
    %v1170 = vsub.s32 %v1169, 127
    %v1171 = vand.u32 2147483647, %v227
    %v1172 = vand.u32 %v1171, 8388607
    %v1173 = vor.u32 %v1172, 8388608
    %v1174 = vsub.s32 0, %v1173
    %v1175 = vadd.s32 %v1170, 1
    %vm1176 = vcmp.gt.s32.totalorder %v1175, 0
    %v1177 = vsel %vm1176, %v1175, 0
    %v1178 = vshrl.u32 %v1177, 5
    %v1179 = vand.u32 %v1177, 31
    %v1180 = vsub.s32 32, %v1179
    %v1181 = vshrl.u32 683565275, %v1180
    %v1182 = vshll.u32 683565275, %v1179
    %v1183 = vshrl.u32 2475754826, %v1180
    %v1184 = vor.u32 %v1182, %v1183
    %v1185 = vshll.u32 2475754826, %v1179
    %v1186 = vshrl.u32 2131351028, %v1180
    %v1187 = vor.u32 %v1185, %v1186
    %v1188 = vshll.u32 2131351028, %v1179
    %v1189 = vshrl.u32 2102212464, %v1180
    %v1190 = vor.u32 %v1188, %v1189
    %v1191 = vshll.u32 2102212464, %v1179
    %v1192 = vshrl.u32 920167782, %v1180
    %v1193 = vor.u32 %v1191, %v1192
    %v1194 = vshll.u32 920167782, %v1179
    %v1195 = vshrl.u32 1326507024, %v1180
    %v1196 = vor.u32 %v1194, %v1195
    %vm1197 = vcmp.lt.s32.totalorder %v1178, 1
    %vm1198 = vcmp.lt.s32.totalorder %v1178, 2
    %vm1199 = vcmp.lt.s32.totalorder %v1178, 3
    %vm1200 = vcmp.lt.s32.totalorder %v1178, 4
    %v1201 = vsel %vm1197, %v1181, %v1184
    %v1202 = vsel %vm1200, %v1190, 2102212464
    %v1203 = vsel %vm1199, %v1187, %v1202
    %v1204 = vsel %vm1198, %v1201, %v1203
    %v1205 = vsel %vm1197, %v1184, %v1187
    %v1206 = vsel %vm1200, %v1193, 920167782
    %v1207 = vsel %vm1199, %v1190, %v1206
    %v1208 = vsel %vm1198, %v1205, %v1207
    %v1209 = vsel %vm1197, %v1187, %v1190
    %v1210 = vsel %vm1200, %v1196, 1326507024
    %v1211 = vsel %vm1199, %v1193, %v1210
    %v1212 = vsel %vm1198, %v1209, %v1211
    %v1213 = vshll.u32 %v1173, 8
    %v1214 = vand.u32 %v1213, 65535
    %v1215 = vshrl.u32 %v1213, 16
    %v1216 = vand.u32 %v1212, 65535
    %v1217 = vshrl.u32 %v1212, 16
    %v1218 = vmul.u32 %v1214, %v1216
    %v1219 = vmul.u32 %v1214, %v1217
    %v1220 = vmul.u32 %v1215, %v1216
    %v1221 = vmul.u32 %v1215, %v1217
    %v1222 = vshll.u32 %v1219, 16
    %v1223 = vshrl.u32 %v1219, 16
    %v1224 = vshll.u32 %v1220, 16
    %v1225 = vshrl.u32 %v1220, 16
    %vm1226 = vc.u32 %v1218, %v1222
    %v1227 = vsel %vm1226, 1, 0
    %v1228 = vadd.s32 %v1218, %v1222
    %v1229 = vadd.s32 %v1221, %v1227
    %vm1230 = vc.u32 %v1228, %v1224
    %v1231 = vsel %vm1230, 1, 0
    %v1232 = vadd.s32 %v1228, %v1224
    %v1233 = vadd.s32 %v1229, %v1231
    %v1234 = vadd.s32 %v1233, %v1223
    %v1235 = vadd.s32 %v1234, %v1225
    %v1236 = vand.u32 %v1213, 65535
    %v1237 = vshrl.u32 %v1213, 16
    %v1238 = vand.u32 %v1208, 65535
    %v1239 = vshrl.u32 %v1208, 16
    %v1240 = vmul.u32 %v1236, %v1238
    %v1241 = vmul.u32 %v1236, %v1239
    %v1242 = vmul.u32 %v1237, %v1238
    %v1243 = vmul.u32 %v1237, %v1239
    %v1244 = vshll.u32 %v1241, 16
    %v1245 = vshrl.u32 %v1241, 16
    %v1246 = vshll.u32 %v1242, 16
    %v1247 = vshrl.u32 %v1242, 16
    %vm1248 = vc.u32 %v1240, %v1244
    %v1249 = vsel %vm1248, 1, 0
    %v1250 = vadd.s32 %v1240, %v1244
    %v1251 = vadd.s32 %v1243, %v1249
    %vm1252 = vc.u32 %v1250, %v1246
    %v1253 = vsel %vm1252, 1, 0
    %v1254 = vadd.s32 %v1250, %v1246
    %v1255 = vadd.s32 %v1251, %v1253
    %v1256 = vadd.s32 %v1255, %v1245
    %v1257 = vadd.s32 %v1256, %v1247
    %v1258 = vmul.u32 %v1213, %v1204
    %v1259 = vadd.s32 %v1235, %v1254
    %vm1260 = vc.u32 %v1235, %v1254
    %v1261 = vadd.s32 %v1257, 1
    %v1262 = vsel %vm1260, %v1261, %v1257
    %v1263 = vadd.s32 %v1258, %v1262
    %v1264 = vadd.s32 %v1263, 536870912
    %v1265 = vshrl.u32 %v1264, 30
    %v1266 = vshll.u32 %v1265, 30
    %v1267 = vsub.s32 %v1263, %v1266
    %vm1268 = vcmp.lt.s32.totalorder %v1267, 0
    %v1269 = vsub.s32 0, %v1267
    %v1270 = vsel %vm1268, %v1269, %v1267
    %v1271 = vclz %v1270
    %v1272 = vsub.s32 %v1271, 2
    %vm1273 = vcmp.gt.s32.totalorder 0, %v1272
    %v1274 = vsel %vm1273, 0, %v1272
    %v1275 = vsub.s32 32, %v1274
    %v1276 = vshll.u32 %v1267, %v1274
    %v1277 = vshrl.u32 %v1259, %v1275
    %v1278 = vor.u32 %v1276, %v1277
    %v1279 = vsub.s32 4294967266, %v1274
    %v1280 = vadd.s32 %v1279, 127
    %v1281 = vshll.u32 %v1280, 23
    %v1282 = vor.u32 4788187, %v1281
    %v1283 = vand.u32 2147483647, %v1282
    %v1285 = vcvt.s32.f32 %v1278
    %v1286 = vmul.f32 %v1285, %v1283
    %v1287 = vxor.u32 %v1286, 2147483648
    %v1288 = vsel %vm1167, %v1287, %v1286
    %v1289 = vsub.s32 4, %v1265
    %v1290 = vsel %vm1167, %v1289, %v1265
    %v1291 = vsel %vm1166, %v227, %v1288
    %v1292 = vsel %vm1166, 0, %v1290
    %v1293 = vmul.f32 %v1291, %v1291
    %v1294 = vmul.f32 %v1293, -0.001358992
    %v1295 = vadd.f32 %v1294, 0.041655596
    %v1296 = vmul.f32 %v1293, %v1295
    %v1297 = vadd.f32 %v1296, -0.4999988
    %v1298 = vmul.f32 %v1293, %v1297
    %v1299 = vadd.f32 1.0, %v1298
    %v1300 = vmul.f32 %v1291, %v1291
    %v1301 = vmul.f32 %v1300, -0.00019511016
    %v1302 = vadd.f32 %v1301, 0.008332121
    %v1303 = vmul.f32 %v1300, %v1302
    %v1304 = vadd.f32 %v1303, -0.16666654
    %v1305 = vmul.f32 %v1300, %v1304
    %v1306 = vadd.f32 %v1305, 1.0
    %v1307 = vmul.f32 %v1306, %v1291
    %vm1308 = vweird.f32 %v227
    %v1309 = vand.u32 %v1292, 3
    %vm1310 = vcmp.lt.s32.totalorder %v1309, 2
    %vm1311 = vcmp.eq.s32.totalorder %v1309, 0
    %v1312 = vxor.u32 %v1307, 2147483648
    %v1313 = vsel %vm1311, %v1299, %v1312
    %vm1314 = vcmp.eq.s32.totalorder %v1309, 2
    %v1315 = vxor.u32 %v1299, 2147483648
    %v1316 = vsel %vm1314, %v1315, %v1307
    %v1317 = vsel %vm1310, %v1313, %v1316
    %v1318 = vsel %vm1308, nan, %v1317
    %v1319 = vand.u32 2147483647, %v228
    %vm1320 = vcmp.le.f32.partialorder %v1319, 0.7853982
    %vm1321 = vcmp.lt.s32.totalorder %v228, 0
    %v1322 = vand.u32 %v228, 2139095040
    %v1323 = vshrl.u32 %v1322, 23
    %v1324 = vsub.s32 %v1323, 127
    %v1325 = vand.u32 2147483647, %v228
    %v1326 = vand.u32 %v1325, 8388607
    %v1327 = vor.u32 %v1326, 8388608
    %v1328 = vsub.s32 0, %v1327
    %v1329 = vadd.s32 %v1324, 1
    %vm1330 = vcmp.gt.s32.totalorder %v1329, 0
    %v1331 = vsel %vm1330, %v1329, 0
    %v1332 = vshrl.u32 %v1331, 5
    %v1333 = vand.u32 %v1331, 31
    %v1334 = vsub.s32 32, %v1333
    %v1335 = vshrl.u32 683565275, %v1334
    %v1336 = vshll.u32 683565275, %v1333
    %v1337 = vshrl.u32 2475754826, %v1334
    %v1338 = vor.u32 %v1336, %v1337
    %v1339 = vshll.u32 2475754826, %v1333
    %v1340 = vshrl.u32 2131351028, %v1334
    %v1341 = vor.u32 %v1339, %v1340
    %v1342 = vshll.u32 2131351028, %v1333
    %v1343 = vshrl.u32 2102212464, %v1334
    %v1344 = vor.u32 %v1342, %v1343
    %v1345 = vshll.u32 2102212464, %v1333
    %v1346 = vshrl.u32 920167782, %v1334
    %v1347 = vor.u32 %v1345, %v1346
    %v1348 = vshll.u32 920167782, %v1333
    %v1349 = vshrl.u32 1326507024, %v1334
    %v1350 = vor.u32 %v1348, %v1349
    %vm1351 = vcmp.lt.s32.totalorder %v1332, 1
    %vm1352 = vcmp.lt.s32.totalorder %v1332, 2
    %vm1353 = vcmp.lt.s32.totalorder %v1332, 3
    %vm1354 = vcmp.lt.s32.totalorder %v1332, 4
    %v1355 = vsel %vm1351, %v1335, %v1338
    %v1356 = vsel %vm1354, %v1344, 2102212464
    %v1357 = vsel %vm1353, %v1341, %v1356
    %v1358 = vsel %vm1352, %v1355, %v1357
    %v1359 = vsel %vm1351, %v1338, %v1341
    %v1360 = vsel %vm1354, %v1347, 920167782
    %v1361 = vsel %vm1353, %v1344, %v1360
    %v1362 = vsel %vm1352, %v1359, %v1361
    %v1363 = vsel %vm1351, %v1341, %v1344
    %v1364 = vsel %vm1354, %v1350, 1326507024
    %v1365 = vsel %vm1353, %v1347, %v1364
    %v1366 = vsel %vm1352, %v1363, %v1365
    %v1367 = vshll.u32 %v1327, 8
    %v1368 = vand.u32 %v1367, 65535
    %v1369 = vshrl.u32 %v1367, 16
    %v1370 = vand.u32 %v1366, 65535
    %v1371 = vshrl.u32 %v1366, 16
    %v1372 = vmul.u32 %v1368, %v1370
    %v1373 = vmul.u32 %v1368, %v1371
    %v1374 = vmul.u32 %v1369, %v1370
    %v1375 = vmul.u32 %v1369, %v1371
    %v1376 = vshll.u32 %v1373, 16
    %v1377 = vshrl.u32 %v1373, 16
    %v1378 = vshll.u32 %v1374, 16
    %v1379 = vshrl.u32 %v1374, 16
    %vm1380 = vc.u32 %v1372, %v1376
    %v1381 = vsel %vm1380, 1, 0
    %v1382 = vadd.s32 %v1372, %v1376
    %v1383 = vadd.s32 %v1375, %v1381
    %vm1384 = vc.u32 %v1382, %v1378
    %v1385 = vsel %vm1384, 1, 0
    %v1386 = vadd.s32 %v1382, %v1378
    %v1387 = vadd.s32 %v1383, %v1385
    %v1388 = vadd.s32 %v1387, %v1377
    %v1389 = vadd.s32 %v1388, %v1379
    %v1390 = vand.u32 %v1367, 65535
    %v1391 = vshrl.u32 %v1367, 16
    %v1392 = vand.u32 %v1362, 65535
    %v1393 = vshrl.u32 %v1362, 16
    %v1394 = vmul.u32 %v1390, %v1392
    %v1395 = vmul.u32 %v1390, %v1393
    %v1396 = vmul.u32 %v1391, %v1392
    %v1397 = vmul.u32 %v1391, %v1393
    %v1398 = vshll.u32 %v1395, 16
    %v1399 = vshrl.u32 %v1395, 16
    %v1400 = vshll.u32 %v1396, 16
    %v1401 = vshrl.u32 %v1396, 16
    %vm1402 = vc.u32 %v1394, %v1398
    %v1403 = vsel %vm1402, 1, 0
    %v1404 = vadd.s32 %v1394, %v1398
    %v1405 = vadd.s32 %v1397, %v1403
    %vm1406 = vc.u32 %v1404, %v1400
    %v1407 = vsel %vm1406, 1, 0
    %v1408 = vadd.s32 %v1404, %v1400
    %v1409 = vadd.s32 %v1405, %v1407
    %v1410 = vadd.s32 %v1409, %v1399
    %v1411 = vadd.s32 %v1410, %v1401
    %v1412 = vmul.u32 %v1367, %v1358
    %v1413 = vadd.s32 %v1389, %v1408
    %vm1414 = vc.u32 %v1389, %v1408
    %v1415 = vadd.s32 %v1411, 1
    %v1416 = vsel %vm1414, %v1415, %v1411
    %v1417 = vadd.s32 %v1412, %v1416
    %v1418 = vadd.s32 %v1417, 536870912
    %v1419 = vshrl.u32 %v1418, 30
    %v1420 = vshll.u32 %v1419, 30
    %v1421 = vsub.s32 %v1417, %v1420
    %vm1422 = vcmp.lt.s32.totalorder %v1421, 0
    %v1423 = vsub.s32 0, %v1421
    %v1424 = vsel %vm1422, %v1423, %v1421
    %v1425 = vclz %v1424
    %v1426 = vsub.s32 %v1425, 2
    %vm1427 = vcmp.gt.s32.totalorder 0, %v1426
    %v1428 = vsel %vm1427, 0, %v1426
    %v1429 = vsub.s32 32, %v1428
    %v1430 = vshll.u32 %v1421, %v1428
    %v1431 = vshrl.u32 %v1413, %v1429
    %v1432 = vor.u32 %v1430, %v1431
    %v1433 = vsub.s32 4294967266, %v1428
    %v1434 = vadd.s32 %v1433, 127
    %v1435 = vshll.u32 %v1434, 23
    %v1436 = vor.u32 4788187, %v1435
    %v1437 = vand.u32 2147483647, %v1436
    %v1439 = vcvt.s32.f32 %v1432
    %v1440 = vmul.f32 %v1439, %v1437
    %v1441 = vxor.u32 %v1440, 2147483648
    %v1442 = vsel %vm1321, %v1441, %v1440
    %v1443 = vsub.s32 4, %v1419
    %v1444 = vsel %vm1321, %v1443, %v1419
    %v1445 = vsel %vm1320, %v228, %v1442
    %v1446 = vsel %vm1320, 0, %v1444
    %v1447 = vmul.f32 %v1445, %v1445
    %v1448 = vmul.f32 %v1447, -0.001358992
    %v1449 = vadd.f32 %v1448, 0.041655596
    %v1450 = vmul.f32 %v1447, %v1449
    %v1451 = vadd.f32 %v1450, -0.4999988
    %v1452 = vmul.f32 %v1447, %v1451
    %v1453 = vadd.f32 1.0, %v1452
    %v1454 = vmul.f32 %v1445, %v1445
    %v1455 = vmul.f32 %v1454, -0.00019511016
    %v1456 = vadd.f32 %v1455, 0.008332121
    %v1457 = vmul.f32 %v1454, %v1456
    %v1458 = vadd.f32 %v1457, -0.16666654
    %v1459 = vmul.f32 %v1454, %v1458
    %v1460 = vadd.f32 %v1459, 1.0
    %v1461 = vmul.f32 %v1460, %v1445
    %vm1462 = vweird.f32 %v228
    %v1463 = vand.u32 %v1446, 3
    %vm1464 = vcmp.lt.s32.totalorder %v1463, 2
    %vm1465 = vcmp.eq.s32.totalorder %v1463, 0
    %v1466 = vxor.u32 %v1461, 2147483648
    %v1467 = vsel %vm1465, %v1453, %v1466
    %vm1468 = vcmp.eq.s32.totalorder %v1463, 2
    %v1469 = vxor.u32 %v1453, 2147483648
    %v1470 = vsel %vm1468, %v1469, %v1461
    %v1471 = vsel %vm1464, %v1467, %v1470
    %v1472 = vsel %vm1462, nan, %v1471
    %vm1473 = vcmask 244736
    %v1475 = vsel %vm1473, %v853, 0
    %v1478 = vsel %vm1473, %v854, 0
    %v1481 = vsel %vm1473, %v855, 0
    %v1484 = vsel %vm1473, %v856, 0
    %vm1486 = vcmask 1045504
    %v1488 = vsel %vm1486, %v1472, 0
    %1490 = vmatpush.msra.mxu0 0.0
    %1491 = vmatpush.msra.mxu0 0.0
    %1492 = vmatpush.msra.mxu0 0.0
    %1493 = vmatpush.msra.mxu0 0.0
    %1494 = vmatpush.msra.mxu0 0.0
    %1495 = vmatpush.msra.mxu0 0.0
    %1496 = vmatpush.msra.mxu0 0.0
    %1497 = vmatpush.msra.mxu0 0.0
    %1498 = vmatpush.msra.mxu0 0.0
    %1499 = vmatpush.msra.mxu0 0.0
    %1500 = vmatpush.msra.mxu0 0.0
    %1501 = vmatpush.msra.mxu0 0.0
    %1502 = vmatpush.msra.mxu0 %v1488
    %1503 = vmatpush.msra.mxu0 %v1318
    %1504 = vmatpush.msra.mxu0 %v1164
    %1505 = vmatpush.msra.mxu0 %v1010
    %1506 = vmatmul.f32.gmra.mxu0 %v1475
    %v1507 = vpop.f32.mrf.mxu0
    %v1508 = vadd.f32 0.0, %v1507
    %1509 = vmatmul.f32.gmra.mxu0 %v1478
    %v1510 = vpop.f32.mrf.mxu0
    %v1511 = vadd.f32 0.0, %v1510
    %1512 = vmatmul.f32.gmra.mxu0 %v1481
    %v1513 = vpop.f32.mrf.mxu0
    %v1514 = vadd.f32 0.0, %v1513
    %1515 = vmatmul.f32.gmra.mxu0 %v1484
    %v1516 = vpop.f32.mrf.mxu0
    %v1517 = vadd.f32 0.0, %v1516
    %1518 = vdwg.mxu0
    %v1520 = vsel %vm1473, %v229, 0
    %v1523 = vsel %vm1473, %v230, 0
    %v1526 = vsel %vm1473, %v231, 0
    %v1529 = vsel %vm1473, %v232, 0
    %v1532 = vsel %vm1486, %v852, 0
    %1534 = vmatpush.msra.mxu0 0.0
    %1535 = vmatpush.msra.mxu0 0.0
    %1536 = vmatpush.msra.mxu0 0.0
    %1537 = vmatpush.msra.mxu0 0.0
    %1538 = vmatpush.msra.mxu0 0.0
    %1539 = vmatpush.msra.mxu0 0.0
    %1540 = vmatpush.msra.mxu0 0.0
    %1541 = vmatpush.msra.mxu0 0.0
    %1542 = vmatpush.msra.mxu0 0.0
    %1543 = vmatpush.msra.mxu0 0.0
    %1544 = vmatpush.msra.mxu0 0.0
    %1545 = vmatpush.msra.mxu0 0.0
    %1546 = vmatpush.msra.mxu0 %v1532
    %1547 = vmatpush.msra.mxu0 %v697
    %1548 = vmatpush.msra.mxu0 %v542
    %1549 = vmatpush.msra.mxu0 %v387
    %1550 = vmatmul.f32.gmra.mxu0 %v1520
    %v1551 = vpop.f32.mrf.mxu0
    %v1552 = vadd.f32 %v1508, %v1551
    %1553 = vmatmul.f32.gmra.mxu0 %v1523
    %v1554 = vpop.f32.mrf.mxu0
    %v1555 = vadd.f32 %v1511, %v1554
    %1556 = vmatmul.f32.gmra.mxu0 %v1526
    %v1557 = vpop.f32.mrf.mxu0
    %v1558 = vadd.f32 %v1514, %v1557
    %1559 = vmatmul.f32.gmra.mxu0 %v1529
    %v1560 = vpop.f32.mrf.mxu0
    %v1561 = vadd.f32 %v1517, %v1560
    %1562 = vdwg.mxu0
    %v1563 = vld [vmem:[#allocation10] sm:$0xff]
    %v1564 = vld [vmem:[#allocation10 + $0x8] sm:$0xff]
    %v1565 = vld [vmem:[#allocation10 + $0x10] sm:$0xff]
    %v1566 = vld [vmem:[#allocation10 + $0x18] sm:$0x3f]
    %1568 = vset.pattern.permute.xlu0 0
    %1569 = vperm.xlu0 %1568, %v1563
    %v1570 = vpop.permute.xlu0 %1569
    %1573 = vset.pattern.permute.xlu0 0
    %1574 = vperm.xlu0 %1573, %v1564
    %v1575 = vpop.permute.xlu0 %1574
    %1578 = vset.pattern.permute.xlu0 0
    %1579 = vperm.xlu0 %1578, %v1565
    %v1580 = vpop.permute.xlu0 %1579
    %1583 = vset.pattern.permute.xlu0 0
    %1584 = vperm.xlu0 %1583, %v1566
    %v1585 = vpop.permute.xlu0 %1584
    %v1587 = vadd.f32 %v1552, %v1570
    %v1588 = vadd.f32 %v1555, %v1575
    %v1589 = vadd.f32 %v1558, %v1580
    %v1590 = vadd.f32 %v1561, %v1585
    %v1591 = vmul.f32 %v1587, 0.5
    %v1592 = vmul.f32 %v1588, 0.5
    %v1593 = vmul.f32 %v1589, 0.5
    %v1594 = vmul.f32 %v1590, 0.5
    %v1595 = vmul.f32 %v1587, 0.70710677
    %v1596 = vmul.f32 %v1588, 0.70710677
    %v1597 = vmul.f32 %v1589, 0.70710677
    %v1598 = vmul.f32 %v1590, 0.70710677
    %v1599 = vmul.f32 %v1595, %v1595
    %v1600 = vmin.f32 16.0, %v1599
    %v1601 = vmul.f32 %v1600, 2.1237322e-06
    %v1602 = vadd.f32 %v1601, 0.00028619796
    %v1603 = vmul.f32 %v1600, %v1602
    %v1604 = vadd.f32 %v1603, 0.0036580483
    %v1605 = vmul.f32 %v1600, %v1604
    %v1606 = vadd.f32 %v1605, 0.05243302
    %v1607 = vmul.f32 %v1600, %v1606
    %v1608 = vadd.f32 %v1607, 0.18741608
    %v1609 = vmul.f32 %v1600, %v1608
    %v1610 = vadd.f32 %v1609, 1.1283791
    %v1611 = vmul.f32 %v1595, %v1610
    %v1612 = vmul.f32 %v1600, 3.8918573e-05
    %v1613 = vadd.f32 %v1612, 0.001143296
    %v1614 = vmul.f32 %v1600, %v1613
    %v1615 = vadd.f32 %v1614, 0.014752088
    %v1616 = vmul.f32 %v1600, %v1615
    %v1617 = vadd.f32 %v1616, 0.112945676
    %v1618 = vmul.f32 %v1600, %v1617
    %v1619 = vadd.f32 %v1618, 0.4994258
    %v1620 = vmul.f32 %v1600, %v1619
    %v1621 = vadd.f32 %v1620, 1.0
    %v1622 = vrcp.pop %v1621
    %v1623 = vmul.f32 %v1621, %v1622
    %v1624 = vsub.f32 1.0, %v1623
    %v1625 = vmul.f32 %v1622, %v1624
    %v1626 = vadd.f32 %v1622, %v1625
    %vm1627 = vweird.f32 %v1621
    %vm1628 = vweird.f32 %v1622
    %vm1629 = vmor %vm1627, %vm1628
    %v1630 = vsel %vm1629, %v1622, %v1626
    %v1631 = vand.u32 2147483647, %v1621
    %vm1632 = vcmp.eq.f32.partialorder %v1631, 8.507059e+37
    %v1633 = vand.u32 %v1621, 2147483648
    %v1634 = vor.u32 1.1754944e-38, %v1633
    %v1635 = vsel %vm1632, %v1634, %v1630
    %v1636 = vmul.f32 %v1611, %v1635
    %v1637 = vmin.f32 %v1636, 1.0
    %v1638 = vmax.f32 %v1637, -1.0
    %v1639 = vmul.f32 %v1596, %v1596
    %v1640 = vmin.f32 16.0, %v1639
    %v1641 = vmul.f32 %v1640, 2.1237322e-06
    %v1642 = vadd.f32 %v1641, 0.00028619796
    %v1643 = vmul.f32 %v1640, %v1642
    %v1644 = vadd.f32 %v1643, 0.0036580483
    %v1645 = vmul.f32 %v1640, %v1644
    %v1646 = vadd.f32 %v1645, 0.05243302
    %v1647 = vmul.f32 %v1640, %v1646
    %v1648 = vadd.f32 %v1647, 0.18741608
    %v1649 = vmul.f32 %v1640, %v1648
    %v1650 = vadd.f32 %v1649, 1.1283791
    %v1651 = vmul.f32 %v1596, %v1650
    %v1652 = vmul.f32 %v1640, 3.8918573e-05
    %v1653 = vadd.f32 %v1652, 0.001143296
    %v1654 = vmul.f32 %v1640, %v1653
    %v1655 = vadd.f32 %v1654, 0.014752088
    %v1656 = vmul.f32 %v1640, %v1655
    %v1657 = vadd.f32 %v1656, 0.112945676
    %v1658 = vmul.f32 %v1640, %v1657
    %v1659 = vadd.f32 %v1658, 0.4994258
    %v1660 = vmul.f32 %v1640, %v1659
    %v1661 = vadd.f32 %v1660, 1.0
    %v1662 = vrcp.pop %v1661
    %v1663 = vmul.f32 %v1661, %v1662
    %v1664 = vsub.f32 1.0, %v1663
    %v1665 = vmul.f32 %v1662, %v1664
    %v1666 = vadd.f32 %v1662, %v1665
    %vm1667 = vweird.f32 %v1661
    %vm1668 = vweird.f32 %v1662
    %vm1669 = vmor %vm1667, %vm1668
    %v1670 = vsel %vm1669, %v1662, %v1666
    %v1671 = vand.u32 2147483647, %v1661
    %vm1672 = vcmp.eq.f32.partialorder %v1671, 8.507059e+37
    %v1673 = vand.u32 %v1661, 2147483648
    %v1674 = vor.u32 1.1754944e-38, %v1673
    %v1675 = vsel %vm1672, %v1674, %v1670
    %v1676 = vmul.f32 %v1651, %v1675
    %v1677 = vmin.f32 %v1676, 1.0
    %v1678 = vmax.f32 %v1677, -1.0
    %v1679 = vmul.f32 %v1597, %v1597
    %v1680 = vmin.f32 16.0, %v1679
    %v1681 = vmul.f32 %v1680, 2.1237322e-06
    %v1682 = vadd.f32 %v1681, 0.00028619796
    %v1683 = vmul.f32 %v1680, %v1682
    %v1684 = vadd.f32 %v1683, 0.0036580483
    %v1685 = vmul.f32 %v1680, %v1684
    %v1686 = vadd.f32 %v1685, 0.05243302
    %v1687 = vmul.f32 %v1680, %v1686
    %v1688 = vadd.f32 %v1687, 0.18741608
    %v1689 = vmul.f32 %v1680, %v1688
    %v1690 = vadd.f32 %v1689, 1.1283791
    %v1691 = vmul.f32 %v1597, %v1690
    %v1692 = vmul.f32 %v1680, 3.8918573e-05
    %v1693 = vadd.f32 %v1692, 0.001143296
    %v1694 = vmul.f32 %v1680, %v1693
    %v1695 = vadd.f32 %v1694, 0.014752088
    %v1696 = vmul.f32 %v1680, %v1695
    %v1697 = vadd.f32 %v1696, 0.112945676
    %v1698 = vmul.f32 %v1680, %v1697
    %v1699 = vadd.f32 %v1698, 0.4994258
    %v1700 = vmul.f32 %v1680, %v1699
    %v1701 = vadd.f32 %v1700, 1.0
    %v1702 = vrcp.pop %v1701
    %v1703 = vmul.f32 %v1701, %v1702
    %v1704 = vsub.f32 1.0, %v1703
    %v1705 = vmul.f32 %v1702, %v1704
    %v1706 = vadd.f32 %v1702, %v1705
    %vm1707 = vweird.f32 %v1701
    %vm1708 = vweird.f32 %v1702
    %vm1709 = vmor %vm1707, %vm1708
    %v1710 = vsel %vm1709, %v1702, %v1706
    %v1711 = vand.u32 2147483647, %v1701
    %vm1712 = vcmp.eq.f32.partialorder %v1711, 8.507059e+37
    %v1713 = vand.u32 %v1701, 2147483648
    %v1714 = vor.u32 1.1754944e-38, %v1713
    %v1715 = vsel %vm1712, %v1714, %v1710
    %v1716 = vmul.f32 %v1691, %v1715
    %v1717 = vmin.f32 %v1716, 1.0
    %v1718 = vmax.f32 %v1717, -1.0
    %v1719 = vmul.f32 %v1598, %v1598
    %v1720 = vmin.f32 16.0, %v1719
    %v1721 = vmul.f32 %v1720, 2.1237322e-06
    %v1722 = vadd.f32 %v1721, 0.00028619796
    %v1723 = vmul.f32 %v1720, %v1722
    %v1724 = vadd.f32 %v1723, 0.0036580483
    %v1725 = vmul.f32 %v1720, %v1724
    %v1726 = vadd.f32 %v1725, 0.05243302
    %v1727 = vmul.f32 %v1720, %v1726
    %v1728 = vadd.f32 %v1727, 0.18741608
    %v1729 = vmul.f32 %v1720, %v1728
    %v1730 = vadd.f32 %v1729, 1.1283791
    %v1731 = vmul.f32 %v1598, %v1730
    %v1732 = vmul.f32 %v1720, 3.8918573e-05
    %v1733 = vadd.f32 %v1732, 0.001143296
    %v1734 = vmul.f32 %v1720, %v1733
    %v1735 = vadd.f32 %v1734, 0.014752088
    %v1736 = vmul.f32 %v1720, %v1735
    %v1737 = vadd.f32 %v1736, 0.112945676
    %v1738 = vmul.f32 %v1720, %v1737
    %v1739 = vadd.f32 %v1738, 0.4994258
    %v1740 = vmul.f32 %v1720, %v1739
    %v1741 = vadd.f32 %v1740, 1.0
    %v1742 = vrcp.pop %v1741
    %v1743 = vmul.f32 %v1741, %v1742
    %v1744 = vsub.f32 1.0, %v1743
    %v1745 = vmul.f32 %v1742, %v1744
    %v1746 = vadd.f32 %v1742, %v1745
    %vm1747 = vweird.f32 %v1741
    %vm1748 = vweird.f32 %v1742
    %vm1749 = vmor %vm1747, %vm1748
    %v1750 = vsel %vm1749, %v1742, %v1746
    %v1751 = vand.u32 2147483647, %v1741
    %vm1752 = vcmp.eq.f32.partialorder %v1751, 8.507059e+37
    %v1753 = vand.u32 %v1741, 2147483648
    %v1754 = vor.u32 1.1754944e-38, %v1753
    %v1755 = vsel %vm1752, %v1754, %v1750
    %v1756 = vmul.f32 %v1731, %v1755
    %v1757 = vmin.f32 %v1756, 1.0
    %v1758 = vmax.f32 %v1757, -1.0
    %v1759 = vadd.f32 %v1638, 1.0
    %v1760 = vadd.f32 %v1678, 1.0
    %v1761 = vadd.f32 %v1718, 1.0
    %v1762 = vadd.f32 %v1758, 1.0
    %v1763 = vmul.f32 %v1591, %v1759
    %v1764 = vmul.f32 %v1592, %v1760
    %v1765 = vmul.f32 %v1593, %v1761
    %v1766 = vmul.f32 %v1594, %v1762
    %v1767 = vld [vmem:[#allocation11] sm:$0xff]
    %v1768 = vld [vmem:[#allocation11 + $0x8] sm:$0xff]
    %v1769 = vld [vmem:[#allocation11 + $0x10] sm:$0xff]
    %v1770 = vld [vmem:[#allocation11 + $0x18] sm:$0x3f]
    %v1771 = vld [vmem:[#allocation13] sm:$0xff]
    %v1772 = vld [vmem:[#allocation13 + $0x8] sm:$0xff]
    %v1773 = vld [vmem:[#allocation13 + $0x10] sm:$0xff]
    %v1774 = vld [vmem:[#allocation13 + $0x18] sm:$0x3f]
    %1776 = vset.pattern.permute.xlu0 0
    %1777 = vperm.xlu0 %1776, %v1771
    %v1778 = vpop.permute.xlu0 %1777
    %1781 = vset.pattern.permute.xlu0 0
    %1782 = vperm.xlu0 %1781, %v1772
    %v1783 = vpop.permute.xlu0 %1782
    %1786 = vset.pattern.permute.xlu0 0
    %1787 = vperm.xlu0 %1786, %v1773
    %v1788 = vpop.permute.xlu0 %1787
    %1791 = vset.pattern.permute.xlu0 0
    %1792 = vperm.xlu0 %1791, %v1774
    %v1793 = vpop.permute.xlu0 %1792
    %v1796 = vsel %vm1473, %v1767, 0
    %v1799 = vsel %vm1473, %v1768, 0
    %v1802 = vsel %vm1473, %v1769, 0
    %v1805 = vsel %vm1473, %v1770, 0
    %v1808 = vsel %vm1486, %v1766, 0
    %1810 = vmatpush.msra.mxu0 0.0
    %1811 = vmatpush.msra.mxu0 0.0
    %1812 = vmatpush.msra.mxu0 0.0
    %1813 = vmatpush.msra.mxu0 0.0
    %1814 = vmatpush.msra.mxu0 0.0
    %1815 = vmatpush.msra.mxu0 0.0
    %1816 = vmatpush.msra.mxu0 0.0
    %1817 = vmatpush.msra.mxu0 0.0
    %1818 = vmatpush.msra.mxu0 0.0
    %1819 = vmatpush.msra.mxu0 0.0
    %1820 = vmatpush.msra.mxu0 0.0
    %1821 = vmatpush.msra.mxu0 0.0
    %1822 = vmatpush.msra.mxu0 %v1808
    %1823 = vmatpush.msra.mxu0 %v1765
    %1824 = vmatpush.msra.mxu0 %v1764
    %1825 = vmatpush.msra.mxu0 %v1763
    %1826 = vmatmul.f32.gmra.mxu0 %v1796
    %v1827 = vpop.f32.mrf.mxu0
    %v1828 = vadd.f32 %v1778, %v1827
    %1829 = vmatmul.f32.gmra.mxu0 %v1799
    %v1830 = vpop.f32.mrf.mxu0
    %v1831 = vadd.f32 %v1783, %v1830
    %1832 = vmatmul.f32.gmra.mxu0 %v1802
    %v1833 = vpop.f32.mrf.mxu0
    %v1834 = vadd.f32 %v1788, %v1833
    %1835 = vmatmul.f32.gmra.mxu0 %v1805
    %v1836 = vpop.f32.mrf.mxu0
    %v1837 = vadd.f32 %v1793, %v1836
    %1838 = vdwg.mxu0
    %v1839 = vmul.f32 %v1828, 0.5
    %v1840 = vmul.f32 %v1831, 0.5
    %v1841 = vmul.f32 %v1834, 0.5
    %v1842 = vmul.f32 %v1837, 0.5
    %v1843 = vmul.f32 %v1828, 0.70710677
    %v1844 = vmul.f32 %v1831, 0.70710677
    %v1845 = vmul.f32 %v1834, 0.70710677
    %v1846 = vmul.f32 %v1837, 0.70710677
    %v1847 = vmul.f32 %v1843, %v1843
    %v1848 = vmin.f32 16.0, %v1847
    %v1849 = vmul.f32 %v1848, 2.1237322e-06
    %v1850 = vadd.f32 %v1849, 0.00028619796
    %v1851 = vmul.f32 %v1848, %v1850
    %v1852 = vadd.f32 %v1851, 0.0036580483
    %v1853 = vmul.f32 %v1848, %v1852
    %v1854 = vadd.f32 %v1853, 0.05243302
    %v1855 = vmul.f32 %v1848, %v1854
    %v1856 = vadd.f32 %v1855, 0.18741608
    %v1857 = vmul.f32 %v1848, %v1856
    %v1858 = vadd.f32 %v1857, 1.1283791
    %v1859 = vmul.f32 %v1843, %v1858
    %v1860 = vmul.f32 %v1848, 3.8918573e-05
    %v1861 = vadd.f32 %v1860, 0.001143296
    %v1862 = vmul.f32 %v1848, %v1861
    %v1863 = vadd.f32 %v1862, 0.014752088
    %v1864 = vmul.f32 %v1848, %v1863
    %v1865 = vadd.f32 %v1864, 0.112945676
    %v1866 = vmul.f32 %v1848, %v1865
    %v1867 = vadd.f32 %v1866, 0.4994258
    %v1868 = vmul.f32 %v1848, %v1867
    %v1869 = vadd.f32 %v1868, 1.0
    %v1870 = vrcp.pop %v1869
    %v1871 = vmul.f32 %v1869, %v1870
    %v1872 = vsub.f32 1.0, %v1871
    %v1873 = vmul.f32 %v1870, %v1872
    %v1874 = vadd.f32 %v1870, %v1873
    %vm1875 = vweird.f32 %v1869
    %vm1876 = vweird.f32 %v1870
    %vm1877 = vmor %vm1875, %vm1876
    %v1878 = vsel %vm1877, %v1870, %v1874
    %v1879 = vand.u32 2147483647, %v1869
    %vm1880 = vcmp.eq.f32.partialorder %v1879, 8.507059e+37
    %v1881 = vand.u32 %v1869, 2147483648
    %v1882 = vor.u32 1.1754944e-38, %v1881
    %v1883 = vsel %vm1880, %v1882, %v1878
    %v1884 = vmul.f32 %v1859, %v1883
    %v1885 = vmin.f32 %v1884, 1.0
    %v1886 = vmax.f32 %v1885, -1.0
    %v1887 = vmul.f32 %v1844, %v1844
    %v1888 = vmin.f32 16.0, %v1887
    %v1889 = vmul.f32 %v1888, 2.1237322e-06
    %v1890 = vadd.f32 %v1889, 0.00028619796
    %v1891 = vmul.f32 %v1888, %v1890
    %v1892 = vadd.f32 %v1891, 0.0036580483
    %v1893 = vmul.f32 %v1888, %v1892
    %v1894 = vadd.f32 %v1893, 0.05243302
    %v1895 = vmul.f32 %v1888, %v1894
    %v1896 = vadd.f32 %v1895, 0.18741608
    %v1897 = vmul.f32 %v1888, %v1896
    %v1898 = vadd.f32 %v1897, 1.1283791
    %v1899 = vmul.f32 %v1844, %v1898
    %v1900 = vmul.f32 %v1888, 3.8918573e-05
    %v1901 = vadd.f32 %v1900, 0.001143296
    %v1902 = vmul.f32 %v1888, %v1901
    %v1903 = vadd.f32 %v1902, 0.014752088
    %v1904 = vmul.f32 %v1888, %v1903
    %v1905 = vadd.f32 %v1904, 0.112945676
    %v1906 = vmul.f32 %v1888, %v1905
    %v1907 = vadd.f32 %v1906, 0.4994258
    %v1908 = vmul.f32 %v1888, %v1907
    %v1909 = vadd.f32 %v1908, 1.0
    %v1910 = vrcp.pop %v1909
    %v1911 = vmul.f32 %v1909, %v1910
    %v1912 = vsub.f32 1.0, %v1911
    %v1913 = vmul.f32 %v1910, %v1912
    %v1914 = vadd.f32 %v1910, %v1913
    %vm1915 = vweird.f32 %v1909
    %vm1916 = vweird.f32 %v1910
    %vm1917 = vmor %vm1915, %vm1916
    %v1918 = vsel %vm1917, %v1910, %v1914
    %v1919 = vand.u32 2147483647, %v1909
    %vm1920 = vcmp.eq.f32.partialorder %v1919, 8.507059e+37
    %v1921 = vand.u32 %v1909, 2147483648
    %v1922 = vor.u32 1.1754944e-38, %v1921
    %v1923 = vsel %vm1920, %v1922, %v1918
    %v1924 = vmul.f32 %v1899, %v1923
    %v1925 = vmin.f32 %v1924, 1.0
    %v1926 = vmax.f32 %v1925, -1.0
    %v1927 = vmul.f32 %v1845, %v1845
    %v1928 = vmin.f32 16.0, %v1927
    %v1929 = vmul.f32 %v1928, 2.1237322e-06
    %v1930 = vadd.f32 %v1929, 0.00028619796
    %v1931 = vmul.f32 %v1928, %v1930
    %v1932 = vadd.f32 %v1931, 0.0036580483
    %v1933 = vmul.f32 %v1928, %v1932
    %v1934 = vadd.f32 %v1933, 0.05243302
    %v1935 = vmul.f32 %v1928, %v1934
    %v1936 = vadd.f32 %v1935, 0.18741608
    %v1937 = vmul.f32 %v1928, %v1936
    %v1938 = vadd.f32 %v1937, 1.1283791
    %v1939 = vmul.f32 %v1845, %v1938
    %v1940 = vmul.f32 %v1928, 3.8918573e-05
    %v1941 = vadd.f32 %v1940, 0.001143296
    %v1942 = vmul.f32 %v1928, %v1941
    %v1943 = vadd.f32 %v1942, 0.014752088
    %v1944 = vmul.f32 %v1928, %v1943
    %v1945 = vadd.f32 %v1944, 0.112945676
    %v1946 = vmul.f32 %v1928, %v1945
    %v1947 = vadd.f32 %v1946, 0.4994258
    %v1948 = vmul.f32 %v1928, %v1947
    %v1949 = vadd.f32 %v1948, 1.0
    %v1950 = vrcp.pop %v1949
    %v1951 = vmul.f32 %v1949, %v1950
    %v1952 = vsub.f32 1.0, %v1951
    %v1953 = vmul.f32 %v1950, %v1952
    %v1954 = vadd.f32 %v1950, %v1953
    %vm1955 = vweird.f32 %v1949
    %vm1956 = vweird.f32 %v1950
    %vm1957 = vmor %vm1955, %vm1956
    %v1958 = vsel %vm1957, %v1950, %v1954
    %v1959 = vand.u32 2147483647, %v1949
    %vm1960 = vcmp.eq.f32.partialorder %v1959, 8.507059e+37
    %v1961 = vand.u32 %v1949, 2147483648
    %v1962 = vor.u32 1.1754944e-38, %v1961
    %v1963 = vsel %vm1960, %v1962, %v1958
    %v1964 = vmul.f32 %v1939, %v1963
    %v1965 = vmin.f32 %v1964, 1.0
    %v1966 = vmax.f32 %v1965, -1.0
    %v1967 = vmul.f32 %v1846, %v1846
    %v1968 = vmin.f32 16.0, %v1967
    %v1969 = vmul.f32 %v1968, 2.1237322e-06
    %v1970 = vadd.f32 %v1969, 0.00028619796
    %v1971 = vmul.f32 %v1968, %v1970
    %v1972 = vadd.f32 %v1971, 0.0036580483
    %v1973 = vmul.f32 %v1968, %v1972
    %v1974 = vadd.f32 %v1973, 0.05243302
    %v1975 = vmul.f32 %v1968, %v1974
    %v1976 = vadd.f32 %v1975, 0.18741608
    %v1977 = vmul.f32 %v1968, %v1976
    %v1978 = vadd.f32 %v1977, 1.1283791
    %v1979 = vmul.f32 %v1846, %v1978
    %v1980 = vmul.f32 %v1968, 3.8918573e-05
    %v1981 = vadd.f32 %v1980, 0.001143296
    %v1982 = vmul.f32 %v1968, %v1981
    %v1983 = vadd.f32 %v1982, 0.014752088
    %v1984 = vmul.f32 %v1968, %v1983
    %v1985 = vadd.f32 %v1984, 0.112945676
    %v1986 = vmul.f32 %v1968, %v1985
    %v1987 = vadd.f32 %v1986, 0.4994258
    %v1988 = vmul.f32 %v1968, %v1987
    %v1989 = vadd.f32 %v1988, 1.0
    %v1990 = vrcp.pop %v1989
    %v1991 = vmul.f32 %v1989, %v1990
    %v1992 = vsub.f32 1.0, %v1991
    %v1993 = vmul.f32 %v1990, %v1992
    %v1994 = vadd.f32 %v1990, %v1993
    %vm1995 = vweird.f32 %v1989
    %vm1996 = vweird.f32 %v1990
    %vm1997 = vmor %vm1995, %vm1996
    %v1998 = vsel %vm1997, %v1990, %v1994
    %v1999 = vand.u32 2147483647, %v1989
    %vm2000 = vcmp.eq.f32.partialorder %v1999, 8.507059e+37
    %v2001 = vand.u32 %v1989, 2147483648
    %v2002 = vor.u32 1.1754944e-38, %v2001
    %v2003 = vsel %vm2000, %v2002, %v1998
    %v2004 = vmul.f32 %v1979, %v2003
    %v2005 = vmin.f32 %v2004, 1.0
    %v2006 = vmax.f32 %v2005, -1.0
    %v2007 = vadd.f32 %v1886, 1.0
    %v2008 = vadd.f32 %v1926, 1.0
    %v2009 = vadd.f32 %v1966, 1.0
    %v2010 = vadd.f32 %v2006, 1.0
    %v2011 = vmul.f32 %v1839, %v2007
    %v2012 = vmul.f32 %v1840, %v2008
    %v2013 = vmul.f32 %v1841, %v2009
    %v2014 = vmul.f32 %v1842, %v2010
    %s2015 = scalar_lea.vmem [#allocation11], 32
    %v2016 = vld [vmem:[%s2015] sm:$0xff]
    %v2017 = vld [vmem:[%s2015 + $0x8] sm:$0xff]
    %v2018 = vld [vmem:[%s2015 + $0x10] sm:$0xff]
    %v2019 = vld [vmem:[%s2015 + $0x18] sm:$0x3f]
    %s2020 = scalar_lea.vmem [#allocation13], 32
    %v2021 = vld [vmem:[%s2020] sm:$0xff]
    %v2022 = vld [vmem:[%s2020 + $0x8] sm:$0xff]
    %v2023 = vld [vmem:[%s2020 + $0x10] sm:$0xff]
    %v2024 = vld [vmem:[%s2020 + $0x18] sm:$0x3f]
    %2026 = vset.pattern.permute.xlu0 0
    %2027 = vperm.xlu0 %2026, %v2021
    %v2028 = vpop.permute.xlu0 %2027
    %2031 = vset.pattern.permute.xlu0 0
    %2032 = vperm.xlu0 %2031, %v2022
    %v2033 = vpop.permute.xlu0 %2032
    %2036 = vset.pattern.permute.xlu0 0
    %2037 = vperm.xlu0 %2036, %v2023
    %v2038 = vpop.permute.xlu0 %2037
    %2041 = vset.pattern.permute.xlu0 0
    %2042 = vperm.xlu0 %2041, %v2024
    %v2043 = vpop.permute.xlu0 %2042
    %v2046 = vsel %vm1473, %v2016, 0
    %v2049 = vsel %vm1473, %v2017, 0
    %v2052 = vsel %vm1473, %v2018, 0
    %v2055 = vsel %vm1473, %v2019, 0
    %v2058 = vsel %vm1486, %v2014, 0
    %2060 = vmatpush.msra.mxu0 0.0
    %2061 = vmatpush.msra.mxu0 0.0
    %2062 = vmatpush.msra.mxu0 0.0
    %2063 = vmatpush.msra.mxu0 0.0
    %2064 = vmatpush.msra.mxu0 0.0
    %2065 = vmatpush.msra.mxu0 0.0
    %2066 = vmatpush.msra.mxu0 0.0
    %2067 = vmatpush.msra.mxu0 0.0
    %2068 = vmatpush.msra.mxu0 0.0
    %2069 = vmatpush.msra.mxu0 0.0
    %2070 = vmatpush.msra.mxu0 0.0
    %2071 = vmatpush.msra.mxu0 0.0
    %2072 = vmatpush.msra.mxu0 %v2058
    %2073 = vmatpush.msra.mxu0 %v2013
    %2074 = vmatpush.msra.mxu0 %v2012
    %2075 = vmatpush.msra.mxu0 %v2011
    %2076 = vmatmul.f32.gmra.mxu0 %v2046
    %v2077 = vpop.f32.mrf.mxu0
    %v2078 = vadd.f32 %v2028, %v2077
    %2079 = vmatmul.f32.gmra.mxu0 %v2049
    %v2080 = vpop.f32.mrf.mxu0
    %v2081 = vadd.f32 %v2033, %v2080
    %2082 = vmatmul.f32.gmra.mxu0 %v2052
    %v2083 = vpop.f32.mrf.mxu0
    %v2084 = vadd.f32 %v2038, %v2083
    %2085 = vmatmul.f32.gmra.mxu0 %v2055
    %v2086 = vpop.f32.mrf.mxu0
    %v2087 = vadd.f32 %v2043, %v2086
    %2088 = vdwg.mxu0
    %v2089 = vmul.f32 %v2078, 0.5
    %v2090 = vmul.f32 %v2081, 0.5
    %v2091 = vmul.f32 %v2084, 0.5
    %v2092 = vmul.f32 %v2087, 0.5
    %v2093 = vmul.f32 %v2078, 0.70710677
    %v2094 = vmul.f32 %v2081, 0.70710677
    %v2095 = vmul.f32 %v2084, 0.70710677
    %v2096 = vmul.f32 %v2087, 0.70710677
    %v2097 = vmul.f32 %v2093, %v2093
    %v2098 = vmin.f32 16.0, %v2097
    %v2099 = vmul.f32 %v2098, 2.1237322e-06
    %v2100 = vadd.f32 %v2099, 0.00028619796
    %v2101 = vmul.f32 %v2098, %v2100
    %v2102 = vadd.f32 %v2101, 0.0036580483
    %v2103 = vmul.f32 %v2098, %v2102
    %v2104 = vadd.f32 %v2103, 0.05243302
    %v2105 = vmul.f32 %v2098, %v2104
    %v2106 = vadd.f32 %v2105, 0.18741608
    %v2107 = vmul.f32 %v2098, %v2106
    %v2108 = vadd.f32 %v2107, 1.1283791
    %v2109 = vmul.f32 %v2093, %v2108
    %v2110 = vmul.f32 %v2098, 3.8918573e-05
    %v2111 = vadd.f32 %v2110, 0.001143296
    %v2112 = vmul.f32 %v2098, %v2111
    %v2113 = vadd.f32 %v2112, 0.014752088
    %v2114 = vmul.f32 %v2098, %v2113
    %v2115 = vadd.f32 %v2114, 0.112945676
    %v2116 = vmul.f32 %v2098, %v2115
    %v2117 = vadd.f32 %v2116, 0.4994258
    %v2118 = vmul.f32 %v2098, %v2117
    %v2119 = vadd.f32 %v2118, 1.0
    %v2120 = vrcp.pop %v2119
    %v2121 = vmul.f32 %v2119, %v2120
    %v2122 = vsub.f32 1.0, %v2121
    %v2123 = vmul.f32 %v2120, %v2122
    %v2124 = vadd.f32 %v2120, %v2123
    %vm2125 = vweird.f32 %v2119
    %vm2126 = vweird.f32 %v2120
    %vm2127 = vmor %vm2125, %vm2126
    %v2128 = vsel %vm2127, %v2120, %v2124
    %v2129 = vand.u32 2147483647, %v2119
    %vm2130 = vcmp.eq.f32.partialorder %v2129, 8.507059e+37
    %v2131 = vand.u32 %v2119, 2147483648
    %v2132 = vor.u32 1.1754944e-38, %v2131
    %v2133 = vsel %vm2130, %v2132, %v2128
    %v2134 = vmul.f32 %v2109, %v2133
    %v2135 = vmin.f32 %v2134, 1.0
    %v2136 = vmax.f32 %v2135, -1.0
    %v2137 = vmul.f32 %v2094, %v2094
    %v2138 = vmin.f32 16.0, %v2137
    %v2139 = vmul.f32 %v2138, 2.1237322e-06
    %v2140 = vadd.f32 %v2139, 0.00028619796
    %v2141 = vmul.f32 %v2138, %v2140
    %v2142 = vadd.f32 %v2141, 0.0036580483
    %v2143 = vmul.f32 %v2138, %v2142
    %v2144 = vadd.f32 %v2143, 0.05243302
    %v2145 = vmul.f32 %v2138, %v2144
    %v2146 = vadd.f32 %v2145, 0.18741608
    %v2147 = vmul.f32 %v2138, %v2146
    %v2148 = vadd.f32 %v2147, 1.1283791
    %v2149 = vmul.f32 %v2094, %v2148
    %v2150 = vmul.f32 %v2138, 3.8918573e-05
    %v2151 = vadd.f32 %v2150, 0.001143296
    %v2152 = vmul.f32 %v2138, %v2151
    %v2153 = vadd.f32 %v2152, 0.014752088
    %v2154 = vmul.f32 %v2138, %v2153
    %v2155 = vadd.f32 %v2154, 0.112945676
    %v2156 = vmul.f32 %v2138, %v2155
    %v2157 = vadd.f32 %v2156, 0.4994258
    %v2158 = vmul.f32 %v2138, %v2157
    %v2159 = vadd.f32 %v2158, 1.0
    %v2160 = vrcp.pop %v2159
    %v2161 = vmul.f32 %v2159, %v2160
    %v2162 = vsub.f32 1.0, %v2161
    %v2163 = vmul.f32 %v2160, %v2162
    %v2164 = vadd.f32 %v2160, %v2163
    %vm2165 = vweird.f32 %v2159
    %vm2166 = vweird.f32 %v2160
    %vm2167 = vmor %vm2165, %vm2166
    %v2168 = vsel %vm2167, %v2160, %v2164
    %v2169 = vand.u32 2147483647, %v2159
    %vm2170 = vcmp.eq.f32.partialorder %v2169, 8.507059e+37
    %v2171 = vand.u32 %v2159, 2147483648
    %v2172 = vor.u32 1.1754944e-38, %v2171
    %v2173 = vsel %vm2170, %v2172, %v2168
    %v2174 = vmul.f32 %v2149, %v2173
    %v2175 = vmin.f32 %v2174, 1.0
    %v2176 = vmax.f32 %v2175, -1.0
    %v2177 = vmul.f32 %v2095, %v2095
    %v2178 = vmin.f32 16.0, %v2177
    %v2179 = vmul.f32 %v2178, 2.1237322e-06
    %v2180 = vadd.f32 %v2179, 0.00028619796
    %v2181 = vmul.f32 %v2178, %v2180
    %v2182 = vadd.f32 %v2181, 0.0036580483
    %v2183 = vmul.f32 %v2178, %v2182
    %v2184 = vadd.f32 %v2183, 0.05243302
    %v2185 = vmul.f32 %v2178, %v2184
    %v2186 = vadd.f32 %v2185, 0.18741608
    %v2187 = vmul.f32 %v2178, %v2186
    %v2188 = vadd.f32 %v2187, 1.1283791
    %v2189 = vmul.f32 %v2095, %v2188
    %v2190 = vmul.f32 %v2178, 3.8918573e-05
    %v2191 = vadd.f32 %v2190, 0.001143296
    %v2192 = vmul.f32 %v2178, %v2191
    %v2193 = vadd.f32 %v2192, 0.014752088
    %v2194 = vmul.f32 %v2178, %v2193
    %v2195 = vadd.f32 %v2194, 0.112945676
    %v2196 = vmul.f32 %v2178, %v2195
    %v2197 = vadd.f32 %v2196, 0.4994258
    %v2198 = vmul.f32 %v2178, %v2197
    %v2199 = vadd.f32 %v2198, 1.0
    %v2200 = vrcp.pop %v2199
    %v2201 = vmul.f32 %v2199, %v2200
    %v2202 = vsub.f32 1.0, %v2201
    %v2203 = vmul.f32 %v2200, %v2202
    %v2204 = vadd.f32 %v2200, %v2203
    %vm2205 = vweird.f32 %v2199
    %vm2206 = vweird.f32 %v2200
    %vm2207 = vmor %vm2205, %vm2206
    %v2208 = vsel %vm2207, %v2200, %v2204
    %v2209 = vand.u32 2147483647, %v2199
    %vm2210 = vcmp.eq.f32.partialorder %v2209, 8.507059e+37
    %v2211 = vand.u32 %v2199, 2147483648
    %v2212 = vor.u32 1.1754944e-38, %v2211
    %v2213 = vsel %vm2210, %v2212, %v2208
    %v2214 = vmul.f32 %v2189, %v2213
    %v2215 = vmin.f32 %v2214, 1.0
    %v2216 = vmax.f32 %v2215, -1.0
    %v2217 = vmul.f32 %v2096, %v2096
    %v2218 = vmin.f32 16.0, %v2217
    %v2219 = vmul.f32 %v2218, 2.1237322e-06
    %v2220 = vadd.f32 %v2219, 0.00028619796
    %v2221 = vmul.f32 %v2218, %v2220
    %v2222 = vadd.f32 %v2221, 0.0036580483
    %v2223 = vmul.f32 %v2218, %v2222
    %v2224 = vadd.f32 %v2223, 0.05243302
    %v2225 = vmul.f32 %v2218, %v2224
    %v2226 = vadd.f32 %v2225, 0.18741608
    %v2227 = vmul.f32 %v2218, %v2226
    %v2228 = vadd.f32 %v2227, 1.1283791
    %v2229 = vmul.f32 %v2096, %v2228
    %v2230 = vmul.f32 %v2218, 3.8918573e-05
    %v2231 = vadd.f32 %v2230, 0.001143296
    %v2232 = vmul.f32 %v2218, %v2231
    %v2233 = vadd.f32 %v2232, 0.014752088
    %v2234 = vmul.f32 %v2218, %v2233
    %v2235 = vadd.f32 %v2234, 0.112945676
    %v2236 = vmul.f32 %v2218, %v2235
    %v2237 = vadd.f32 %v2236, 0.4994258
    %v2238 = vmul.f32 %v2218, %v2237
    %v2239 = vadd.f32 %v2238, 1.0
    %v2240 = vrcp.pop %v2239
    %v2241 = vmul.f32 %v2239, %v2240
    %v2242 = vsub.f32 1.0, %v2241
    %v2243 = vmul.f32 %v2240, %v2242
    %v2244 = vadd.f32 %v2240, %v2243
    %vm2245 = vweird.f32 %v2239
    %vm2246 = vweird.f32 %v2240
    %vm2247 = vmor %vm2245, %vm2246
    %v2248 = vsel %vm2247, %v2240, %v2244
    %v2249 = vand.u32 2147483647, %v2239
    %vm2250 = vcmp.eq.f32.partialorder %v2249, 8.507059e+37
    %v2251 = vand.u32 %v2239, 2147483648
    %v2252 = vor.u32 1.1754944e-38, %v2251
    %v2253 = vsel %vm2250, %v2252, %v2248
    %v2254 = vmul.f32 %v2229, %v2253
    %v2255 = vmin.f32 %v2254, 1.0
    %v2256 = vmax.f32 %v2255, -1.0
    %v2257 = vadd.f32 %v2136, 1.0
    %v2258 = vadd.f32 %v2176, 1.0
    %v2259 = vadd.f32 %v2216, 1.0
    %v2260 = vadd.f32 %v2256, 1.0
    %v2261 = vmul.f32 %v2089, %v2257
    %v2262 = vmul.f32 %v2090, %v2258
    %v2263 = vmul.f32 %v2091, %v2259
    %v2264 = vmul.f32 %v2092, %v2260
    %s2265 = scalar_lea.vmem [#allocation11], 64
    %v2266 = vld [vmem:[%s2265] sm:$0xff]
    %v2267 = vld [vmem:[%s2265 + $0x8] sm:$0xff]
    %v2268 = vld [vmem:[%s2265 + $0x10] sm:$0xff]
    %v2269 = vld [vmem:[%s2265 + $0x18] sm:$0x3f]
    %s2270 = scalar_lea.vmem [#allocation13], 64
    %v2271 = vld [vmem:[%s2270] sm:$0xff]
    %v2272 = vld [vmem:[%s2270 + $0x8] sm:$0xff]
    %v2273 = vld [vmem:[%s2270 + $0x10] sm:$0xff]
    %v2274 = vld [vmem:[%s2270 + $0x18] sm:$0x3f]
    %2276 = vset.pattern.permute.xlu0 0
    %2277 = vperm.xlu0 %2276, %v2271
    %v2278 = vpop.permute.xlu0 %2277
    %2281 = vset.pattern.permute.xlu0 0
    %2282 = vperm.xlu0 %2281, %v2272
    %v2283 = vpop.permute.xlu0 %2282
    %2286 = vset.pattern.permute.xlu0 0
    %2287 = vperm.xlu0 %2286, %v2273
    %v2288 = vpop.permute.xlu0 %2287
    %2291 = vset.pattern.permute.xlu0 0
    %2292 = vperm.xlu0 %2291, %v2274
    %v2293 = vpop.permute.xlu0 %2292
    %v2296 = vsel %vm1473, %v2266, 0
    %v2299 = vsel %vm1473, %v2267, 0
    %v2302 = vsel %vm1473, %v2268, 0
    %v2305 = vsel %vm1473, %v2269, 0
    %v2308 = vsel %vm1486, %v2264, 0
    %2310 = vmatpush.msra.mxu0 0.0
    %2311 = vmatpush.msra.mxu0 0.0
    %2312 = vmatpush.msra.mxu0 0.0
    %2313 = vmatpush.msra.mxu0 0.0
    %2314 = vmatpush.msra.mxu0 0.0
    %2315 = vmatpush.msra.mxu0 0.0
    %2316 = vmatpush.msra.mxu0 0.0
    %2317 = vmatpush.msra.mxu0 0.0
    %2318 = vmatpush.msra.mxu0 0.0
    %2319 = vmatpush.msra.mxu0 0.0
    %2320 = vmatpush.msra.mxu0 0.0
    %2321 = vmatpush.msra.mxu0 0.0
    %2322 = vmatpush.msra.mxu0 %v2308
    %2323 = vmatpush.msra.mxu0 %v2263
    %2324 = vmatpush.msra.mxu0 %v2262
    %2325 = vmatpush.msra.mxu0 %v2261
    %2326 = vmatmul.f32.gmra.mxu0 %v2296
    %v2327 = vpop.f32.mrf.mxu0
    %v2328 = vadd.f32 %v2278, %v2327
    %2329 = vmatmul.f32.gmra.mxu0 %v2299
    %v2330 = vpop.f32.mrf.mxu0
    %v2331 = vadd.f32 %v2283, %v2330
    %2332 = vmatmul.f32.gmra.mxu0 %v2302
    %v2333 = vpop.f32.mrf.mxu0
    %v2334 = vadd.f32 %v2288, %v2333
    %2335 = vmatmul.f32.gmra.mxu0 %v2305
    %v2336 = vpop.f32.mrf.mxu0
    %v2337 = vadd.f32 %v2293, %v2336
    %2338 = vdwg.mxu0
    %v2339 = vmul.f32 %v2328, 0.5
    %v2340 = vmul.f32 %v2331, 0.5
    %v2341 = vmul.f32 %v2334, 0.5
    %v2342 = vmul.f32 %v2337, 0.5
    %v2343 = vmul.f32 %v2328, 0.70710677
    %v2344 = vmul.f32 %v2331, 0.70710677
    %v2345 = vmul.f32 %v2334, 0.70710677
    %v2346 = vmul.f32 %v2337, 0.70710677
    %v2347 = vmul.f32 %v2343, %v2343
    %v2348 = vmin.f32 16.0, %v2347
    %v2349 = vmul.f32 %v2348, 2.1237322e-06
    %v2350 = vadd.f32 %v2349, 0.00028619796
    %v2351 = vmul.f32 %v2348, %v2350
    %v2352 = vadd.f32 %v2351, 0.0036580483
    %v2353 = vmul.f32 %v2348, %v2352
    %v2354 = vadd.f32 %v2353, 0.05243302
    %v2355 = vmul.f32 %v2348, %v2354
    %v2356 = vadd.f32 %v2355, 0.18741608
    %v2357 = vmul.f32 %v2348, %v2356
    %v2358 = vadd.f32 %v2357, 1.1283791
    %v2359 = vmul.f32 %v2343, %v2358
    %v2360 = vmul.f32 %v2348, 3.8918573e-05
    %v2361 = vadd.f32 %v2360, 0.001143296
    %v2362 = vmul.f32 %v2348, %v2361
    %v2363 = vadd.f32 %v2362, 0.014752088
    %v2364 = vmul.f32 %v2348, %v2363
    %v2365 = vadd.f32 %v2364, 0.112945676
    %v2366 = vmul.f32 %v2348, %v2365
    %v2367 = vadd.f32 %v2366, 0.4994258
    %v2368 = vmul.f32 %v2348, %v2367
    %v2369 = vadd.f32 %v2368, 1.0
    %v2370 = vrcp.pop %v2369
    %v2371 = vmul.f32 %v2369, %v2370
    %v2372 = vsub.f32 1.0, %v2371
    %v2373 = vmul.f32 %v2370, %v2372
    %v2374 = vadd.f32 %v2370, %v2373
    %vm2375 = vweird.f32 %v2369
    %vm2376 = vweird.f32 %v2370
    %vm2377 = vmor %vm2375, %vm2376
    %v2378 = vsel %vm2377, %v2370, %v2374
    %v2379 = vand.u32 2147483647, %v2369
    %vm2380 = vcmp.eq.f32.partialorder %v2379, 8.507059e+37
    %v2381 = vand.u32 %v2369, 2147483648
    %v2382 = vor.u32 1.1754944e-38, %v2381
    %v2383 = vsel %vm2380, %v2382, %v2378
    %v2384 = vmul.f32 %v2359, %v2383
    %v2385 = vmin.f32 %v2384, 1.0
    %v2386 = vmax.f32 %v2385, -1.0
    %v2387 = vmul.f32 %v2344, %v2344
    %v2388 = vmin.f32 16.0, %v2387
    %v2389 = vmul.f32 %v2388, 2.1237322e-06
    %v2390 = vadd.f32 %v2389, 0.00028619796
    %v2391 = vmul.f32 %v2388, %v2390
    %v2392 = vadd.f32 %v2391, 0.0036580483
    %v2393 = vmul.f32 %v2388, %v2392
    %v2394 = vadd.f32 %v2393, 0.05243302
    %v2395 = vmul.f32 %v2388, %v2394
    %v2396 = vadd.f32 %v2395, 0.18741608
    %v2397 = vmul.f32 %v2388, %v2396
    %v2398 = vadd.f32 %v2397, 1.1283791
    %v2399 = vmul.f32 %v2344, %v2398
    %v2400 = vmul.f32 %v2388, 3.8918573e-05
    %v2401 = vadd.f32 %v2400, 0.001143296
    %v2402 = vmul.f32 %v2388, %v2401
    %v2403 = vadd.f32 %v2402, 0.014752088
    %v2404 = vmul.f32 %v2388, %v2403
    %v2405 = vadd.f32 %v2404, 0.112945676
    %v2406 = vmul.f32 %v2388, %v2405
    %v2407 = vadd.f32 %v2406, 0.4994258
    %v2408 = vmul.f32 %v2388, %v2407
    %v2409 = vadd.f32 %v2408, 1.0
    %v2410 = vrcp.pop %v2409
    %v2411 = vmul.f32 %v2409, %v2410
    %v2412 = vsub.f32 1.0, %v2411
    %v2413 = vmul.f32 %v2410, %v2412
    %v2414 = vadd.f32 %v2410, %v2413
    %vm2415 = vweird.f32 %v2409
    %vm2416 = vweird.f32 %v2410
    %vm2417 = vmor %vm2415, %vm2416
    %v2418 = vsel %vm2417, %v2410, %v2414
    %v2419 = vand.u32 2147483647, %v2409
    %vm2420 = vcmp.eq.f32.partialorder %v2419, 8.507059e+37
    %v2421 = vand.u32 %v2409, 2147483648
    %v2422 = vor.u32 1.1754944e-38, %v2421
    %v2423 = vsel %vm2420, %v2422, %v2418
    %v2424 = vmul.f32 %v2399, %v2423
    %v2425 = vmin.f32 %v2424, 1.0
    %v2426 = vmax.f32 %v2425, -1.0
    %v2427 = vmul.f32 %v2345, %v2345
    %v2428 = vmin.f32 16.0, %v2427
    %v2429 = vmul.f32 %v2428, 2.1237322e-06
    %v2430 = vadd.f32 %v2429, 0.00028619796
    %v2431 = vmul.f32 %v2428, %v2430
    %v2432 = vadd.f32 %v2431, 0.0036580483
    %v2433 = vmul.f32 %v2428, %v2432
    %v2434 = vadd.f32 %v2433, 0.05243302
    %v2435 = vmul.f32 %v2428, %v2434
    %v2436 = vadd.f32 %v2435, 0.18741608
    %v2437 = vmul.f32 %v2428, %v2436
    %v2438 = vadd.f32 %v2437, 1.1283791
    %v2439 = vmul.f32 %v2345, %v2438
    %v2440 = vmul.f32 %v2428, 3.8918573e-05
    %v2441 = vadd.f32 %v2440, 0.001143296
    %v2442 = vmul.f32 %v2428, %v2441
    %v2443 = vadd.f32 %v2442, 0.014752088
    %v2444 = vmul.f32 %v2428, %v2443
    %v2445 = vadd.f32 %v2444, 0.112945676
    %v2446 = vmul.f32 %v2428, %v2445
    %v2447 = vadd.f32 %v2446, 0.4994258
    %v2448 = vmul.f32 %v2428, %v2447
    %v2449 = vadd.f32 %v2448, 1.0
    %v2450 = vrcp.pop %v2449
    %v2451 = vmul.f32 %v2449, %v2450
    %v2452 = vsub.f32 1.0, %v2451
    %v2453 = vmul.f32 %v2450, %v2452
    %v2454 = vadd.f32 %v2450, %v2453
    %vm2455 = vweird.f32 %v2449
    %vm2456 = vweird.f32 %v2450
    %vm2457 = vmor %vm2455, %vm2456
    %v2458 = vsel %vm2457, %v2450, %v2454
    %v2459 = vand.u32 2147483647, %v2449
    %vm2460 = vcmp.eq.f32.partialorder %v2459, 8.507059e+37
    %v2461 = vand.u32 %v2449, 2147483648
    %v2462 = vor.u32 1.1754944e-38, %v2461
    %v2463 = vsel %vm2460, %v2462, %v2458
    %v2464 = vmul.f32 %v2439, %v2463
    %v2465 = vmin.f32 %v2464, 1.0
    %v2466 = vmax.f32 %v2465, -1.0
    %v2467 = vmul.f32 %v2346, %v2346
    %v2468 = vmin.f32 16.0, %v2467
    %v2469 = vmul.f32 %v2468, 2.1237322e-06
    %v2470 = vadd.f32 %v2469, 0.00028619796
    %v2471 = vmul.f32 %v2468, %v2470
    %v2472 = vadd.f32 %v2471, 0.0036580483
    %v2473 = vmul.f32 %v2468, %v2472
    %v2474 = vadd.f32 %v2473, 0.05243302
    %v2475 = vmul.f32 %v2468, %v2474
    %v2476 = vadd.f32 %v2475, 0.18741608
    %v2477 = vmul.f32 %v2468, %v2476
    %v2478 = vadd.f32 %v2477, 1.1283791
    %v2479 = vmul.f32 %v2346, %v2478
    %v2480 = vmul.f32 %v2468, 3.8918573e-05
    %v2481 = vadd.f32 %v2480, 0.001143296
    %v2482 = vmul.f32 %v2468, %v2481
    %v2483 = vadd.f32 %v2482, 0.014752088
    %v2484 = vmul.f32 %v2468, %v2483
    %v2485 = vadd.f32 %v2484, 0.112945676
    %v2486 = vmul.f32 %v2468, %v2485
    %v2487 = vadd.f32 %v2486, 0.4994258
    %v2488 = vmul.f32 %v2468, %v2487
    %v2489 = vadd.f32 %v2488, 1.0
    %v2490 = vrcp.pop %v2489
    %v2491 = vmul.f32 %v2489, %v2490
    %v2492 = vsub.f32 1.0, %v2491
    %v2493 = vmul.f32 %v2490, %v2492
    %v2494 = vadd.f32 %v2490, %v2493
    %vm2495 = vweird.f32 %v2489
    %vm2496 = vweird.f32 %v2490
    %vm2497 = vmor %vm2495, %vm2496
    %v2498 = vsel %vm2497, %v2490, %v2494
    %v2499 = vand.u32 2147483647, %v2489
    %vm2500 = vcmp.eq.f32.partialorder %v2499, 8.507059e+37
    %v2501 = vand.u32 %v2489, 2147483648
    %v2502 = vor.u32 1.1754944e-38, %v2501
    %v2503 = vsel %vm2500, %v2502, %v2498
    %v2504 = vmul.f32 %v2479, %v2503
    %v2505 = vmin.f32 %v2504, 1.0
    %v2506 = vmax.f32 %v2505, -1.0
    %v2507 = vadd.f32 %v2386, 1.0
    %v2508 = vadd.f32 %v2426, 1.0
    %v2509 = vadd.f32 %v2466, 1.0
    %v2510 = vadd.f32 %v2506, 1.0
    %v2511 = vmul.f32 %v2339, %v2507
    %v2512 = vmul.f32 %v2340, %v2508
    %v2513 = vmul.f32 %v2341, %v2509
    %v2514 = vmul.f32 %v2342, %v2510
    %s2515 = scalar_lea.vmem [#allocation11], 96
    %v2516 = vld [vmem:[%s2515] sm:$0xff]
    %v2517 = vld [vmem:[%s2515 + $0x8] sm:$0xff]
    %v2518 = vld [vmem:[%s2515 + $0x10] sm:$0xff]
    %v2519 = vld [vmem:[%s2515 + $0x18] sm:$0x3f]
    %s2520 = scalar_lea.vmem [#allocation13], 96
    %v2521 = vld [vmem:[%s2520] sm:$0xff]
    %v2522 = vld [vmem:[%s2520 + $0x8] sm:$0xff]
    %v2523 = vld [vmem:[%s2520 + $0x10] sm:$0xff]
    %v2524 = vld [vmem:[%s2520 + $0x18] sm:$0x3f]
    %2526 = vset.pattern.permute.xlu0 0
    %2527 = vperm.xlu0 %2526, %v2521
    %v2528 = vpop.permute.xlu0 %2527
    %2531 = vset.pattern.permute.xlu0 0
    %2532 = vperm.xlu0 %2531, %v2522
    %v2533 = vpop.permute.xlu0 %2532
    %2536 = vset.pattern.permute.xlu0 0
    %2537 = vperm.xlu0 %2536, %v2523
    %v2538 = vpop.permute.xlu0 %2537
    %2541 = vset.pattern.permute.xlu0 0
    %2542 = vperm.xlu0 %2541, %v2524
    %v2543 = vpop.permute.xlu0 %2542
    %v2546 = vsel %vm1473, %v2516, 0
    %v2549 = vsel %vm1473, %v2517, 0
    %v2552 = vsel %vm1473, %v2518, 0
    %v2555 = vsel %vm1473, %v2519, 0
    %v2558 = vsel %vm1486, %v2514, 0
    %2560 = vmatpush.msra.mxu0 0.0
    %2561 = vmatpush.msra.mxu0 0.0
    %2562 = vmatpush.msra.mxu0 0.0
    %2563 = vmatpush.msra.mxu0 0.0
    %2564 = vmatpush.msra.mxu0 0.0
    %2565 = vmatpush.msra.mxu0 0.0
    %2566 = vmatpush.msra.mxu0 0.0
    %2567 = vmatpush.msra.mxu0 0.0
    %2568 = vmatpush.msra.mxu0 0.0
    %2569 = vmatpush.msra.mxu0 0.0
    %2570 = vmatpush.msra.mxu0 0.0
    %2571 = vmatpush.msra.mxu0 0.0
    %2572 = vmatpush.msra.mxu0 %v2558
    %2573 = vmatpush.msra.mxu0 %v2513
    %2574 = vmatpush.msra.mxu0 %v2512
    %2575 = vmatpush.msra.mxu0 %v2511
    %2576 = vmatmul.f32.gmra.mxu0 %v2546
    %v2577 = vpop.f32.mrf.mxu0
    %v2578 = vadd.f32 %v2528, %v2577
    %2579 = vmatmul.f32.gmra.mxu0 %v2549
    %v2580 = vpop.f32.mrf.mxu0
    %v2581 = vadd.f32 %v2533, %v2580
    %2582 = vmatmul.f32.gmra.mxu0 %v2552
    %v2583 = vpop.f32.mrf.mxu0
    %v2584 = vadd.f32 %v2538, %v2583
    %2585 = vmatmul.f32.gmra.mxu0 %v2555
    %v2586 = vpop.f32.mrf.mxu0
    %v2587 = vadd.f32 %v2543, %v2586
    %2588 = vdwg.mxu0
    %v2589 = vmul.f32 %v2578, 0.5
    %v2590 = vmul.f32 %v2581, 0.5
    %v2591 = vmul.f32 %v2584, 0.5
    %v2592 = vmul.f32 %v2587, 0.5
    %v2593 = vmul.f32 %v2578, 0.70710677
    %v2594 = vmul.f32 %v2581, 0.70710677
    %v2595 = vmul.f32 %v2584, 0.70710677
    %v2596 = vmul.f32 %v2587, 0.70710677
    %v2597 = vmul.f32 %v2593, %v2593
    %v2598 = vmin.f32 16.0, %v2597
    %v2599 = vmul.f32 %v2598, 2.1237322e-06
    %v2600 = vadd.f32 %v2599, 0.00028619796
    %v2601 = vmul.f32 %v2598, %v2600
    %v2602 = vadd.f32 %v2601, 0.0036580483
    %v2603 = vmul.f32 %v2598, %v2602
    %v2604 = vadd.f32 %v2603, 0.05243302
    %v2605 = vmul.f32 %v2598, %v2604
    %v2606 = vadd.f32 %v2605, 0.18741608
    %v2607 = vmul.f32 %v2598, %v2606
    %v2608 = vadd.f32 %v2607, 1.1283791
    %v2609 = vmul.f32 %v2593, %v2608
    %v2610 = vmul.f32 %v2598, 3.8918573e-05
    %v2611 = vadd.f32 %v2610, 0.001143296
    %v2612 = vmul.f32 %v2598, %v2611
    %v2613 = vadd.f32 %v2612, 0.014752088
    %v2614 = vmul.f32 %v2598, %v2613
    %v2615 = vadd.f32 %v2614, 0.112945676
    %v2616 = vmul.f32 %v2598, %v2615
    %v2617 = vadd.f32 %v2616, 0.4994258
    %v2618 = vmul.f32 %v2598, %v2617
    %v2619 = vadd.f32 %v2618, 1.0
    %v2620 = vrcp.pop %v2619
    %v2621 = vmul.f32 %v2619, %v2620
    %v2622 = vsub.f32 1.0, %v2621
    %v2623 = vmul.f32 %v2620, %v2622
    %v2624 = vadd.f32 %v2620, %v2623
    %vm2625 = vweird.f32 %v2619
    %vm2626 = vweird.f32 %v2620
    %vm2627 = vmor %vm2625, %vm2626
    %v2628 = vsel %vm2627, %v2620, %v2624
    %v2629 = vand.u32 2147483647, %v2619
    %vm2630 = vcmp.eq.f32.partialorder %v2629, 8.507059e+37
    %v2631 = vand.u32 %v2619, 2147483648
    %v2632 = vor.u32 1.1754944e-38, %v2631
    %v2633 = vsel %vm2630, %v2632, %v2628
    %v2634 = vmul.f32 %v2609, %v2633
    %v2635 = vmin.f32 %v2634, 1.0
    %v2636 = vmax.f32 %v2635, -1.0
    %v2637 = vmul.f32 %v2594, %v2594
    %v2638 = vmin.f32 16.0, %v2637
    %v2639 = vmul.f32 %v2638, 2.1237322e-06
    %v2640 = vadd.f32 %v2639, 0.00028619796
    %v2641 = vmul.f32 %v2638, %v2640
    %v2642 = vadd.f32 %v2641, 0.0036580483
    %v2643 = vmul.f32 %v2638, %v2642
    %v2644 = vadd.f32 %v2643, 0.05243302
    %v2645 = vmul.f32 %v2638, %v2644
    %v2646 = vadd.f32 %v2645, 0.18741608
    %v2647 = vmul.f32 %v2638, %v2646
    %v2648 = vadd.f32 %v2647, 1.1283791
    %v2649 = vmul.f32 %v2594, %v2648
    %v2650 = vmul.f32 %v2638, 3.8918573e-05
    %v2651 = vadd.f32 %v2650, 0.001143296
    %v2652 = vmul.f32 %v2638, %v2651
    %v2653 = vadd.f32 %v2652, 0.014752088
    %v2654 = vmul.f32 %v2638, %v2653
    %v2655 = vadd.f32 %v2654, 0.112945676
    %v2656 = vmul.f32 %v2638, %v2655
    %v2657 = vadd.f32 %v2656, 0.4994258
    %v2658 = vmul.f32 %v2638, %v2657
    %v2659 = vadd.f32 %v2658, 1.0
    %v2660 = vrcp.pop %v2659
    %v2661 = vmul.f32 %v2659, %v2660
    %v2662 = vsub.f32 1.0, %v2661
    %v2663 = vmul.f32 %v2660, %v2662
    %v2664 = vadd.f32 %v2660, %v2663
    %vm2665 = vweird.f32 %v2659
    %vm2666 = vweird.f32 %v2660
    %vm2667 = vmor %vm2665, %vm2666
    %v2668 = vsel %vm2667, %v2660, %v2664
    %v2669 = vand.u32 2147483647, %v2659
    %vm2670 = vcmp.eq.f32.partialorder %v2669, 8.507059e+37
    %v2671 = vand.u32 %v2659, 2147483648
    %v2672 = vor.u32 1.1754944e-38, %v2671
    %v2673 = vsel %vm2670, %v2672, %v2668
    %v2674 = vmul.f32 %v2649, %v2673
    %v2675 = vmin.f32 %v2674, 1.0
    %v2676 = vmax.f32 %v2675, -1.0
    %v2677 = vmul.f32 %v2595, %v2595
    %v2678 = vmin.f32 16.0, %v2677
    %v2679 = vmul.f32 %v2678, 2.1237322e-06
    %v2680 = vadd.f32 %v2679, 0.00028619796
    %v2681 = vmul.f32 %v2678, %v2680
    %v2682 = vadd.f32 %v2681, 0.0036580483
    %v2683 = vmul.f32 %v2678, %v2682
    %v2684 = vadd.f32 %v2683, 0.05243302
    %v2685 = vmul.f32 %v2678, %v2684
    %v2686 = vadd.f32 %v2685, 0.18741608
    %v2687 = vmul.f32 %v2678, %v2686
    %v2688 = vadd.f32 %v2687, 1.1283791
    %v2689 = vmul.f32 %v2595, %v2688
    %v2690 = vmul.f32 %v2678, 3.8918573e-05
    %v2691 = vadd.f32 %v2690, 0.001143296
    %v2692 = vmul.f32 %v2678, %v2691
    %v2693 = vadd.f32 %v2692, 0.014752088
    %v2694 = vmul.f32 %v2678, %v2693
    %v2695 = vadd.f32 %v2694, 0.112945676
    %v2696 = vmul.f32 %v2678, %v2695
    %v2697 = vadd.f32 %v2696, 0.4994258
    %v2698 = vmul.f32 %v2678, %v2697
    %v2699 = vadd.f32 %v2698, 1.0
    %v2700 = vrcp.pop %v2699
    %v2701 = vmul.f32 %v2699, %v2700
    %v2702 = vsub.f32 1.0, %v2701
    %v2703 = vmul.f32 %v2700, %v2702
    %v2704 = vadd.f32 %v2700, %v2703
    %vm2705 = vweird.f32 %v2699
    %vm2706 = vweird.f32 %v2700
    %vm2707 = vmor %vm2705, %vm2706
    %v2708 = vsel %vm2707, %v2700, %v2704
    %v2709 = vand.u32 2147483647, %v2699
    %vm2710 = vcmp.eq.f32.partialorder %v2709, 8.507059e+37
    %v2711 = vand.u32 %v2699, 2147483648
    %v2712 = vor.u32 1.1754944e-38, %v2711
    %v2713 = vsel %vm2710, %v2712, %v2708
    %v2714 = vmul.f32 %v2689, %v2713
    %v2715 = vmin.f32 %v2714, 1.0
    %v2716 = vmax.f32 %v2715, -1.0
    %v2717 = vmul.f32 %v2596, %v2596
    %v2718 = vmin.f32 16.0, %v2717
    %v2719 = vmul.f32 %v2718, 2.1237322e-06
    %v2720 = vadd.f32 %v2719, 0.00028619796
    %v2721 = vmul.f32 %v2718, %v2720
    %v2722 = vadd.f32 %v2721, 0.0036580483
    %v2723 = vmul.f32 %v2718, %v2722
    %v2724 = vadd.f32 %v2723, 0.05243302
    %v2725 = vmul.f32 %v2718, %v2724
    %v2726 = vadd.f32 %v2725, 0.18741608
    %v2727 = vmul.f32 %v2718, %v2726
    %v2728 = vadd.f32 %v2727, 1.1283791
    %v2729 = vmul.f32 %v2596, %v2728
    %v2730 = vmul.f32 %v2718, 3.8918573e-05
    %v2731 = vadd.f32 %v2730, 0.001143296
    %v2732 = vmul.f32 %v2718, %v2731
    %v2733 = vadd.f32 %v2732, 0.014752088
    %v2734 = vmul.f32 %v2718, %v2733
    %v2735 = vadd.f32 %v2734, 0.112945676
    %v2736 = vmul.f32 %v2718, %v2735
    %v2737 = vadd.f32 %v2736, 0.4994258
    %v2738 = vmul.f32 %v2718, %v2737
    %v2739 = vadd.f32 %v2738, 1.0
    %v2740 = vrcp.pop %v2739
    %v2741 = vmul.f32 %v2739, %v2740
    %v2742 = vsub.f32 1.0, %v2741
    %v2743 = vmul.f32 %v2740, %v2742
    %v2744 = vadd.f32 %v2740, %v2743
    %vm2745 = vweird.f32 %v2739
    %vm2746 = vweird.f32 %v2740
    %vm2747 = vmor %vm2745, %vm2746
    %v2748 = vsel %vm2747, %v2740, %v2744
    %v2749 = vand.u32 2147483647, %v2739
    %vm2750 = vcmp.eq.f32.partialorder %v2749, 8.507059e+37
    %v2751 = vand.u32 %v2739, 2147483648
    %v2752 = vor.u32 1.1754944e-38, %v2751
    %v2753 = vsel %vm2750, %v2752, %v2748
    %v2754 = vmul.f32 %v2729, %v2753
    %v2755 = vmin.f32 %v2754, 1.0
    %v2756 = vmax.f32 %v2755, -1.0
    %v2757 = vadd.f32 %v2636, 1.0
    %v2758 = vadd.f32 %v2676, 1.0
    %v2759 = vadd.f32 %v2716, 1.0
    %v2760 = vadd.f32 %v2756, 1.0
    %v2761 = vmul.f32 %v2589, %v2757
    %v2762 = vmul.f32 %v2590, %v2758
    %v2763 = vmul.f32 %v2591, %v2759
    %v2764 = vmul.f32 %v2592, %v2760
    %s2765 = scalar_lea.vmem [#allocation11], 128
    %v2766 = vld [vmem:[%s2765] sm:$0xff]
    %v2767 = vld [vmem:[%s2765 + $0x8] sm:$0xff]
    %v2768 = vld [vmem:[%s2765 + $0x10] sm:$0xff]
    %v2769 = vld [vmem:[%s2765 + $0x18] sm:$0x3f]
    %s2770 = scalar_lea.vmem [#allocation13], 128
    %v2771 = vld [vmem:[%s2770] sm:$0xff]
    %v2772 = vld [vmem:[%s2770 + $0x8] sm:$0xff]
    %v2773 = vld [vmem:[%s2770 + $0x10] sm:$0xff]
    %v2774 = vld [vmem:[%s2770 + $0x18] sm:$0x3f]
    %2776 = vset.pattern.permute.xlu0 0
    %2777 = vperm.xlu0 %2776, %v2771
    %v2778 = vpop.permute.xlu0 %2777
    %2781 = vset.pattern.permute.xlu0 0
    %2782 = vperm.xlu0 %2781, %v2772
    %v2783 = vpop.permute.xlu0 %2782
    %2786 = vset.pattern.permute.xlu0 0
    %2787 = vperm.xlu0 %2786, %v2773
    %v2788 = vpop.permute.xlu0 %2787
    %2791 = vset.pattern.permute.xlu0 0
    %2792 = vperm.xlu0 %2791, %v2774
    %v2793 = vpop.permute.xlu0 %2792
    %v2796 = vsel %vm1473, %v2766, 0
    %v2799 = vsel %vm1473, %v2767, 0
    %v2802 = vsel %vm1473, %v2768, 0
    %v2805 = vsel %vm1473, %v2769, 0
    %v2808 = vsel %vm1486, %v2764, 0
    %2810 = vmatpush.msra.mxu0 0.0
    %2811 = vmatpush.msra.mxu0 0.0
    %2812 = vmatpush.msra.mxu0 0.0
    %2813 = vmatpush.msra.mxu0 0.0
    %2814 = vmatpush.msra.mxu0 0.0
    %2815 = vmatpush.msra.mxu0 0.0
    %2816 = vmatpush.msra.mxu0 0.0
    %2817 = vmatpush.msra.mxu0 0.0
    %2818 = vmatpush.msra.mxu0 0.0
    %2819 = vmatpush.msra.mxu0 0.0
    %2820 = vmatpush.msra.mxu0 0.0
    %2821 = vmatpush.msra.mxu0 0.0
    %2822 = vmatpush.msra.mxu0 %v2808
    %2823 = vmatpush.msra.mxu0 %v2763
    %2824 = vmatpush.msra.mxu0 %v2762
    %2825 = vmatpush.msra.mxu0 %v2761
    %2826 = vmatmul.f32.gmra.mxu0 %v2796
    %v2827 = vpop.f32.mrf.mxu0
    %v2828 = vadd.f32 %v2778, %v2827
    %2829 = vmatmul.f32.gmra.mxu0 %v2799
    %v2830 = vpop.f32.mrf.mxu0
    %v2831 = vadd.f32 %v2783, %v2830
    %2832 = vmatmul.f32.gmra.mxu0 %v2802
    %v2833 = vpop.f32.mrf.mxu0
    %v2834 = vadd.f32 %v2788, %v2833
    %2835 = vmatmul.f32.gmra.mxu0 %v2805
    %v2836 = vpop.f32.mrf.mxu0
    %v2837 = vadd.f32 %v2793, %v2836
    %2838 = vdwg.mxu0
    %v2839 = vmul.f32 %v2828, 0.5
    %v2840 = vmul.f32 %v2831, 0.5
    %v2841 = vmul.f32 %v2834, 0.5
    %v2842 = vmul.f32 %v2837, 0.5
    %v2843 = vmul.f32 %v2828, 0.70710677
    %v2844 = vmul.f32 %v2831, 0.70710677
    %v2845 = vmul.f32 %v2834, 0.70710677
    %v2846 = vmul.f32 %v2837, 0.70710677
    %v2847 = vmul.f32 %v2843, %v2843
    %v2848 = vmin.f32 16.0, %v2847
    %v2849 = vmul.f32 %v2848, 2.1237322e-06
    %v2850 = vadd.f32 %v2849, 0.00028619796
    %v2851 = vmul.f32 %v2848, %v2850
    %v2852 = vadd.f32 %v2851, 0.0036580483
    %v2853 = vmul.f32 %v2848, %v2852
    %v2854 = vadd.f32 %v2853, 0.05243302
    %v2855 = vmul.f32 %v2848, %v2854
    %v2856 = vadd.f32 %v2855, 0.18741608
    %v2857 = vmul.f32 %v2848, %v2856
    %v2858 = vadd.f32 %v2857, 1.1283791
    %v2859 = vmul.f32 %v2843, %v2858
    %v2860 = vmul.f32 %v2848, 3.8918573e-05
    %v2861 = vadd.f32 %v2860, 0.001143296
    %v2862 = vmul.f32 %v2848, %v2861
    %v2863 = vadd.f32 %v2862, 0.014752088
    %v2864 = vmul.f32 %v2848, %v2863
    %v2865 = vadd.f32 %v2864, 0.112945676
    %v2866 = vmul.f32 %v2848, %v2865
    %v2867 = vadd.f32 %v2866, 0.4994258
    %v2868 = vmul.f32 %v2848, %v2867
    %v2869 = vadd.f32 %v2868, 1.0
    %v2870 = vrcp.pop %v2869
    %v2871 = vmul.f32 %v2869, %v2870
    %v2872 = vsub.f32 1.0, %v2871
    %v2873 = vmul.f32 %v2870, %v2872
    %v2874 = vadd.f32 %v2870, %v2873
    %vm2875 = vweird.f32 %v2869
    %vm2876 = vweird.f32 %v2870
    %vm2877 = vmor %vm2875, %vm2876
    %v2878 = vsel %vm2877, %v2870, %v2874
    %v2879 = vand.u32 2147483647, %v2869
    %vm2880 = vcmp.eq.f32.partialorder %v2879, 8.507059e+37
    %v2881 = vand.u32 %v2869, 2147483648
    %v2882 = vor.u32 1.1754944e-38, %v2881
    %v2883 = vsel %vm2880, %v2882, %v2878
    %v2884 = vmul.f32 %v2859, %v2883
    %v2885 = vmin.f32 %v2884, 1.0
    %v2886 = vmax.f32 %v2885, -1.0
    %v2887 = vmul.f32 %v2844, %v2844
    %v2888 = vmin.f32 16.0, %v2887
    %v2889 = vmul.f32 %v2888, 2.1237322e-06
    %v2890 = vadd.f32 %v2889, 0.00028619796
    %v2891 = vmul.f32 %v2888, %v2890
    %v2892 = vadd.f32 %v2891, 0.0036580483
    %v2893 = vmul.f32 %v2888, %v2892
    %v2894 = vadd.f32 %v2893, 0.05243302
    %v2895 = vmul.f32 %v2888, %v2894
    %v2896 = vadd.f32 %v2895, 0.18741608
    %v2897 = vmul.f32 %v2888, %v2896
    %v2898 = vadd.f32 %v2897, 1.1283791
    %v2899 = vmul.f32 %v2844, %v2898
    %v2900 = vmul.f32 %v2888, 3.8918573e-05
    %v2901 = vadd.f32 %v2900, 0.001143296
    %v2902 = vmul.f32 %v2888, %v2901
    %v2903 = vadd.f32 %v2902, 0.014752088
    %v2904 = vmul.f32 %v2888, %v2903
    %v2905 = vadd.f32 %v2904, 0.112945676
    %v2906 = vmul.f32 %v2888, %v2905
    %v2907 = vadd.f32 %v2906, 0.4994258
    %v2908 = vmul.f32 %v2888, %v2907
    %v2909 = vadd.f32 %v2908, 1.0
    %v2910 = vrcp.pop %v2909
    %v2911 = vmul.f32 %v2909, %v2910
    %v2912 = vsub.f32 1.0, %v2911
    %v2913 = vmul.f32 %v2910, %v2912
    %v2914 = vadd.f32 %v2910, %v2913
    %vm2915 = vweird.f32 %v2909
    %vm2916 = vweird.f32 %v2910
    %vm2917 = vmor %vm2915, %vm2916
    %v2918 = vsel %vm2917, %v2910, %v2914
    %v2919 = vand.u32 2147483647, %v2909
    %vm2920 = vcmp.eq.f32.partialorder %v2919, 8.507059e+37
    %v2921 = vand.u32 %v2909, 2147483648
    %v2922 = vor.u32 1.1754944e-38, %v2921
    %v2923 = vsel %vm2920, %v2922, %v2918
    %v2924 = vmul.f32 %v2899, %v2923
    %v2925 = vmin.f32 %v2924, 1.0
    %v2926 = vmax.f32 %v2925, -1.0
    %v2927 = vmul.f32 %v2845, %v2845
    %v2928 = vmin.f32 16.0, %v2927
    %v2929 = vmul.f32 %v2928, 2.1237322e-06
    %v2930 = vadd.f32 %v2929, 0.00028619796
    %v2931 = vmul.f32 %v2928, %v2930
    %v2932 = vadd.f32 %v2931, 0.0036580483
    %v2933 = vmul.f32 %v2928, %v2932
    %v2934 = vadd.f32 %v2933, 0.05243302
    %v2935 = vmul.f32 %v2928, %v2934
    %v2936 = vadd.f32 %v2935, 0.18741608
    %v2937 = vmul.f32 %v2928, %v2936
    %v2938 = vadd.f32 %v2937, 1.1283791
    %v2939 = vmul.f32 %v2845, %v2938
    %v2940 = vmul.f32 %v2928, 3.8918573e-05
    %v2941 = vadd.f32 %v2940, 0.001143296
    %v2942 = vmul.f32 %v2928, %v2941
    %v2943 = vadd.f32 %v2942, 0.014752088
    %v2944 = vmul.f32 %v2928, %v2943
    %v2945 = vadd.f32 %v2944, 0.112945676
    %v2946 = vmul.f32 %v2928, %v2945
    %v2947 = vadd.f32 %v2946, 0.4994258
    %v2948 = vmul.f32 %v2928, %v2947
    %v2949 = vadd.f32 %v2948, 1.0
    %v2950 = vrcp.pop %v2949
    %v2951 = vmul.f32 %v2949, %v2950
    %v2952 = vsub.f32 1.0, %v2951
    %v2953 = vmul.f32 %v2950, %v2952
    %v2954 = vadd.f32 %v2950, %v2953
    %vm2955 = vweird.f32 %v2949
    %vm2956 = vweird.f32 %v2950
    %vm2957 = vmor %vm2955, %vm2956
    %v2958 = vsel %vm2957, %v2950, %v2954
    %v2959 = vand.u32 2147483647, %v2949
    %vm2960 = vcmp.eq.f32.partialorder %v2959, 8.507059e+37
    %v2961 = vand.u32 %v2949, 2147483648
    %v2962 = vor.u32 1.1754944e-38, %v2961
    %v2963 = vsel %vm2960, %v2962, %v2958
    %v2964 = vmul.f32 %v2939, %v2963
    %v2965 = vmin.f32 %v2964, 1.0
    %v2966 = vmax.f32 %v2965, -1.0
    %v2967 = vmul.f32 %v2846, %v2846
    %v2968 = vmin.f32 16.0, %v2967
    %v2969 = vmul.f32 %v2968, 2.1237322e-06
    %v2970 = vadd.f32 %v2969, 0.00028619796
    %v2971 = vmul.f32 %v2968, %v2970
    %v2972 = vadd.f32 %v2971, 0.0036580483
    %v2973 = vmul.f32 %v2968, %v2972
    %v2974 = vadd.f32 %v2973, 0.05243302
    %v2975 = vmul.f32 %v2968, %v2974
    %v2976 = vadd.f32 %v2975, 0.18741608
    %v2977 = vmul.f32 %v2968, %v2976
    %v2978 = vadd.f32 %v2977, 1.1283791
    %v2979 = vmul.f32 %v2846, %v2978
    %v2980 = vmul.f32 %v2968, 3.8918573e-05
    %v2981 = vadd.f32 %v2980, 0.001143296
    %v2982 = vmul.f32 %v2968, %v2981
    %v2983 = vadd.f32 %v2982, 0.014752088
    %v2984 = vmul.f32 %v2968, %v2983
    %v2985 = vadd.f32 %v2984, 0.112945676
    %v2986 = vmul.f32 %v2968, %v2985
    %v2987 = vadd.f32 %v2986, 0.4994258
    %v2988 = vmul.f32 %v2968, %v2987
    %v2989 = vadd.f32 %v2988, 1.0
    %v2990 = vrcp.pop %v2989
    %v2991 = vmul.f32 %v2989, %v2990
    %v2992 = vsub.f32 1.0, %v2991
    %v2993 = vmul.f32 %v2990, %v2992
    %v2994 = vadd.f32 %v2990, %v2993
    %vm2995 = vweird.f32 %v2989
    %vm2996 = vweird.f32 %v2990
    %vm2997 = vmor %vm2995, %vm2996
    %v2998 = vsel %vm2997, %v2990, %v2994
    %v2999 = vand.u32 2147483647, %v2989
    %vm3000 = vcmp.eq.f32.partialorder %v2999, 8.507059e+37
    %v3001 = vand.u32 %v2989, 2147483648
    %v3002 = vor.u32 1.1754944e-38, %v3001
    %v3003 = vsel %vm3000, %v3002, %v2998
    %v3004 = vmul.f32 %v2979, %v3003
    %v3005 = vmin.f32 %v3004, 1.0
    %v3006 = vmax.f32 %v3005, -1.0
    %v3007 = vadd.f32 %v2886, 1.0
    %v3008 = vadd.f32 %v2926, 1.0
    %v3009 = vadd.f32 %v2966, 1.0
    %v3010 = vadd.f32 %v3006, 1.0
    %v3011 = vmul.f32 %v2839, %v3007
    %v3012 = vmul.f32 %v2840, %v3008
    %v3013 = vmul.f32 %v2841, %v3009
    %v3014 = vmul.f32 %v2842, %v3010
    %s3015 = scalar_lea.vmem [#allocation11], 160
    %v3016 = vld [vmem:[%s3015] sm:$0xff]
    %v3017 = vld [vmem:[%s3015 + $0x8] sm:$0xff]
    %v3018 = vld [vmem:[%s3015 + $0x10] sm:$0xff]
    %v3019 = vld [vmem:[%s3015 + $0x18] sm:$0x3f]
    %s3020 = scalar_lea.vmem [#allocation13], 160
    %v3021 = vld [vmem:[%s3020] sm:$0xff]
    %v3022 = vld [vmem:[%s3020 + $0x8] sm:$0xff]
    %v3023 = vld [vmem:[%s3020 + $0x10] sm:$0xff]
    %v3024 = vld [vmem:[%s3020 + $0x18] sm:$0x3f]
    %3026 = vset.pattern.permute.xlu0 0
    %3027 = vperm.xlu0 %3026, %v3021
    %v3028 = vpop.permute.xlu0 %3027
    %3031 = vset.pattern.permute.xlu0 0
    %3032 = vperm.xlu0 %3031, %v3022
    %v3033 = vpop.permute.xlu0 %3032
    %3036 = vset.pattern.permute.xlu0 0
    %3037 = vperm.xlu0 %3036, %v3023
    %v3038 = vpop.permute.xlu0 %3037
    %3041 = vset.pattern.permute.xlu0 0
    %3042 = vperm.xlu0 %3041, %v3024
    %v3043 = vpop.permute.xlu0 %3042
    %v3046 = vsel %vm1473, %v3016, 0
    %v3049 = vsel %vm1473, %v3017, 0
    %v3052 = vsel %vm1473, %v3018, 0
    %v3055 = vsel %vm1473, %v3019, 0
    %v3058 = vsel %vm1486, %v3014, 0
    %3060 = vmatpush.msra.mxu0 0.0
    %3061 = vmatpush.msra.mxu0 0.0
    %3062 = vmatpush.msra.mxu0 0.0
    %3063 = vmatpush.msra.mxu0 0.0
    %3064 = vmatpush.msra.mxu0 0.0
    %3065 = vmatpush.msra.mxu0 0.0
    %3066 = vmatpush.msra.mxu0 0.0
    %3067 = vmatpush.msra.mxu0 0.0
    %3068 = vmatpush.msra.mxu0 0.0
    %3069 = vmatpush.msra.mxu0 0.0
    %3070 = vmatpush.msra.mxu0 0.0
    %3071 = vmatpush.msra.mxu0 0.0
    %3072 = vmatpush.msra.mxu0 %v3058
    %3073 = vmatpush.msra.mxu0 %v3013
    %3074 = vmatpush.msra.mxu0 %v3012
    %3075 = vmatpush.msra.mxu0 %v3011
    %3076 = vmatmul.f32.gmra.mxu0 %v3046
    %v3077 = vpop.f32.mrf.mxu0
    %v3078 = vadd.f32 %v3028, %v3077
    %3079 = vmatmul.f32.gmra.mxu0 %v3049
    %v3080 = vpop.f32.mrf.mxu0
    %v3081 = vadd.f32 %v3033, %v3080
    %3082 = vmatmul.f32.gmra.mxu0 %v3052
    %v3083 = vpop.f32.mrf.mxu0
    %v3084 = vadd.f32 %v3038, %v3083
    %3085 = vmatmul.f32.gmra.mxu0 %v3055
    %v3086 = vpop.f32.mrf.mxu0
    %v3087 = vadd.f32 %v3043, %v3086
    %3088 = vdwg.mxu0
    %v3089 = vmul.f32 %v3078, 0.5
    %v3090 = vmul.f32 %v3081, 0.5
    %v3091 = vmul.f32 %v3084, 0.5
    %v3092 = vmul.f32 %v3087, 0.5
    %v3093 = vmul.f32 %v3078, 0.70710677
    %v3094 = vmul.f32 %v3081, 0.70710677
    %v3095 = vmul.f32 %v3084, 0.70710677
    %v3096 = vmul.f32 %v3087, 0.70710677
    %v3097 = vmul.f32 %v3093, %v3093
    %v3098 = vmin.f32 16.0, %v3097
    %v3099 = vmul.f32 %v3098, 2.1237322e-06
    %v3100 = vadd.f32 %v3099, 0.00028619796
    %v3101 = vmul.f32 %v3098, %v3100
    %v3102 = vadd.f32 %v3101, 0.0036580483
    %v3103 = vmul.f32 %v3098, %v3102
    %v3104 = vadd.f32 %v3103, 0.05243302
    %v3105 = vmul.f32 %v3098, %v3104
    %v3106 = vadd.f32 %v3105, 0.18741608
    %v3107 = vmul.f32 %v3098, %v3106
    %v3108 = vadd.f32 %v3107, 1.1283791
    %v3109 = vmul.f32 %v3093, %v3108
    %v3110 = vmul.f32 %v3098, 3.8918573e-05
    %v3111 = vadd.f32 %v3110, 0.001143296
    %v3112 = vmul.f32 %v3098, %v3111
    %v3113 = vadd.f32 %v3112, 0.014752088
    %v3114 = vmul.f32 %v3098, %v3113
    %v3115 = vadd.f32 %v3114, 0.112945676
    %v3116 = vmul.f32 %v3098, %v3115
    %v3117 = vadd.f32 %v3116, 0.4994258
    %v3118 = vmul.f32 %v3098, %v3117
    %v3119 = vadd.f32 %v3118, 1.0
    %v3120 = vrcp.pop %v3119
    %v3121 = vmul.f32 %v3119, %v3120
    %v3122 = vsub.f32 1.0, %v3121
    %v3123 = vmul.f32 %v3120, %v3122
    %v3124 = vadd.f32 %v3120, %v3123
    %vm3125 = vweird.f32 %v3119
    %vm3126 = vweird.f32 %v3120
    %vm3127 = vmor %vm3125, %vm3126
    %v3128 = vsel %vm3127, %v3120, %v3124
    %v3129 = vand.u32 2147483647, %v3119
    %vm3130 = vcmp.eq.f32.partialorder %v3129, 8.507059e+37
    %v3131 = vand.u32 %v3119, 2147483648
    %v3132 = vor.u32 1.1754944e-38, %v3131
    %v3133 = vsel %vm3130, %v3132, %v3128
    %v3134 = vmul.f32 %v3109, %v3133
    %v3135 = vmin.f32 %v3134, 1.0
    %v3136 = vmax.f32 %v3135, -1.0
    %v3137 = vmul.f32 %v3094, %v3094
    %v3138 = vmin.f32 16.0, %v3137
    %v3139 = vmul.f32 %v3138, 2.1237322e-06
    %v3140 = vadd.f32 %v3139, 0.00028619796
    %v3141 = vmul.f32 %v3138, %v3140
    %v3142 = vadd.f32 %v3141, 0.0036580483
    %v3143 = vmul.f32 %v3138, %v3142
    %v3144 = vadd.f32 %v3143, 0.05243302
    %v3145 = vmul.f32 %v3138, %v3144
    %v3146 = vadd.f32 %v3145, 0.18741608
    %v3147 = vmul.f32 %v3138, %v3146
    %v3148 = vadd.f32 %v3147, 1.1283791
    %v3149 = vmul.f32 %v3094, %v3148
    %v3150 = vmul.f32 %v3138, 3.8918573e-05
    %v3151 = vadd.f32 %v3150, 0.001143296
    %v3152 = vmul.f32 %v3138, %v3151
    %v3153 = vadd.f32 %v3152, 0.014752088
    %v3154 = vmul.f32 %v3138, %v3153
    %v3155 = vadd.f32 %v3154, 0.112945676
    %v3156 = vmul.f32 %v3138, %v3155
    %v3157 = vadd.f32 %v3156, 0.4994258
    %v3158 = vmul.f32 %v3138, %v3157
    %v3159 = vadd.f32 %v3158, 1.0
    %v3160 = vrcp.pop %v3159
    %v3161 = vmul.f32 %v3159, %v3160
    %v3162 = vsub.f32 1.0, %v3161
    %v3163 = vmul.f32 %v3160, %v3162
    %v3164 = vadd.f32 %v3160, %v3163
    %vm3165 = vweird.f32 %v3159
    %vm3166 = vweird.f32 %v3160
    %vm3167 = vmor %vm3165, %vm3166
    %v3168 = vsel %vm3167, %v3160, %v3164
    %v3169 = vand.u32 2147483647, %v3159
    %vm3170 = vcmp.eq.f32.partialorder %v3169, 8.507059e+37
    %v3171 = vand.u32 %v3159, 2147483648
    %v3172 = vor.u32 1.1754944e-38, %v3171
    %v3173 = vsel %vm3170, %v3172, %v3168
    %v3174 = vmul.f32 %v3149, %v3173
    %v3175 = vmin.f32 %v3174, 1.0
    %v3176 = vmax.f32 %v3175, -1.0
    %v3177 = vmul.f32 %v3095, %v3095
    %v3178 = vmin.f32 16.0, %v3177
    %v3179 = vmul.f32 %v3178, 2.1237322e-06
    %v3180 = vadd.f32 %v3179, 0.00028619796
    %v3181 = vmul.f32 %v3178, %v3180
    %v3182 = vadd.f32 %v3181, 0.0036580483
    %v3183 = vmul.f32 %v3178, %v3182
    %v3184 = vadd.f32 %v3183, 0.05243302
    %v3185 = vmul.f32 %v3178, %v3184
    %v3186 = vadd.f32 %v3185, 0.18741608
    %v3187 = vmul.f32 %v3178, %v3186
    %v3188 = vadd.f32 %v3187, 1.1283791
    %v3189 = vmul.f32 %v3095, %v3188
    %v3190 = vmul.f32 %v3178, 3.8918573e-05
    %v3191 = vadd.f32 %v3190, 0.001143296
    %v3192 = vmul.f32 %v3178, %v3191
    %v3193 = vadd.f32 %v3192, 0.014752088
    %v3194 = vmul.f32 %v3178, %v3193
    %v3195 = vadd.f32 %v3194, 0.112945676
    %v3196 = vmul.f32 %v3178, %v3195
    %v3197 = vadd.f32 %v3196, 0.4994258
    %v3198 = vmul.f32 %v3178, %v3197
    %v3199 = vadd.f32 %v3198, 1.0
    %v3200 = vrcp.pop %v3199
    %v3201 = vmul.f32 %v3199, %v3200
    %v3202 = vsub.f32 1.0, %v3201
    %v3203 = vmul.f32 %v3200, %v3202
    %v3204 = vadd.f32 %v3200, %v3203
    %vm3205 = vweird.f32 %v3199
    %vm3206 = vweird.f32 %v3200
    %vm3207 = vmor %vm3205, %vm3206
    %v3208 = vsel %vm3207, %v3200, %v3204
    %v3209 = vand.u32 2147483647, %v3199
    %vm3210 = vcmp.eq.f32.partialorder %v3209, 8.507059e+37
    %v3211 = vand.u32 %v3199, 2147483648
    %v3212 = vor.u32 1.1754944e-38, %v3211
    %v3213 = vsel %vm3210, %v3212, %v3208
    %v3214 = vmul.f32 %v3189, %v3213
    %v3215 = vmin.f32 %v3214, 1.0
    %v3216 = vmax.f32 %v3215, -1.0
    %v3217 = vmul.f32 %v3096, %v3096
    %v3218 = vmin.f32 16.0, %v3217
    %v3219 = vmul.f32 %v3218, 2.1237322e-06
    %v3220 = vadd.f32 %v3219, 0.00028619796
    %v3221 = vmul.f32 %v3218, %v3220
    %v3222 = vadd.f32 %v3221, 0.0036580483
    %v3223 = vmul.f32 %v3218, %v3222
    %v3224 = vadd.f32 %v3223, 0.05243302
    %v3225 = vmul.f32 %v3218, %v3224
    %v3226 = vadd.f32 %v3225, 0.18741608
    %v3227 = vmul.f32 %v3218, %v3226
    %v3228 = vadd.f32 %v3227, 1.1283791
    %v3229 = vmul.f32 %v3096, %v3228
    %v3230 = vmul.f32 %v3218, 3.8918573e-05
    %v3231 = vadd.f32 %v3230, 0.001143296
    %v3232 = vmul.f32 %v3218, %v3231
    %v3233 = vadd.f32 %v3232, 0.014752088
    %v3234 = vmul.f32 %v3218, %v3233
    %v3235 = vadd.f32 %v3234, 0.112945676
    %v3236 = vmul.f32 %v3218, %v3235
    %v3237 = vadd.f32 %v3236, 0.4994258
    %v3238 = vmul.f32 %v3218, %v3237
    %v3239 = vadd.f32 %v3238, 1.0
    %v3240 = vrcp.pop %v3239
    %v3241 = vmul.f32 %v3239, %v3240
    %v3242 = vsub.f32 1.0, %v3241
    %v3243 = vmul.f32 %v3240, %v3242
    %v3244 = vadd.f32 %v3240, %v3243
    %vm3245 = vweird.f32 %v3239
    %vm3246 = vweird.f32 %v3240
    %vm3247 = vmor %vm3245, %vm3246
    %v3248 = vsel %vm3247, %v3240, %v3244
    %v3249 = vand.u32 2147483647, %v3239
    %vm3250 = vcmp.eq.f32.partialorder %v3249, 8.507059e+37
    %v3251 = vand.u32 %v3239, 2147483648
    %v3252 = vor.u32 1.1754944e-38, %v3251
    %v3253 = vsel %vm3250, %v3252, %v3248
    %v3254 = vmul.f32 %v3229, %v3253
    %v3255 = vmin.f32 %v3254, 1.0
    %v3256 = vmax.f32 %v3255, -1.0
    %v3257 = vadd.f32 %v3136, 1.0
    %v3258 = vadd.f32 %v3176, 1.0
    %v3259 = vadd.f32 %v3216, 1.0
    %v3260 = vadd.f32 %v3256, 1.0
    %v3261 = vmul.f32 %v3089, %v3257
    %v3262 = vmul.f32 %v3090, %v3258
    %v3263 = vmul.f32 %v3091, %v3259
    %v3264 = vmul.f32 %v3092, %v3260
    %s3265 = scalar_lea.vmem [#allocation11], 192
    %v3266 = vld [vmem:[%s3265] sm:$0xff]
    %v3267 = vld [vmem:[%s3265 + $0x8] sm:$0xff]
    %v3268 = vld [vmem:[%s3265 + $0x10] sm:$0xff]
    %v3269 = vld [vmem:[%s3265 + $0x18] sm:$0x3f]
    %s3270 = scalar_lea.vmem [#allocation13], 192
    %v3271 = vld [vmem:[%s3270] sm:$0xff]
    %v3272 = vld [vmem:[%s3270 + $0x8] sm:$0xff]
    %v3273 = vld [vmem:[%s3270 + $0x10] sm:$0xff]
    %v3274 = vld [vmem:[%s3270 + $0x18] sm:$0x3f]
    %3276 = vset.pattern.permute.xlu0 0
    %3277 = vperm.xlu0 %3276, %v3271
    %v3278 = vpop.permute.xlu0 %3277
    %3281 = vset.pattern.permute.xlu0 0
    %3282 = vperm.xlu0 %3281, %v3272
    %v3283 = vpop.permute.xlu0 %3282
    %3286 = vset.pattern.permute.xlu0 0
    %3287 = vperm.xlu0 %3286, %v3273
    %v3288 = vpop.permute.xlu0 %3287
    %3291 = vset.pattern.permute.xlu0 0
    %3292 = vperm.xlu0 %3291, %v3274
    %v3293 = vpop.permute.xlu0 %3292
    %v3296 = vsel %vm1473, %v3266, 0
    %v3299 = vsel %vm1473, %v3267, 0
    %v3302 = vsel %vm1473, %v3268, 0
    %v3305 = vsel %vm1473, %v3269, 0
    %v3308 = vsel %vm1486, %v3264, 0
    %3310 = vmatpush.msra.mxu0 0.0
    %3311 = vmatpush.msra.mxu0 0.0
    %3312 = vmatpush.msra.mxu0 0.0
    %3313 = vmatpush.msra.mxu0 0.0
    %3314 = vmatpush.msra.mxu0 0.0
    %3315 = vmatpush.msra.mxu0 0.0
    %3316 = vmatpush.msra.mxu0 0.0
    %3317 = vmatpush.msra.mxu0 0.0
    %3318 = vmatpush.msra.mxu0 0.0
    %3319 = vmatpush.msra.mxu0 0.0
    %3320 = vmatpush.msra.mxu0 0.0
    %3321 = vmatpush.msra.mxu0 0.0
    %3322 = vmatpush.msra.mxu0 %v3308
    %3323 = vmatpush.msra.mxu0 %v3263
    %3324 = vmatpush.msra.mxu0 %v3262
    %3325 = vmatpush.msra.mxu0 %v3261
    %3326 = vmatmul.f32.gmra.mxu0 %v3296
    %v3327 = vpop.f32.mrf.mxu0
    %v3328 = vadd.f32 %v3278, %v3327
    %3329 = vmatmul.f32.gmra.mxu0 %v3299
    %v3330 = vpop.f32.mrf.mxu0
    %v3331 = vadd.f32 %v3283, %v3330
    %3332 = vmatmul.f32.gmra.mxu0 %v3302
    %v3333 = vpop.f32.mrf.mxu0
    %v3334 = vadd.f32 %v3288, %v3333
    %3335 = vmatmul.f32.gmra.mxu0 %v3305
    %v3336 = vpop.f32.mrf.mxu0
    %v3337 = vadd.f32 %v3293, %v3336
    %3338 = vdwg.mxu0
    %v3339 = vmul.f32 %v3328, 0.5
    %v3340 = vmul.f32 %v3331, 0.5
    %v3341 = vmul.f32 %v3334, 0.5
    %v3342 = vmul.f32 %v3337, 0.5
    %v3343 = vmul.f32 %v3328, 0.70710677
    %v3344 = vmul.f32 %v3331, 0.70710677
    %v3345 = vmul.f32 %v3334, 0.70710677
    %v3346 = vmul.f32 %v3337, 0.70710677
    %v3347 = vmul.f32 %v3343, %v3343
    %v3348 = vmin.f32 16.0, %v3347
    %v3349 = vmul.f32 %v3348, 2.1237322e-06
    %v3350 = vadd.f32 %v3349, 0.00028619796
    %v3351 = vmul.f32 %v3348, %v3350
    %v3352 = vadd.f32 %v3351, 0.0036580483
    %v3353 = vmul.f32 %v3348, %v3352
    %v3354 = vadd.f32 %v3353, 0.05243302
    %v3355 = vmul.f32 %v3348, %v3354
    %v3356 = vadd.f32 %v3355, 0.18741608
    %v3357 = vmul.f32 %v3348, %v3356
    %v3358 = vadd.f32 %v3357, 1.1283791
    %v3359 = vmul.f32 %v3343, %v3358
    %v3360 = vmul.f32 %v3348, 3.8918573e-05
    %v3361 = vadd.f32 %v3360, 0.001143296
    %v3362 = vmul.f32 %v3348, %v3361
    %v3363 = vadd.f32 %v3362, 0.014752088
    %v3364 = vmul.f32 %v3348, %v3363
    %v3365 = vadd.f32 %v3364, 0.112945676
    %v3366 = vmul.f32 %v3348, %v3365
    %v3367 = vadd.f32 %v3366, 0.4994258
    %v3368 = vmul.f32 %v3348, %v3367
    %v3369 = vadd.f32 %v3368, 1.0
    %v3370 = vrcp.pop %v3369
    %v3371 = vmul.f32 %v3369, %v3370
    %v3372 = vsub.f32 1.0, %v3371
    %v3373 = vmul.f32 %v3370, %v3372
    %v3374 = vadd.f32 %v3370, %v3373
    %vm3375 = vweird.f32 %v3369
    %vm3376 = vweird.f32 %v3370
    %vm3377 = vmor %vm3375, %vm3376
    %v3378 = vsel %vm3377, %v3370, %v3374
    %v3379 = vand.u32 2147483647, %v3369
    %vm3380 = vcmp.eq.f32.partialorder %v3379, 8.507059e+37
    %v3381 = vand.u32 %v3369, 2147483648
    %v3382 = vor.u32 1.1754944e-38, %v3381
    %v3383 = vsel %vm3380, %v3382, %v3378
    %v3384 = vmul.f32 %v3359, %v3383
    %v3385 = vmin.f32 %v3384, 1.0
    %v3386 = vmax.f32 %v3385, -1.0
    %v3387 = vmul.f32 %v3344, %v3344
    %v3388 = vmin.f32 16.0, %v3387
    %v3389 = vmul.f32 %v3388, 2.1237322e-06
    %v3390 = vadd.f32 %v3389, 0.00028619796
    %v3391 = vmul.f32 %v3388, %v3390
    %v3392 = vadd.f32 %v3391, 0.0036580483
    %v3393 = vmul.f32 %v3388, %v3392
    %v3394 = vadd.f32 %v3393, 0.05243302
    %v3395 = vmul.f32 %v3388, %v3394
    %v3396 = vadd.f32 %v3395, 0.18741608
    %v3397 = vmul.f32 %v3388, %v3396
    %v3398 = vadd.f32 %v3397, 1.1283791
    %v3399 = vmul.f32 %v3344, %v3398
    %v3400 = vmul.f32 %v3388, 3.8918573e-05
    %v3401 = vadd.f32 %v3400, 0.001143296
    %v3402 = vmul.f32 %v3388, %v3401
    %v3403 = vadd.f32 %v3402, 0.014752088
    %v3404 = vmul.f32 %v3388, %v3403
    %v3405 = vadd.f32 %v3404, 0.112945676
    %v3406 = vmul.f32 %v3388, %v3405
    %v3407 = vadd.f32 %v3406, 0.4994258
    %v3408 = vmul.f32 %v3388, %v3407
    %v3409 = vadd.f32 %v3408, 1.0
    %v3410 = vrcp.pop %v3409
    %v3411 = vmul.f32 %v3409, %v3410
    %v3412 = vsub.f32 1.0, %v3411
    %v3413 = vmul.f32 %v3410, %v3412
    %v3414 = vadd.f32 %v3410, %v3413
    %vm3415 = vweird.f32 %v3409
    %vm3416 = vweird.f32 %v3410
    %vm3417 = vmor %vm3415, %vm3416
    %v3418 = vsel %vm3417, %v3410, %v3414
    %v3419 = vand.u32 2147483647, %v3409
    %vm3420 = vcmp.eq.f32.partialorder %v3419, 8.507059e+37
    %v3421 = vand.u32 %v3409, 2147483648
    %v3422 = vor.u32 1.1754944e-38, %v3421
    %v3423 = vsel %vm3420, %v3422, %v3418
    %v3424 = vmul.f32 %v3399, %v3423
    %v3425 = vmin.f32 %v3424, 1.0
    %v3426 = vmax.f32 %v3425, -1.0
    %v3427 = vmul.f32 %v3345, %v3345
    %v3428 = vmin.f32 16.0, %v3427
    %v3429 = vmul.f32 %v3428, 2.1237322e-06
    %v3430 = vadd.f32 %v3429, 0.00028619796
    %v3431 = vmul.f32 %v3428, %v3430
    %v3432 = vadd.f32 %v3431, 0.0036580483
    %v3433 = vmul.f32 %v3428, %v3432
    %v3434 = vadd.f32 %v3433, 0.05243302
    %v3435 = vmul.f32 %v3428, %v3434
    %v3436 = vadd.f32 %v3435, 0.18741608
    %v3437 = vmul.f32 %v3428, %v3436
    %v3438 = vadd.f32 %v3437, 1.1283791
    %v3439 = vmul.f32 %v3345, %v3438
    %v3440 = vmul.f32 %v3428, 3.8918573e-05
    %v3441 = vadd.f32 %v3440, 0.001143296
    %v3442 = vmul.f32 %v3428, %v3441
    %v3443 = vadd.f32 %v3442, 0.014752088
    %v3444 = vmul.f32 %v3428, %v3443
    %v3445 = vadd.f32 %v3444, 0.112945676
    %v3446 = vmul.f32 %v3428, %v3445
    %v3447 = vadd.f32 %v3446, 0.4994258
    %v3448 = vmul.f32 %v3428, %v3447
    %v3449 = vadd.f32 %v3448, 1.0
    %v3450 = vrcp.pop %v3449
    %v3451 = vmul.f32 %v3449, %v3450
    %v3452 = vsub.f32 1.0, %v3451
    %v3453 = vmul.f32 %v3450, %v3452
    %v3454 = vadd.f32 %v3450, %v3453
    %vm3455 = vweird.f32 %v3449
    %vm3456 = vweird.f32 %v3450
    %vm3457 = vmor %vm3455, %vm3456
    %v3458 = vsel %vm3457, %v3450, %v3454
    %v3459 = vand.u32 2147483647, %v3449
    %vm3460 = vcmp.eq.f32.partialorder %v3459, 8.507059e+37
    %v3461 = vand.u32 %v3449, 2147483648
    %v3462 = vor.u32 1.1754944e-38, %v3461
    %v3463 = vsel %vm3460, %v3462, %v3458
    %v3464 = vmul.f32 %v3439, %v3463
    %v3465 = vmin.f32 %v3464, 1.0
    %v3466 = vmax.f32 %v3465, -1.0
    %v3467 = vmul.f32 %v3346, %v3346
    %v3468 = vmin.f32 16.0, %v3467
    %v3469 = vmul.f32 %v3468, 2.1237322e-06
    %v3470 = vadd.f32 %v3469, 0.00028619796
    %v3471 = vmul.f32 %v3468, %v3470
    %v3472 = vadd.f32 %v3471, 0.0036580483
    %v3473 = vmul.f32 %v3468, %v3472
    %v3474 = vadd.f32 %v3473, 0.05243302
    %v3475 = vmul.f32 %v3468, %v3474
    %v3476 = vadd.f32 %v3475, 0.18741608
    %v3477 = vmul.f32 %v3468, %v3476
    %v3478 = vadd.f32 %v3477, 1.1283791
    %v3479 = vmul.f32 %v3346, %v3478
    %v3480 = vmul.f32 %v3468, 3.8918573e-05
    %v3481 = vadd.f32 %v3480, 0.001143296
    %v3482 = vmul.f32 %v3468, %v3481
    %v3483 = vadd.f32 %v3482, 0.014752088
    %v3484 = vmul.f32 %v3468, %v3483
    %v3485 = vadd.f32 %v3484, 0.112945676
    %v3486 = vmul.f32 %v3468, %v3485
    %v3487 = vadd.f32 %v3486, 0.4994258
    %v3488 = vmul.f32 %v3468, %v3487
    %v3489 = vadd.f32 %v3488, 1.0
    %v3490 = vrcp.pop %v3489
    %v3491 = vmul.f32 %v3489, %v3490
    %v3492 = vsub.f32 1.0, %v3491
    %v3493 = vmul.f32 %v3490, %v3492
    %v3494 = vadd.f32 %v3490, %v3493
    %vm3495 = vweird.f32 %v3489
    %vm3496 = vweird.f32 %v3490
    %vm3497 = vmor %vm3495, %vm3496
    %v3498 = vsel %vm3497, %v3490, %v3494
    %v3499 = vand.u32 2147483647, %v3489
    %vm3500 = vcmp.eq.f32.partialorder %v3499, 8.507059e+37
    %v3501 = vand.u32 %v3489, 2147483648
    %v3502 = vor.u32 1.1754944e-38, %v3501
    %v3503 = vsel %vm3500, %v3502, %v3498
    %v3504 = vmul.f32 %v3479, %v3503
    %v3505 = vmin.f32 %v3504, 1.0
    %v3506 = vmax.f32 %v3505, -1.0
    %v3507 = vadd.f32 %v3386, 1.0
    %v3508 = vadd.f32 %v3426, 1.0
    %v3509 = vadd.f32 %v3466, 1.0
    %v3510 = vadd.f32 %v3506, 1.0
    %v3511 = vmul.f32 %v3339, %v3507
    %v3512 = vmul.f32 %v3340, %v3508
    %v3513 = vmul.f32 %v3341, %v3509
    %v3514 = vmul.f32 %v3342, %v3510
    %v3515 = vld [vmem:[%s8] sm:$0x1]
    %v3516 = vld [vmem:[#allocation2] sm:$0x1]
    %3518 = vset.pattern.permute.xlu0 0
    %3519 = vperm.xlu0 %3518, %v3516
    %v3520 = vpop.permute.xlu0 %3519
    %v3522 = vperm.slane %v3520, 0
    %v3524 = vsel %vm1473, %v3515, 0
    %v3527 = vsel %vm1486, %v3514, 0
    %3529 = vmatpush.msra.mxu0 0.0
    %3530 = vmatpush.msra.mxu0 0.0
    %3531 = vmatpush.msra.mxu0 0.0
    %3532 = vmatpush.msra.mxu0 0.0
    %3533 = vmatpush.msra.mxu0 0.0
    %3534 = vmatpush.msra.mxu0 0.0
    %3535 = vmatpush.msra.mxu0 0.0
    %3536 = vmatpush.msra.mxu0 0.0
    %3537 = vmatpush.msra.mxu0 0.0
    %3538 = vmatpush.msra.mxu0 0.0
    %3539 = vmatpush.msra.mxu0 0.0
    %3540 = vmatpush.msra.mxu0 0.0
    %3541 = vmatpush.msra.mxu0 %v3527
    %3542 = vmatpush.msra.mxu0 %v3513
    %3543 = vmatpush.msra.mxu0 %v3512
    %3544 = vmatpush.msra.mxu0 %v3511
    %3545 = vmatmul.f32.gmra.mxu0 %v3524
    %v3546 = vpop.f32.mrf.mxu0
    %v3547 = vadd.f32 %v3522, %v3546
    %3548 = vdwg.mxu0
    %3549 = vst [vmem:[%s10] sm:$0x1] %v3547
    // Predicated region
    $region70: #{network_model_forward.1} parent=1 // pred_check
      _
    $region71: #{network_model_forward.1} parent=1 // pred_check_branch
      %3551 = sbr.rel (0) target = $region73
    $region72: #{network_model_forward.1} parent=1 // pred_region
      _
    $region73: #{network_model_forward.1} parent=1 // pred_fallthru
      _
    // Predicated region
    $region74: #{network_model_forward.1} parent=1 // pred_check
      _
    $region75: #{network_model_forward.1} parent=1 // pred_check_branch
      %3553 = sbr.rel (0) target = $region77
    $region76: #{network_model_forward.1} parent=1 // pred_region
      _
    $region77: #{network_model_forward.1} parent=1 // pred_fallthru
      _
    %3554 = vsyncpa [#allocation4], 1
    %3555 = vsyncpa [#allocation6], 1
    %3556 = vsyncpa [#allocation9], 1
    %3557 = vsyncpa [#allocation12], 1

</llo_original>
